<compile_context>
chip_gen: v5e
topology: v5e:2x2
jax: 0.10.0
libtpu: 0.0.40
codegen_flags: <defaults>
</compile_context>

<pallas_src>
import jax
import jax.numpy as jnp
from jax.experimental import pallas as pl
from jax.experimental.pallas import tpu as pltpu

_VMEM_LIMIT = 32 * 1024 * 1024   # safe on v5e/v6e (128 MiB phys) and v7x (64 MiB phys)


# --------------------------- tiling helpers ----------------------------------

def _pick_tile_m(M, cands=(512, 256, 128, 64, 8)):
    for t in cands:
        if M % t == 0:
            return t
    return M


def _pick_tile_d(D, H, W, max_rows=2048):
    # largest divisor of D whose tile (td*H*W rows) keeps the f32 accumulator small
    for td in range(D, 0, -1):
        if D % td == 0 and td * H * W <= max_rows:
            return td
    return 1


# ----------------------- analysis GEMM + entropy epilogue --------------------

def _ana_entropy_kernel(p_ref, w_ref, b_ref, mu_ref, invs_ref, yq_ref, lik_ref):
    # latent = patches @ (gain-folded analysis weights) + bias (f32 accumulate)
    y = jnp.dot(p_ref[...], w_ref[...], preferred_element_type=jnp.float32)
    y = y + b_ref[...]
    # hard quantization + factorized logistic likelihood (stable CDF difference)
    yq = jnp.round(y)
    v = yq - mu_ref[...]
    sign = jnp.where(v < 0.0, 1.0, -1.0)
    upper = jax.nn.sigmoid(sign * (v + 0.5) * invs_ref[...])
    lower = jax.nn.sigmoid(sign * (v - 0.5) * invs_ref[...])
    yq_ref[...] = yq.astype(yq_ref.dtype)
    lik_ref[...] = jnp.maximum(jnp.abs(upper - lower), 1e-9)


def pallas_ana_entropy(patches, w, b, mu, inv_scale):
    M, K = patches.shape
    C = w.shape[1]
    tm = _pick_tile_m(M)
    grid = (M // tm,)
    return pl.pallas_call(
        _ana_entropy_kernel,
        out_shape=(jax.ShapeDtypeStruct((M, C), jnp.bfloat16),   # quantized latent
                   jax.ShapeDtypeStruct((M, C), jnp.float32)),   # likelihood
        grid=grid,
        in_specs=[
            pl.BlockSpec((tm, K), lambda i: (i, 0)),
            pl.BlockSpec((K, C), lambda i: (0, 0)),
            pl.BlockSpec((1, C), lambda i: (0, 0)),
            pl.BlockSpec((1, C), lambda i: (0, 0)),
            pl.BlockSpec((1, C), lambda i: (0, 0)),
        ],
        out_specs=(pl.BlockSpec((tm, C), lambda i: (i, 0)),
                   pl.BlockSpec((tm, C), lambda i: (i, 0))),
        compiler_params=pltpu.CompilerParams(
            dimension_semantics=("parallel",),
            vmem_limit_bytes=_VMEM_LIMIT),
    )(patches, w, b, mu, inv_scale)


# -------------------- direct k3 s1 conv (no HBM im2col) -----------------------

def _conv_k3s1_kernel_factory(td, H, W, Cin, Cout, act):
    Mt = td * H * W
    head = (Cout == 1)

    def kernel(xp_ref, w_ref, b_ref, o_ref, acc_ref):
        d = pl.program_id(1)
        acc_ref[...] = jnp.zeros_like(acc_ref)
        for kd in range(3):
            for kh in range(3):
                for kw in range(3):
                    t = (kd * 3 + kh) * 3 + kw
                    win = xp_ref[pl.ds(d * td + kd, td), kh:kh + H, kw:kw + W, :]
                    win2 = win.reshape(Mt, Cin)
                    if head:
                        # Cout == 1: broadcast FMA on the VPU (avoid N=1 matmuls),
                        # reduce over channels once at the end.
                        acc_ref[...] += win2.astype(jnp.float32) * w_ref[t:t + 1, :]
                    else:
                        acc_ref[...] += jnp.dot(
                            win2, w_ref[pl.ds(t * Cin, Cin), :],
                            preferred_element_type=jnp.float32)
        if head:
            y = jnp.sum(acc_ref[...], axis=-1, keepdims=True) + b_ref[...]
        else:
            y = acc_ref[...] + b_ref[...]
        if act == "relu":
            y = jnp.maximum(y, 0.0)
        elif act == "sigmoid":
            y = jax.nn.sigmoid(y)
        o_ref[...] = y.reshape(td, H, W, Cout).astype(o_ref.dtype)

    return kernel


def conv3d_k3s1(x, w, b, act=None, out_dtype=jnp.bfloat16):
    """3D conv, kernel 3, stride 1, pad 1.  x: [B,D,H,W,Cin], w: [27*Cin, Cout]."""
    B, D, H, W, Cin = x.shape
    Cout = w.shape[1]
    xp = jnp.pad(x.astype(jnp.bfloat16), ((0, 0), (1, 1), (1, 1), (1, 1), (0, 0)))
    td = _pick_tile_d(D, H, W)
    Mt = td * H * W
    if Cout == 1:
        w_in = w.reshape(27, Cin).astype(jnp.float32)
        w_spec = pl.BlockSpec((27, Cin), lambda bb, dd: (0, 0))
        acc_cols = Cin
    else:
        w_in = w.astype(jnp.bfloat16)
        w_spec = pl.BlockSpec((27 * Cin, Cout), lambda bb, dd: (0, 0))
        acc_cols = Cout
    return pl.pallas_call(
        _conv_k3s1_kernel_factory(td, H, W, Cin, Cout, act),
        out_shape=jax.ShapeDtypeStruct((B, D, H, W, Cout), out_dtype),
        grid=(B, D // td),
        in_specs=[
            pl.BlockSpec((None, D + 2, H + 2, W + 2, Cin),
                         lambda bb, dd: (bb, 0, 0, 0, 0)),   # whole padded volume, resident
            w_spec,
            pl.BlockSpec((1, Cout), lambda bb, dd: (0, 0)),
        ],
        out_specs=pl.BlockSpec((None, td, H, W, Cout),
                               lambda bb, dd: (bb, dd, 0, 0, 0)),
        scratch_shapes=[pltpu.VMEM((Mt, acc_cols), jnp.float32)],
        compiler_params=pltpu.CompilerParams(
            dimension_semantics=("parallel", "arbitrary"),
            vmem_limit_bytes=_VMEM_LIMIT),
    )(xp, w_in, b.reshape(1, Cout).astype(jnp.float32))


# ------------- fused classifier + pruning + generative upsample --------------

def _cls_prune_up_kernel_factory(td, H, W, C, th):
    Mt = td * H * W

    def kernel(xp_ref, wc_ref, bc_ref, wu_ref, bu_ref, cls_ref, up_ref, acc_ref):
        d = pl.program_id(1)
        acc_ref[...] = jnp.zeros_like(acc_ref)
        for kd in range(3):
            for kh in range(3):
                for kw in range(3):
                    t = (kd * 3 + kh) * 3 + kw
                    win = xp_ref[pl.ds(d * td + kd, td), kh:kh + H, kw:kw + W, :]
                    acc_ref[...] += win.reshape(Mt, C).astype(jnp.float32) * wc_ref[t:t + 1, :]
        logits = jnp.sum(acc_ref[...], axis=-1, keepdims=True) + bc_ref[...]   # (Mt, 1)
        cls_ref[...] = logits.reshape(td, H, W, 1)
        keep = (jax.nn.sigmoid(logits) > th).astype(jnp.float32)
        # centre tap of the 3x3x3 window is slne_feat itself -> prune in place
        center = xp_ref[pl.ds(d * td + 1, td), 1:1 + H, 1:1 + W, :].reshape(Mt, C)
        dec = (center.astype(jnp.float32) * keep).astype(jnp.bfloat16)
        up = jnp.dot(dec, wu_ref[...], preferred_element_type=jnp.float32) + bu_ref[...]
        up = jnp.maximum(up, 0.0)
        up_ref[...] = up.reshape(td, H, W, 8 * C).astype(up_ref.dtype)

    return kernel


def pallas_cls_prune_upsample(feat, cls_w, cls_b, up_w, up_b, th):
    """x_cls = conv_k3(feat, cls_w); keep = sigmoid(x_cls) > th;
    up_raw = relu((feat * keep) @ up_w + up_b)  (pre-interleave, 8*C lane-dense)."""
    B, D, H, W, C = feat.shape
    xp = jnp.pad(feat.astype(jnp.bfloat16), ((0, 0), (1, 1), (1, 1), (1, 1), (0, 0)))
    td = _pick_tile_d(D, H, W)
    Mt = td * H * W
    return pl.pallas_call(
        _cls_prune_up_kernel_factory(td, H, W, C, float(th)),
        out_shape=(jax.ShapeDtypeStruct((B, D, H, W, 1), jnp.float32),
                   jax.ShapeDtypeStruct((B, D, H, W, 8 * C), jnp.bfloat16)),
        grid=(B, D // td),
        in_specs=[
            pl.BlockSpec((None, D + 2, H + 2, W + 2, C),
                         lambda bb, dd: (bb, 0, 0, 0, 0)),
            pl.BlockSpec((27, C), lambda bb, dd: (0, 0)),
            pl.BlockSpec((1, 1), lambda bb, dd: (0, 0)),
            pl.BlockSpec((C, 8 * C), lambda bb, dd: (0, 0)),
            pl.BlockSpec((1, 8 * C), lambda bb, dd: (0, 0)),
        ],
        out_specs=(pl.BlockSpec((None, td, H, W, 1),
                                lambda bb, dd: (bb, dd, 0, 0, 0)),
                   pl.BlockSpec((None, td, H, W, 8 * C),
                                lambda bb, dd: (bb, dd, 0, 0, 0))),
        scratch_shapes=[pltpu.VMEM((Mt, C), jnp.float32)],
        compiler_params=pltpu.CompilerParams(
            dimension_semantics=("parallel", "arbitrary"),
            vmem_limit_bytes=_VMEM_LIMIT),
    )(xp,
      cls_w.reshape(27, C).astype(jnp.float32),
      cls_b.reshape(1, 1).astype(jnp.float32),
      up_w.astype(jnp.bfloat16),
      jnp.tile(up_b, 8).reshape(1, 8 * C).astype(jnp.float32))


# ------------------------------ JAX glue --------------------------------------

def occupancy_ds2(x):
    # coordinate set of MinkowskiConvolution(k=2, s=2): a downsampled coordinate
    # exists iff any voxel of its 2x2x2 block is occupied.  (The conv's weights
    # are irrelevant because x1 is re-featured with ones in the reference.)
    B, D, H, W, C = x.shape
    xb = x.reshape(B, D // 2, 2, H // 2, 2, W // 2, 2, C)
    return (jnp.max(xb, axis=(2, 4, 6)) > 0.0).astype(jnp.float32)


def _patches_k3s2_c1(x):
    # im2col for the analysis conv only (Cin=1 -> 27-wide patches, tiny);
    # the heavy C=32 convolutions use the direct-conv Pallas kernel instead.
    B, D, H, W, C = x.shape
    assert C == 1
    xp = jnp.pad(x, ((0, 0), (1, 1), (1, 1), (1, 1), (0, 0)))
    Do, Ho, Wo = D // 2, H // 2, W // 2
    slices = []
    for i in range(3):
        for j in range(3):
            for k in range(3):
                slices.append(xp[:, i:i + D:2, j:j + H:2, k:k + W:2, 0])
    p = jnp.stack(slices, axis=-1)                       # [B, Do, Ho, Wo, 27]
    return p.reshape(B * Do * Ho * Wo, 27)


# ------------------------------ parameters -------------------------------------

def init_params(key, channels):
    C = channels
    ks = jax.random.split(key, 8)

    def w(k, shape, scale):
        return (jax.random.normal(k, shape) * scale).astype(jnp.float32)

    return {
        # global `downsample` = MinkowskiConvolution(1,1,k=2,s=2,bias): its output
        # is re-featured with ones, so these weights do not affect stage-1 outputs.
        "down_w": w(ks[0], (8, 1), 0.3),
        "down_b": jnp.zeros((1,), jnp.float32),
        # SLNE analysis k3 s2 (1->C), per-channel gain, factorized entropy model
        "ana_w": w(ks[1], (27, C), 0.2),
        "ana_b": jnp.zeros((C,), jnp.float32),
        "gain": (1.0 + 0.05 * jax.random.normal(ks[2], (C,))).astype(jnp.float32),
        "ent_mu": jnp.zeros((C,), jnp.float32),
        "ent_log_scale": jnp.zeros((C,), jnp.float32),
        # SLNE synthesis k3 s1 (C->C) and occupancy classifier (C->1)
        "syn_w": w(ks[3], (27 * C, C), 0.05),
        "syn_b": jnp.zeros((C,), jnp.float32),
        "cls_w": w(ks[4], (27 * C, 1), 0.05),
        "cls_b": jnp.zeros((1,), jnp.float32),
        # one_SOPA_Slim: generative upsample k2 s2 (C->C), refine conv, occupancy head
        "up_w": w(ks[5], (C, 8 * C), 0.05),
        "up_b": jnp.zeros((C,), jnp.float32),
        "sopa_w": w(ks[6], (27 * C, C), 0.05),
        "sopa_b": jnp.zeros((C,), jnp.float32),
        "prob_w": w(ks[7], (27 * C, 1), 0.05),
        "prob_b": jnp.zeros((1,), jnp.float32),
    }


# ------------------------------ forward ----------------------------------------

def pcgcv3_sopa_slne_multi2_stage1_forward(params, x, th, training=False):
    """Dense analogue of the PyTorch forward.  Returns (out_cls, truth, likelihood)."""
    B, D, H, W, _ = x.shape
    D1, H1, W1 = D // 2, H // 2, W // 2
    C = params["syn_b"].shape[0]

    # 1) x1 = downsample(x) re-featured with ones  ->  2x2x2 block occupancy
    x1 = occupancy_ds2(x)

    # 2) slne: analysis (gain folded into weights) + quantize + likelihood, fused
    # TODO(synk): training-time additive-uniform-noise relaxation omitted; hard rounding used.
    patches = _patches_k3s2_c1(x).astype(jnp.bfloat16)
    w_ana = (params["ana_w"] * params["gain"][None, :]).astype(jnp.bfloat16)
    b_ana = (params["ana_b"] * params["gain"]).reshape(1, C).astype(jnp.float32)
    mu = params["ent_mu"].reshape(1, C).astype(jnp.float32)
    inv_s = jnp.exp(-params["ent_log_scale"]).reshape(1, C).astype(jnp.float32)
    yq_flat, lik_flat = pallas_ana_entropy(patches, w_ana, b_ana, mu, inv_s)
    yq = yq_flat.reshape(B, D1, H1, W1, C)
    likelihood = lik_flat.reshape(B, D1, H1, W1, C)

    # synthesis conv + relu (direct conv, no HBM im2col)
    slne_feat = conv3d_k3s1(yq, params["syn_w"], params["syn_b"], act="relu")

    # occupancy classifier + pruning + generative k2s2 upsample, fused in one kernel
    x_cls, up_raw = pallas_cls_prune_upsample(
        slne_feat, params["cls_w"], params["cls_b"],
        params["up_w"], params["up_b"], th)
    up = up_raw.reshape(B, D1, H1, W1, 2, 2, 2, C)
    up = up.transpose(0, 1, 4, 2, 5, 3, 6, 7).reshape(B, D, H, W, C)

    # 3) one_sopa_slne: refine conv + occupancy probabilities
    feat = conv3d_k3s1(up, params["sopa_w"], params["sopa_b"], act="relu")
    probs = conv3d_k3s1(feat, params["prob_w"], params["prob_b"], act="sigmoid",
                        out_dtype=jnp.float32)
    # TODO(synk): x_dec = feat * (probs > th) is not materialised — it is unused
    # in the stage-1 return (out_cls, truth, likelihood).

    out_cls = [x_cls, probs]
    truth = [x1, x]
    return out_cls, truth, likelihood


# ------------------------------ main --------------------------------------------

if __name__ == "__main__":
    key = jax.random.PRNGKey(0)
    k_x, k_p = jax.random.split(key)

    B, S, CH = 2, 16, 32
    # binary occupancy voxel grid (dense analogue of the sparse point cloud input)
    x = (jax.random.uniform(k_x, (B, S, S, S, 1)) < 0.1).astype(jnp.float32)
    th = 0.5

    params = init_params(k_p, CH)
    out_cls, truth, likelihood = pcgcv3_sopa_slne_multi2_stage1_forward(
        params, x, th, training=False)

    jax.block_until_ready(out_cls[0])
    jax.block_until_ready(out_cls[1])
    jax.block_until_ready(truth[0])
    jax.block_until_ready(truth[1])
    jax.block_until_ready(likelihood)

    assert out_cls[0].shape == (B, S // 2, S // 2, S // 2, 1)   # x_cls vs truth x1
    assert out_cls[1].shape == (B, S, S, S, 1)                  # probs vs truth x
    assert truth[0].shape == (B, S // 2, S // 2, S // 2, 1)
    assert truth[1].shape == (B, S, S, S, 1)
    assert likelihood.shape == (B, S // 2, S // 2, S // 2, CH)
    assert bool(jnp.isfinite(likelihood).all())
    assert bool(jnp.isfinite(out_cls[1]).all())

    print("KERNEL_OK")
</pallas_src>

<mosaic_0001>
module attributes {stable_mosaic.version = 11 : i64} {
  func.func @_ana_entropy_kernel(%arg0: i32, %arg1: memref<512x27xbf16, #tpu.memory_space<vmem>>, %arg2: memref<27x32xbf16, #tpu.memory_space<vmem>>, %arg3: memref<1x32xf32, #tpu.memory_space<vmem>>, %arg4: memref<1x32xf32, #tpu.memory_space<vmem>>, %arg5: memref<1x32xf32, #tpu.memory_space<vmem>>, %arg6: memref<512x32xbf16, #tpu.memory_space<vmem>>, %arg7: memref<512x32xf32, #tpu.memory_space<vmem>>) attributes {dimension_semantics = [#tpu.dimension_semantics<parallel>], iteration_bounds = array<i64: 2>, scalar_prefetch = 0 : i64, scratch_operands = 0 : i64, tpu.core_type = #tpu.core_type<tc>, window_params = [{transform_indices = @transform_0, window_bounds = array<i64: 512, 27>}, {pipeline_mode = #tpu.pipeline_mode<synchronous>, transform_indices = @transform_1, window_bounds = array<i64: 27, 32>}, {pipeline_mode = #tpu.pipeline_mode<synchronous>, transform_indices = @transform_2, window_bounds = array<i64: 1, 32>}, {pipeline_mode = #tpu.pipeline_mode<synchronous>, transform_indices = @transform_3, window_bounds = array<i64: 1, 32>}, {pipeline_mode = #tpu.pipeline_mode<synchronous>, transform_indices = @transform_4, window_bounds = array<i64: 1, 32>}, {transform_indices = @transform_5, window_bounds = array<i64: 512, 32>}, {transform_indices = @transform_6, window_bounds = array<i64: 512, 32>}]} {
    %c0 = arith.constant 0 : index
    %c0_0 = arith.constant 0 : index
    %0 = vector.load %arg1[%c0, %c0_0] : memref<512x27xbf16, #tpu.memory_space<vmem>>, vector<512x27xbf16>
    %c0_1 = arith.constant 0 : index
    %c0_2 = arith.constant 0 : index
    %1 = vector.load %arg2[%c0_1, %c0_2] : memref<27x32xbf16, #tpu.memory_space<vmem>>, vector<27x32xbf16>
    %cst = arith.constant dense<0.000000e+00> : vector<512x32xf32>
    %2 = tpu.matmul %0, %1, %cst {dimension_numbers = #tpu.dot_dimension_numbers<[1], [0], [0], [1], [0, 0, 1, 1], [], []>} : vector<512x27xbf16>, vector<27x32xbf16>, vector<512x32xf32> -> vector<512x32xf32>
    %c0_3 = arith.constant 0 : index
    %c0_4 = arith.constant 0 : index
    %3 = vector.load %arg3[%c0_3, %c0_4] : memref<1x32xf32, #tpu.memory_space<vmem>>, vector<1x32xf32>
    %4 = vector.broadcast %3 : vector<1x32xf32> to vector<512x32xf32>
    %5 = arith.addf %2, %4 : vector<512x32xf32>
    %6 = math.roundeven %5 : vector<512x32xf32>
    %c0_5 = arith.constant 0 : index
    %c0_6 = arith.constant 0 : index
    %7 = vector.load %arg4[%c0_5, %c0_6] : memref<1x32xf32, #tpu.memory_space<vmem>>, vector<1x32xf32>
    %8 = vector.broadcast %7 : vector<1x32xf32> to vector<512x32xf32>
    %9 = arith.subf %6, %8 : vector<512x32xf32>
    %cst_7 = arith.constant 0.000000e+00 : f32
    %10 = vector.broadcast %cst_7 : f32 to vector<512x32xf32>
    %11 = arith.cmpf olt, %9, %10 : vector<512x32xf32>
    %cst_8 = arith.constant 1.000000e+00 : f32
    %cst_9 = arith.constant -1.000000e+00 : f32
    %12 = vector.broadcast %cst_8 : f32 to vector<512x32xf32>
    %13 = vector.broadcast %cst_9 : f32 to vector<512x32xf32>
    %14 = arith.select %11, %12, %13 : vector<512x32xi1>, vector<512x32xf32>
    %cst_10 = arith.constant 5.000000e-01 : f32
    %15 = vector.broadcast %cst_10 : f32 to vector<512x32xf32>
    %16 = arith.addf %9, %15 : vector<512x32xf32>
    %17 = arith.mulf %14, %16 : vector<512x32xf32>
    %c0_11 = arith.constant 0 : index
    %c0_12 = arith.constant 0 : index
    %18 = vector.load %arg5[%c0_11, %c0_12] : memref<1x32xf32, #tpu.memory_space<vmem>>, vector<1x32xf32>
    %19 = vector.broadcast %18 : vector<1x32xf32> to vector<512x32xf32>
    %20 = arith.mulf %17, %19 : vector<512x32xf32>
    %21 = arith.negf %20 : vector<512x32xf32>
    %22 = math.exp %21 : vector<512x32xf32>
    %cst_13 = arith.constant 1.000000e+00 : f32
    %23 = vector.broadcast %cst_13 : f32 to vector<512x32xf32>
    %24 = arith.addf %23, %22 : vector<512x32xf32>
    %25 = arith.divf %23, %24 : vector<512x32xf32>
    %cst_14 = arith.constant 5.000000e-01 : f32
    %26 = vector.broadcast %cst_14 : f32 to vector<512x32xf32>
    %27 = arith.subf %9, %26 : vector<512x32xf32>
    %28 = arith.mulf %14, %27 : vector<512x32xf32>
    %c0_15 = arith.constant 0 : index
    %c0_16 = arith.constant 0 : index
    %29 = vector.load %arg5[%c0_15, %c0_16] : memref<1x32xf32, #tpu.memory_space<vmem>>, vector<1x32xf32>
    %30 = vector.broadcast %29 : vector<1x32xf32> to vector<512x32xf32>
    %31 = arith.mulf %28, %30 : vector<512x32xf32>
    %32 = arith.negf %31 : vector<512x32xf32>
    %33 = math.exp %32 : vector<512x32xf32>
    %cst_17 = arith.constant 1.000000e+00 : f32
    %34 = vector.broadcast %cst_17 : f32 to vector<512x32xf32>
    %35 = arith.addf %34, %33 : vector<512x32xf32>
    %36 = arith.divf %34, %35 : vector<512x32xf32>
    %37 = arith.truncf %6 : vector<512x32xf32> to vector<512x32xbf16>
    %c0_18 = arith.constant 0 : index
    %c0_19 = arith.constant 0 : index
    %38 = vector.load %arg6[%c0_18, %c0_19] : memref<512x32xbf16, #tpu.memory_space<vmem>>, vector<512x32xbf16>
    tpu.vector_store %arg6[%c0_18, %c0_19], %37 {strides = array<i32>} : memref<512x32xbf16, #tpu.memory_space<vmem>>, vector<512x32xbf16>,
    %39 = arith.subf %25, %36 : vector<512x32xf32>
    %40 = math.absf %39 : vector<512x32xf32>
    %cst_20 = arith.constant 9.99999971E-10 : f32
    %41 = vector.broadcast %cst_20 : f32 to vector<512x32xf32>
    %42 = arith.maximumf %40, %41 : vector<512x32xf32>
    %c0_21 = arith.constant 0 : index
    %c0_22 = arith.constant 0 : index
    %43 = vector.load %arg7[%c0_21, %c0_22] : memref<512x32xf32, #tpu.memory_space<vmem>>, vector<512x32xf32>
    tpu.vector_store %arg7[%c0_21, %c0_22], %42 {strides = array<i32>} : memref<512x32xf32, #tpu.memory_space<vmem>>, vector<512x32xf32>,
    return
  }
  func.func @transform_0(%arg0: i32) -> (i32, i32) {
    %c0_i32 = arith.constant 0 : i32
    %c0_i32_0 = arith.constant 0 : i32
    return %arg0, %c0_i32 : i32, i32
  }
  func.func @transform_1(%arg0: i32) -> (i32, i32) {
    %c0_i32 = arith.constant 0 : i32
    %c0_i32_0 = arith.constant 0 : i32
    %c0_i32_1 = arith.constant 0 : i32
    return %c0_i32, %c0_i32_0 : i32, i32
  }
  func.func @transform_2(%arg0: i32) -> (i32, i32) {
    %c0_i32 = arith.constant 0 : i32
    %c0_i32_0 = arith.constant 0 : i32
    %c0_i32_1 = arith.constant 0 : i32
    return %c0_i32, %c0_i32_0 : i32, i32
  }
  func.func @transform_3(%arg0: i32) -> (i32, i32) {
    %c0_i32 = arith.constant 0 : i32
    %c0_i32_0 = arith.constant 0 : i32
    %c0_i32_1 = arith.constant 0 : i32
    return %c0_i32, %c0_i32_0 : i32, i32
  }
  func.func @transform_4(%arg0: i32) -> (i32, i32) {
    %c0_i32 = arith.constant 0 : i32
    %c0_i32_0 = arith.constant 0 : i32
    %c0_i32_1 = arith.constant 0 : i32
    return %c0_i32, %c0_i32_0 : i32, i32
  }
  func.func @transform_5(%arg0: i32) -> (i32, i32) {
    %c0_i32 = arith.constant 0 : i32
    %c0_i32_0 = arith.constant 0 : i32
    return %arg0, %c0_i32 : i32, i32
  }
  func.func @transform_6(%arg0: i32) -> (i32, i32) {
    %c0_i32 = arith.constant 0 : i32
    %c0_i32_0 = arith.constant 0 : i32
    return %arg0, %c0_i32 : i32, i32
  }
}

</mosaic_0001>

<llo_original>
// kernel: tpu_custom_call.1
$region0: #{tpu_custom_call.1}
  #allocation0 [shape = 'u32[]', space=smem, size = 0x4, offset = 0x4, fixed_abs, tag = 'smem constant byte address 0x4 - core index']
  #allocation1 [shape = 'u32[72,128]{1,0:T(1,128)}', space=vmem, size = 0x9000, scoped, tag = 'internal scratch']
  %s0 = inlined_call_operand.vmem [shape: bf16[1024,27], index: 0, kind: input, shape index: {}]
  %s1 = inlined_call_operand.vmem [shape: bf16[27,32], index: 1, kind: input, shape index: {}]
  %s2 = inlined_call_operand.vmem [shape: f32[1,32], index: 2, kind: input, shape index: {}]
  %s3 = inlined_call_operand.vmem [shape: f32[1,32], index: 3, kind: input, shape index: {}]
  %s4 = inlined_call_operand.vmem [shape: f32[1,32], index: 4, kind: input, shape index: {}]
  %s5 = inlined_call_operand.vmem [shape: bf16[1024,32], index: 5, kind: output, shape index: {0}]
  %s6 = inlined_call_operand.vmem [shape: f32[1024,32], index: 6, kind: output, shape index: {1}]
  %7 = xla_tuple %s5, %s6
  %s8 = sld [smem:[#allocation0]]
  $region61: #{tpu_custom_call.1} parent=0
    _
  %s10 = ssub.s32 1, %s8
  %s11 = scalar_select 0, %s10, %s8
  loop: start=0, step=1, limit=4
  $region2: #{tpu_custom_call.1} parent=0 // loop_pre_header
    _
  $region3: #{tpu_custom_call.1} parent=0 // loop_header
    %s13 = sphi 0, %s17
    %p14 = scmp.ge.s32.totalorder %s13, 4
    %s23 = sphi 0, %s25
    %s26 = sphi 0, %s23
    %s27 = sphi 0, %s26
    %s43 = sphi 0, %s27
    %s47 = sphi 0, %s47
    %s49 = sphi 0, %s47
    %s50 = sphi 0, %s49
    %s64 = sphi 0, %s50
    %s68 = sphi 0, %s68
    %s70 = sphi 0, %s68
    %s71 = sphi 0, %s70
    %s85 = sphi 0, %s71
    %s89 = sphi 0, %s89
    %s91 = sphi 0, %s89
    %s92 = sphi 0, %s91
    %s106 = sphi 0, %s92
    %s110 = sphi 0, %s110
    %s112 = sphi 0, %s110
    %s113 = sphi 0, %s112
    %s127 = sphi 0, %s113
    %s133 = sphi 0, %s135
    %s136 = sphi 0, %s133
    %s137 = sphi 0, %s136
    %s153 = sphi 0, %s137
    %s159 = sphi 0, %s161
    %s162 = sphi 0, %s159
    %s163 = sphi 0, %s162
    %s179 = sphi 0, %s163
  $region4: #{tpu_custom_call.1} parent=0 // loop_header_branch
    %16 = sbr.rel (%p14) target = $region8
  $region5: #{tpu_custom_call.1} parent=0 // loop_body
    %s18 = ssub.s32 %s13, 1
    %s19 = ssub.s32 %s13, 2
    %s20 = sadd.s32 %s13, 1
    %s21 = ssub.s32 %s13, %s20
    %p22 = scmp.eq.s32.totalorder %s21, 0
    %s24 = sadd.s32 %s23, 1
    %s25 = scalar_select %p22, %s23, %s24
    %p28 = pneg %p22
    %p29 = scmp.eq.s32.totalorder %s13, 1
    %p30 = por %p28, %p29
    %p31 = scmp.ne.s32.totalorder %s23, %s26
    %p32 = scmp.eq.s32.totalorder %s13, 0
    %p33 = por %p31, %p32
    %p34 = scmp.ne.s32.totalorder %s23, %s26
    %p35 = scmp.eq.s32.totalorder %s18, 1
    %p36 = por %p34, %p35
    %p37 = scmp.ne.s32.totalorder %s26, %s27
    %p38 = scmp.eq.s32.totalorder %s18, 0
    %p39 = por %p37, %p38
    %p40 = scmp.ne.s32.totalorder %s26, %s27
    %p41 = scmp.eq.s32.totalorder %s19, 1
    %p42 = por %p40, %p41
    %p44 = scmp.ne.s32.totalorder %s27, %s43
    %p45 = scmp.eq.s32.totalorder %s19, 0
    %p46 = por %p44, %p45
    %s48 = sadd.s32 %s47, 1
    %p51 = scmp.eq.s32.totalorder %s13, 1
    %p52 = scmp.ne.s32.totalorder %s47, %s49
    %p53 = scmp.eq.s32.totalorder %s13, 0
    %p54 = por %p52, %p53
    %p55 = scmp.ne.s32.totalorder %s47, %s49
    %p56 = scmp.eq.s32.totalorder %s18, 1
    %p57 = por %p55, %p56
    %p58 = scmp.ne.s32.totalorder %s49, %s50
    %p59 = scmp.eq.s32.totalorder %s18, 0
    %p60 = por %p58, %p59
    %p61 = scmp.ne.s32.totalorder %s49, %s50
    %p62 = scmp.eq.s32.totalorder %s19, 1
    %p63 = por %p61, %p62
    %p65 = scmp.ne.s32.totalorder %s50, %s64
    %p66 = scmp.eq.s32.totalorder %s19, 0
    %p67 = por %p65, %p66
    %s69 = sadd.s32 %s68, 1
    %p72 = scmp.eq.s32.totalorder %s13, 1
    %p73 = scmp.ne.s32.totalorder %s68, %s70
    %p74 = scmp.eq.s32.totalorder %s13, 0
    %p75 = por %p73, %p74
    %p76 = scmp.ne.s32.totalorder %s68, %s70
    %p77 = scmp.eq.s32.totalorder %s18, 1
    %p78 = por %p76, %p77
    %p79 = scmp.ne.s32.totalorder %s70, %s71
    %p80 = scmp.eq.s32.totalorder %s18, 0
    %p81 = por %p79, %p80
    %p82 = scmp.ne.s32.totalorder %s70, %s71
    %p83 = scmp.eq.s32.totalorder %s19, 1
    %p84 = por %p82, %p83
    %p86 = scmp.ne.s32.totalorder %s71, %s85
    %p87 = scmp.eq.s32.totalorder %s19, 0
    %p88 = por %p86, %p87
    %s90 = sadd.s32 %s89, 1
    %p93 = scmp.eq.s32.totalorder %s13, 1
    %p94 = scmp.ne.s32.totalorder %s89, %s91
    %p95 = scmp.eq.s32.totalorder %s13, 0
    %p96 = por %p94, %p95
    %p97 = scmp.ne.s32.totalorder %s89, %s91
    %p98 = scmp.eq.s32.totalorder %s18, 1
    %p99 = por %p97, %p98
    %p100 = scmp.ne.s32.totalorder %s91, %s92
    %p101 = scmp.eq.s32.totalorder %s18, 0
    %p102 = por %p100, %p101
    %p103 = scmp.ne.s32.totalorder %s91, %s92
    %p104 = scmp.eq.s32.totalorder %s19, 1
    %p105 = por %p103, %p104
    %p107 = scmp.ne.s32.totalorder %s92, %s106
    %p108 = scmp.eq.s32.totalorder %s19, 0
    %p109 = por %p107, %p108
    %s111 = sadd.s32 %s110, 1
    %p114 = scmp.eq.s32.totalorder %s13, 1
    %p115 = scmp.ne.s32.totalorder %s110, %s112
    %p116 = scmp.eq.s32.totalorder %s13, 0
    %p117 = por %p115, %p116
    %p118 = scmp.ne.s32.totalorder %s110, %s112
    %p119 = scmp.eq.s32.totalorder %s18, 1
    %p120 = por %p118, %p119
    %p121 = scmp.ne.s32.totalorder %s112, %s113
    %p122 = scmp.eq.s32.totalorder %s18, 0
    %p123 = por %p121, %p122
    %p124 = scmp.ne.s32.totalorder %s112, %s113
    %p125 = scmp.eq.s32.totalorder %s19, 1
    %p126 = por %p124, %p125
    %p128 = scmp.ne.s32.totalorder %s113, %s127
    %p129 = scmp.eq.s32.totalorder %s19, 0
    %p130 = por %p128, %p129
    %s131 = ssub.s32 %s13, %s20
    %p132 = scmp.eq.s32.totalorder %s131, 0
    %s134 = sadd.s32 %s133, 1
    %s135 = scalar_select %p132, %s133, %s134
    %p138 = pneg %p132
    %p139 = scmp.eq.s32.totalorder %s13, 1
    %p140 = por %p138, %p139
    %p141 = scmp.ne.s32.totalorder %s133, %s136
    %p142 = scmp.eq.s32.totalorder %s13, 0
    %p143 = por %p141, %p142
    %p144 = scmp.ne.s32.totalorder %s133, %s136
    %p145 = scmp.eq.s32.totalorder %s18, 1
    %p146 = por %p144, %p145
    %p147 = scmp.ne.s32.totalorder %s136, %s137
    %p148 = scmp.eq.s32.totalorder %s18, 0
    %p149 = por %p147, %p148
    %p150 = scmp.ne.s32.totalorder %s136, %s137
    %p151 = scmp.eq.s32.totalorder %s19, 1
    %p152 = por %p150, %p151
    %p154 = scmp.ne.s32.totalorder %s137, %s153
    %p155 = scmp.eq.s32.totalorder %s19, 0
    %p156 = por %p154, %p155
    %s157 = ssub.s32 %s13, %s20
    %p158 = scmp.eq.s32.totalorder %s157, 0
    %s160 = sadd.s32 %s159, 1
    %s161 = scalar_select %p158, %s159, %s160
    %p164 = pneg %p158
    %p165 = scmp.eq.s32.totalorder %s13, 1
    %p166 = por %p164, %p165
    %p167 = scmp.ne.s32.totalorder %s159, %s162
    %p168 = scmp.eq.s32.totalorder %s13, 0
    %p169 = por %p167, %p168
    %p170 = scmp.ne.s32.totalorder %s159, %s162
    %p171 = scmp.eq.s32.totalorder %s18, 1
    %p172 = por %p170, %p171
    %p173 = scmp.ne.s32.totalorder %s162, %s163
    %p174 = scmp.eq.s32.totalorder %s18, 0
    %p175 = por %p173, %p174
    %p176 = scmp.ne.s32.totalorder %s162, %s163
    %p177 = scmp.eq.s32.totalorder %s19, 1
    %p178 = por %p176, %p177
    %p180 = scmp.ne.s32.totalorder %s163, %s179
    %p181 = scmp.eq.s32.totalorder %s19, 0
    %p182 = por %p180, %p181
    %p183 = scmp.le.s32.totalorder 1, %s13
    %p184 = scmp.lt.s32.totalorder %s13, 3
    %p185 = pnand %p183, %p184
    %p186 = pneg %p185
    // Predicated region
    $region9: #{tpu_custom_call.1} parent=5 // pred_check
      _
    $region10: #{tpu_custom_call.1} parent=5 // pred_check_branch
      %188 = sbr.rel (%p185) target = $region12
    $region11: #{tpu_custom_call.1} parent=5 // pred_region
      %s189 = ssub.s32 %s13, 1
      // Predicated region
      $region13: #{tpu_custom_call.1} parent=11 // pred_check
        %p190 = pneg %p60
      $region14: #{tpu_custom_call.1} parent=11 // pred_check_branch
        %192 = sbr.rel (%p190) target = $region16
      $region15: #{tpu_custom_call.1} parent=11 // pred_region
        _
      $region16: #{tpu_custom_call.1} parent=11 // pred_fallthru
        _
      // Predicated region
      $region17: #{tpu_custom_call.1} parent=11 // pred_check
        %p193 = pneg %p81
      $region18: #{tpu_custom_call.1} parent=11 // pred_check_branch
        %195 = sbr.rel (%p193) target = $region20
      $region19: #{tpu_custom_call.1} parent=11 // pred_region
        _
      $region20: #{tpu_custom_call.1} parent=11 // pred_fallthru
        _
      // Predicated region
      $region21: #{tpu_custom_call.1} parent=11 // pred_check
        %p196 = pneg %p102
      $region22: #{tpu_custom_call.1} parent=11 // pred_check_branch
        %198 = sbr.rel (%p196) target = $region24
      $region23: #{tpu_custom_call.1} parent=11 // pred_region
        _
      $region24: #{tpu_custom_call.1} parent=11 // pred_fallthru
        _
      // Predicated region
      $region25: #{tpu_custom_call.1} parent=11 // pred_check
        %p199 = pneg %p123
      $region26: #{tpu_custom_call.1} parent=11 // pred_check_branch
        %201 = sbr.rel (%p199) target = $region28
      $region27: #{tpu_custom_call.1} parent=11 // pred_region
        _
      $region28: #{tpu_custom_call.1} parent=11 // pred_fallthru
        _
    $region12: #{tpu_custom_call.1} parent=5 // pred_fallthru
      _
    %p202 = scmp.lt.s32.totalorder %s13, 2
    // Predicated region
    $region29: #{tpu_custom_call.1} parent=5 // pred_check
      %p203 = pneg %p202
    $region30: #{tpu_custom_call.1} parent=5 // pred_check_branch
      %205 = sbr.rel (%p203) target = $region32
    $region31: #{tpu_custom_call.1} parent=5 // pred_region
      // Predicated region
      $region33: #{tpu_custom_call.1} parent=31 // pred_check
        %p206 = pneg %p33
      $region34: #{tpu_custom_call.1} parent=31 // pred_check_branch
        %208 = sbr.rel (%p206) target = $region36
      $region35: #{tpu_custom_call.1} parent=31 // pred_region
        %s209 = smul.u32 64, %s13
        %p210 = scmp.lt.s32.totalorder %s209, 127
        %s211 = scalar_select %p210, %s209, 127
        %s212 = smul.addr %s211, 4
        %s213 = scalar_lea.vmem %s0, %s212
        %s214 = smul.u32 64, %s13
      $region36: #{tpu_custom_call.1} parent=31 // pred_fallthru
        _
    $region32: #{tpu_custom_call.1} parent=5 // pred_fallthru
      _
    %p215 = scmp.le.s32.totalorder 1, %s13
    %p216 = scmp.lt.s32.totalorder %s13, 3
    %p217 = pnand %p215, %p216
    %p218 = pneg %p217
    // Predicated region
    $region37: #{tpu_custom_call.1} parent=5 // pred_check
      _
    $region38: #{tpu_custom_call.1} parent=5 // pred_check_branch
      %220 = sbr.rel (%p217) target = $region40
    $region39: #{tpu_custom_call.1} parent=5 // pred_region
      %s221 = ssub.s32 %s13, 1
      %s222 = smul.u32 64, %s18
      %p223 = scmp.lt.s32.totalorder %s222, 127
      %s224 = scalar_select %p223, %s222, 127
      %s225 = smul.addr %s224, 4
      %s226 = scalar_lea.vmem %s0, %s225
      %p227 = pneg %p39
      %p228 = pneg %p36
      %p229 = pneg %p60
      %p230 = pneg %p57
      %p231 = pneg %p81
      %p232 = pneg %p78
      %p233 = pneg %p102
      %p234 = pneg %p99
      %p235 = pneg %p123
      %p236 = pneg %p120
      %p237 = pneg %p149
      %p238 = pneg %p146
      %s239 = smul.u32 64, %s18
      %p240 = scmp.lt.s32.totalorder %s239, 127
      %s241 = scalar_select %p240, %s239, 127
      %s242 = smul.addr %s241, 4
      %s243 = scalar_lea.vmem %s5, %s242
      %p244 = pneg %p175
      %p245 = pneg %p172
      %s246 = smul.u32 64, %s18
      %p247 = scmp.lt.s32.totalorder %s246, 127
      %s248 = scalar_select %p247, %s246, 127
      %s249 = smul.addr %s248, 8
      %s250 = scalar_lea.vmem %s6, %s249
      %s251 = smul.u32 64, %s18
      %p252 = scmp.lt.s32.totalorder %s251, 127
      %s253 = scalar_select %p252, %s251, 127
      %s254 = smul.addr %s253, 4
      %s255 = scalar_lea.vmem %s0, %s254
      %s256 = smul.u32 64, %s18
      %s257 = smul.u32 64, %s18
      %p258 = scmp.lt.s32.totalorder %s257, 127
      %s259 = scalar_select %p258, %s257, 127
      %s260 = smul.addr %s259, 4
      %s261 = scalar_lea.vmem %s5, %s260
      %s262 = smul.u32 64, %s18
      %s263 = smul.u32 64, %s18
      %p264 = scmp.lt.s32.totalorder %s263, 127
      %s265 = scalar_select %p264, %s263, 127
      %s266 = smul.addr %s265, 8
      %s267 = scalar_lea.vmem %s6, %s266
      %s268 = smul.u32 64, %s18
      %v270 = vld [vmem:[%s255] sm:$0xf]
      %v271 = vld [vmem:[%s255 + $0x4] sm:$0xf]
      %v272 = vld [vmem:[%s255 + $0x8] sm:$0xf]
      %v273 = vld [vmem:[%s255 + $0xc] sm:$0xf]
      %v274 = vld [vmem:[%s255 + $0x10] sm:$0xf]
      %v275 = vld [vmem:[%s255 + $0x14] sm:$0xf]
      %v276 = vld [vmem:[%s255 + $0x18] sm:$0xf]
      %v277 = vld [vmem:[%s255 + $0x1c] sm:$0xf]
      %v278 = vld [vmem:[%s255 + $0x20] sm:$0xf]
      %v279 = vld [vmem:[%s255 + $0x24] sm:$0xf]
      %v280 = vld [vmem:[%s255 + $0x28] sm:$0xf]
      %v281 = vld [vmem:[%s255 + $0x2c] sm:$0xf]
      %v282 = vld [vmem:[%s255 + $0x30] sm:$0xf]
      %v283 = vld [vmem:[%s255 + $0x34] sm:$0xf]
      %v284 = vld [vmem:[%s255 + $0x38] sm:$0xf]
      %v285 = vld [vmem:[%s255 + $0x3c] sm:$0xf]
      %v286 = vld [vmem:[%s255 + $0x40] sm:$0xf]
      %v287 = vld [vmem:[%s255 + $0x44] sm:$0xf]
      %v288 = vld [vmem:[%s255 + $0x48] sm:$0xf]
      %v289 = vld [vmem:[%s255 + $0x4c] sm:$0xf]
      %v290 = vld [vmem:[%s255 + $0x50] sm:$0xf]
      %v291 = vld [vmem:[%s255 + $0x54] sm:$0xf]
      %v292 = vld [vmem:[%s255 + $0x58] sm:$0xf]
      %v293 = vld [vmem:[%s255 + $0x5c] sm:$0xf]
      %v294 = vld [vmem:[%s255 + $0x60] sm:$0xf]
      %v295 = vld [vmem:[%s255 + $0x64] sm:$0xf]
      %v296 = vld [vmem:[%s255 + $0x68] sm:$0xf]
      %v297 = vld [vmem:[%s255 + $0x6c] sm:$0xf]
      %v298 = vld [vmem:[%s255 + $0x70] sm:$0xf]
      %v299 = vld [vmem:[%s255 + $0x74] sm:$0xf]
      %v300 = vld [vmem:[%s255 + $0x78] sm:$0xf]
      %v301 = vld [vmem:[%s255 + $0x7c] sm:$0xf]
      %v302 = vld [vmem:[%s255 + $0x80] sm:$0xf]
      %v303 = vld [vmem:[%s255 + $0x84] sm:$0xf]
      %v304 = vld [vmem:[%s255 + $0x88] sm:$0xf]
      %v305 = vld [vmem:[%s255 + $0x8c] sm:$0xf]
      %v306 = vld [vmem:[%s255 + $0x90] sm:$0xf]
      %v307 = vld [vmem:[%s255 + $0x94] sm:$0xf]
      %v308 = vld [vmem:[%s255 + $0x98] sm:$0xf]
      %v309 = vld [vmem:[%s255 + $0x9c] sm:$0xf]
      %v310 = vld [vmem:[%s255 + $0xa0] sm:$0xf]
      %v311 = vld [vmem:[%s255 + $0xa4] sm:$0xf]
      %v312 = vld [vmem:[%s255 + $0xa8] sm:$0xf]
      %v313 = vld [vmem:[%s255 + $0xac] sm:$0xf]
      %v314 = vld [vmem:[%s255 + $0xb0] sm:$0xf]
      %v315 = vld [vmem:[%s255 + $0xb4] sm:$0xf]
      %v316 = vld [vmem:[%s255 + $0xb8] sm:$0xf]
      %v317 = vld [vmem:[%s255 + $0xbc] sm:$0xf]
      %v318 = vld [vmem:[%s255 + $0xc0] sm:$0xf]
      %v319 = vld [vmem:[%s255 + $0xc4] sm:$0xf]
      %v320 = vld [vmem:[%s255 + $0xc8] sm:$0xf]
      %v321 = vld [vmem:[%s255 + $0xcc] sm:$0xf]
      %v322 = vld [vmem:[%s255 + $0xd0] sm:$0xf]
      %v323 = vld [vmem:[%s255 + $0xd4] sm:$0xf]
      %v324 = vld [vmem:[%s255 + $0xd8] sm:$0xf]
      %v325 = vld [vmem:[%s255 + $0xdc] sm:$0xf]
      %v326 = vld [vmem:[%s255 + $0xe0] sm:$0xf]
      %v327 = vld [vmem:[%s255 + $0xe4] sm:$0xf]
      %v328 = vld [vmem:[%s255 + $0xe8] sm:$0xf]
      %v329 = vld [vmem:[%s255 + $0xec] sm:$0xf]
      %v330 = vld [vmem:[%s255 + $0xf0] sm:$0xf]
      %v331 = vld [vmem:[%s255 + $0xf4] sm:$0xf]
      %v332 = vld [vmem:[%s255 + $0xf8] sm:$0xf]
      %v333 = vld [vmem:[%s255 + $0xfc] sm:$0xf]
      %v334 = vld [vmem:[%s1] sm:$0xf]
      %v335 = vld [vmem:[%s1 + $0x4] sm:$0xf]
      %v336 = vld [vmem:[%s1 + $0x8] sm:$0xf]
      %v337 = vld [vmem:[%s1 + $0xc] sm:$0x3]
      %v338 = vld [vmem:[%s2] sm:$0x1]
      %v340 = vperm.slane %v338, 0
      %v406 = vunpack.c.l.b16 %v270
      %v407 = vunpack.c.l.b16 %v271
      %v408 = vunpack.c.l.b16 %v272
      %v409 = vunpack.c.l.b16 %v273
      %v410 = vunpack.c.l.b16 %v274
      %v411 = vunpack.c.l.b16 %v275
      %v412 = vunpack.c.l.b16 %v276
      %v413 = vunpack.c.l.b16 %v277
      %v414 = vunpack.c.l.b16 %v278
      %v415 = vunpack.c.l.b16 %v279
      %v416 = vunpack.c.l.b16 %v280
      %v417 = vunpack.c.l.b16 %v281
      %v418 = vunpack.c.l.b16 %v282
      %v419 = vunpack.c.l.b16 %v283
      %v420 = vunpack.c.l.b16 %v284
      %v421 = vunpack.c.l.b16 %v285
      %v422 = vunpack.c.l.b16 %v286
      %v423 = vunpack.c.l.b16 %v287
      %v424 = vunpack.c.l.b16 %v288
      %v425 = vunpack.c.l.b16 %v289
      %v426 = vunpack.c.l.b16 %v290
      %v427 = vunpack.c.l.b16 %v291
      %v428 = vunpack.c.l.b16 %v292
      %v429 = vunpack.c.l.b16 %v293
      %v430 = vunpack.c.l.b16 %v294
      %v431 = vunpack.c.l.b16 %v295
      %v432 = vunpack.c.l.b16 %v296
      %v433 = vunpack.c.l.b16 %v297
      %v434 = vunpack.c.l.b16 %v298
      %v435 = vunpack.c.l.b16 %v299
      %v436 = vunpack.c.l.b16 %v300
      %v437 = vunpack.c.l.b16 %v301
      %v438 = vunpack.c.l.b16 %v302
      %v439 = vunpack.c.l.b16 %v303
      %v440 = vunpack.c.l.b16 %v304
      %v441 = vunpack.c.l.b16 %v305
      %v442 = vunpack.c.l.b16 %v306
      %v443 = vunpack.c.l.b16 %v307
      %v444 = vunpack.c.l.b16 %v308
      %v445 = vunpack.c.l.b16 %v309
      %v446 = vunpack.c.l.b16 %v310
      %v447 = vunpack.c.l.b16 %v311
      %v448 = vunpack.c.l.b16 %v312
      %v449 = vunpack.c.l.b16 %v313
      %v450 = vunpack.c.l.b16 %v314
      %v451 = vunpack.c.l.b16 %v315
      %v452 = vunpack.c.l.b16 %v316
      %v453 = vunpack.c.l.b16 %v317
      %v454 = vunpack.c.l.b16 %v318
      %v455 = vunpack.c.l.b16 %v319
      %v456 = vunpack.c.l.b16 %v320
      %v457 = vunpack.c.l.b16 %v321
      %v458 = vunpack.c.l.b16 %v322
      %v459 = vunpack.c.l.b16 %v323
      %v460 = vunpack.c.l.b16 %v324
      %v461 = vunpack.c.l.b16 %v325
      %v462 = vunpack.c.l.b16 %v326
      %v463 = vunpack.c.l.b16 %v327
      %v464 = vunpack.c.l.b16 %v328
      %v465 = vunpack.c.l.b16 %v329
      %v466 = vunpack.c.l.b16 %v330
      %v467 = vunpack.c.l.b16 %v331
      %v468 = vunpack.c.l.b16 %v332
      %v469 = vunpack.c.l.b16 %v333
      %v470 = vpack.c.b16 %v407, %v406
      %v471 = vpack.c.b16 %v409, %v408
      %v472 = vpack.c.b16 %v411, %v410
      %v473 = vpack.c.b16 %v413, %v412
      %v474 = vpack.c.b16 %v415, %v414
      %v475 = vpack.c.b16 %v417, %v416
      %v476 = vpack.c.b16 %v419, %v418
      %v477 = vpack.c.b16 %v421, %v420
      %v478 = vpack.c.b16 %v423, %v422
      %v479 = vpack.c.b16 %v425, %v424
      %v480 = vpack.c.b16 %v427, %v426
      %v481 = vpack.c.b16 %v429, %v428
      %v482 = vpack.c.b16 %v431, %v430
      %v483 = vpack.c.b16 %v433, %v432
      %v484 = vpack.c.b16 %v435, %v434
      %v485 = vpack.c.b16 %v437, %v436
      %v486 = vpack.c.b16 %v439, %v438
      %v487 = vpack.c.b16 %v441, %v440
      %v488 = vpack.c.b16 %v443, %v442
      %v489 = vpack.c.b16 %v445, %v444
      %v490 = vpack.c.b16 %v447, %v446
      %v491 = vpack.c.b16 %v449, %v448
      %v492 = vpack.c.b16 %v451, %v450
      %v493 = vpack.c.b16 %v453, %v452
      %v494 = vpack.c.b16 %v455, %v454
      %v495 = vpack.c.b16 %v457, %v456
      %v496 = vpack.c.b16 %v459, %v458
      %v497 = vpack.c.b16 %v461, %v460
      %v498 = vpack.c.b16 %v463, %v462
      %v499 = vpack.c.b16 %v465, %v464
      %v500 = vpack.c.b16 %v467, %v466
      %v501 = vpack.c.b16 %v469, %v468
      %v506 = vunpack.c.l.b16 %v334
      %v507 = vunpack.c.l.b16 %v335
      %v508 = vunpack.c.l.b16 %v336
      %v509 = vunpack.c.l.b16 %v337
      %v510 = vpack.c.b16 %v507, %v506
      %v511 = vpack.c.b16 %v509, %v508
      %vm513 = vcmask 220160
      %v515 = vsel %vm513, %v470, 0
      %v518 = vsel %vm513, %v471, 0
      %v521 = vsel %vm513, %v472, 0
      %v524 = vsel %vm513, %v473, 0
      %v527 = vsel %vm513, %v474, 0
      %v530 = vsel %vm513, %v475, 0
      %v533 = vsel %vm513, %v476, 0
      %v536 = vsel %vm513, %v477, 0
      %v539 = vsel %vm513, %v478, 0
      %v542 = vsel %vm513, %v479, 0
      %v545 = vsel %vm513, %v480, 0
      %v548 = vsel %vm513, %v481, 0
      %v551 = vsel %vm513, %v482, 0
      %v554 = vsel %vm513, %v483, 0
      %v557 = vsel %vm513, %v484, 0
      %v560 = vsel %vm513, %v485, 0
      %v563 = vsel %vm513, %v486, 0
      %v566 = vsel %vm513, %v487, 0
      %v569 = vsel %vm513, %v488, 0
      %v572 = vsel %vm513, %v489, 0
      %v575 = vsel %vm513, %v490, 0
      %v578 = vsel %vm513, %v491, 0
      %v581 = vsel %vm513, %v492, 0
      %v584 = vsel %vm513, %v493, 0
      %v587 = vsel %vm513, %v494, 0
      %v590 = vsel %vm513, %v495, 0
      %v593 = vsel %vm513, %v496, 0
      %v596 = vsel %vm513, %v497, 0
      %v599 = vsel %vm513, %v498, 0
      %v602 = vsel %vm513, %v499, 0
      %v605 = vsel %vm513, %v500, 0
      %v608 = vsel %vm513, %v501, 0
      %vm610 = vcmask 1044480
      %vm611 = vcmask 1045504
      %v612 = vsel %vm610, 4294967295, 65535
      %v613 = vsel %vm611, %v612, 0
      %v615 = vand.u32 %v511, %v613
      %617 = vmatpush.bf16.msra.mxu0 0
      %618 = vmatpush.bf16.msra.mxu0 0
      %619 = vmatpush.bf16.msra.mxu0 0
      %620 = vmatpush.bf16.msra.mxu0 0
      %621 = vmatpush.bf16.msra.mxu0 0
      %622 = vmatpush.bf16.msra.mxu0 0
      %623 = vmatpush.bf16.msra.mxu0 %v615
      %624 = vmatpush.bf16.msra.mxu0 %v510
      %625 = vmatmul.bf16.gmra.mxu0 %v515
      %v626 = vpop.f32.mrf.mxu0
      %v627 = vadd.f32 %v340, %v626
      %v628 = vpop.f32.mrf.mxu0
      %v629 = vadd.f32 %v340, %v628
      %630 = vmatmul.bf16.gmra.mxu0 %v518
      %v631 = vpop.f32.mrf.mxu0
      %v632 = vadd.f32 %v340, %v631
      %v633 = vpop.f32.mrf.mxu0
      %v634 = vadd.f32 %v340, %v633
      %635 = vmatmul.bf16.gmra.mxu0 %v521
      %v636 = vpop.f32.mrf.mxu0
      %v637 = vadd.f32 %v340, %v636
      %v638 = vpop.f32.mrf.mxu0
      %v639 = vadd.f32 %v340, %v638
      %640 = vmatmul.bf16.gmra.mxu0 %v524
      %v641 = vpop.f32.mrf.mxu0
      %v642 = vadd.f32 %v340, %v641
      %v643 = vpop.f32.mrf.mxu0
      %v644 = vadd.f32 %v340, %v643
      %645 = vmatmul.bf16.gmra.mxu0 %v527
      %v646 = vpop.f32.mrf.mxu0
      %v647 = vadd.f32 %v340, %v646
      %v648 = vpop.f32.mrf.mxu0
      %v649 = vadd.f32 %v340, %v648
      %650 = vmatmul.bf16.gmra.mxu0 %v530
      %v651 = vpop.f32.mrf.mxu0
      %v652 = vadd.f32 %v340, %v651
      %v653 = vpop.f32.mrf.mxu0
      %v654 = vadd.f32 %v340, %v653
      %655 = vmatmul.bf16.gmra.mxu0 %v533
      %v656 = vpop.f32.mrf.mxu0
      %v657 = vadd.f32 %v340, %v656
      %v658 = vpop.f32.mrf.mxu0
      %v659 = vadd.f32 %v340, %v658
      %660 = vmatmul.bf16.gmra.mxu0 %v536
      %v661 = vpop.f32.mrf.mxu0
      %v662 = vadd.f32 %v340, %v661
      %v663 = vpop.f32.mrf.mxu0
      %v664 = vadd.f32 %v340, %v663
      %665 = vmatmul.bf16.gmra.mxu0 %v539
      %v666 = vpop.f32.mrf.mxu0
      %v667 = vadd.f32 %v340, %v666
      %v668 = vpop.f32.mrf.mxu0
      %v669 = vadd.f32 %v340, %v668
      %670 = vmatmul.bf16.gmra.mxu0 %v542
      %v671 = vpop.f32.mrf.mxu0
      %v672 = vadd.f32 %v340, %v671
      %v673 = vpop.f32.mrf.mxu0
      %v674 = vadd.f32 %v340, %v673
      %675 = vmatmul.bf16.gmra.mxu0 %v545
      %v676 = vpop.f32.mrf.mxu0
      %v677 = vadd.f32 %v340, %v676
      %v678 = vpop.f32.mrf.mxu0
      %v679 = vadd.f32 %v340, %v678
      %680 = vmatmul.bf16.gmra.mxu0 %v548
      %v681 = vpop.f32.mrf.mxu0
      %v682 = vadd.f32 %v340, %v681
      %v683 = vpop.f32.mrf.mxu0
      %v684 = vadd.f32 %v340, %v683
      %685 = vmatmul.bf16.gmra.mxu0 %v551
      %v686 = vpop.f32.mrf.mxu0
      %v687 = vadd.f32 %v340, %v686
      %v688 = vpop.f32.mrf.mxu0
      %v689 = vadd.f32 %v340, %v688
      %690 = vmatmul.bf16.gmra.mxu0 %v554
      %v691 = vpop.f32.mrf.mxu0
      %v692 = vadd.f32 %v340, %v691
      %v693 = vpop.f32.mrf.mxu0
      %v694 = vadd.f32 %v340, %v693
      %695 = vmatmul.bf16.gmra.mxu0 %v557
      %v696 = vpop.f32.mrf.mxu0
      %v697 = vadd.f32 %v340, %v696
      %v698 = vpop.f32.mrf.mxu0
      %v699 = vadd.f32 %v340, %v698
      %700 = vmatmul.bf16.gmra.mxu0 %v560
      %v701 = vpop.f32.mrf.mxu0
      %v702 = vadd.f32 %v340, %v701
      %v703 = vpop.f32.mrf.mxu0
      %v704 = vadd.f32 %v340, %v703
      %705 = vmatmul.bf16.gmra.mxu0 %v563
      %v706 = vpop.f32.mrf.mxu0
      %v707 = vadd.f32 %v340, %v706
      %v708 = vpop.f32.mrf.mxu0
      %v709 = vadd.f32 %v340, %v708
      %710 = vmatmul.bf16.gmra.mxu0 %v566
      %v711 = vpop.f32.mrf.mxu0
      %v712 = vadd.f32 %v340, %v711
      %v713 = vpop.f32.mrf.mxu0
      %v714 = vadd.f32 %v340, %v713
      %715 = vmatmul.bf16.gmra.mxu0 %v569
      %v716 = vpop.f32.mrf.mxu0
      %v717 = vadd.f32 %v340, %v716
      %v718 = vpop.f32.mrf.mxu0
      %v719 = vadd.f32 %v340, %v718
      %720 = vmatmul.bf16.gmra.mxu0 %v572
      %v721 = vpop.f32.mrf.mxu0
      %v722 = vadd.f32 %v340, %v721
      %v723 = vpop.f32.mrf.mxu0
      %v724 = vadd.f32 %v340, %v723
      %725 = vmatmul.bf16.gmra.mxu0 %v575
      %v726 = vpop.f32.mrf.mxu0
      %v727 = vadd.f32 %v340, %v726
      %v728 = vpop.f32.mrf.mxu0
      %v729 = vadd.f32 %v340, %v728
      %730 = vmatmul.bf16.gmra.mxu0 %v578
      %v731 = vpop.f32.mrf.mxu0
      %v732 = vadd.f32 %v340, %v731
      %v733 = vpop.f32.mrf.mxu0
      %v734 = vadd.f32 %v340, %v733
      %735 = vmatmul.bf16.gmra.mxu0 %v581
      %v736 = vpop.f32.mrf.mxu0
      %v737 = vadd.f32 %v340, %v736
      %v738 = vpop.f32.mrf.mxu0
      %v739 = vadd.f32 %v340, %v738
      %740 = vmatmul.bf16.gmra.mxu0 %v584
      %v741 = vpop.f32.mrf.mxu0
      %v742 = vadd.f32 %v340, %v741
      %v743 = vpop.f32.mrf.mxu0
      %v744 = vadd.f32 %v340, %v743
      %745 = vmatmul.bf16.gmra.mxu0 %v587
      %v746 = vpop.f32.mrf.mxu0
      %v747 = vadd.f32 %v340, %v746
      %v748 = vpop.f32.mrf.mxu0
      %v749 = vadd.f32 %v340, %v748
      %750 = vmatmul.bf16.gmra.mxu0 %v590
      %v751 = vpop.f32.mrf.mxu0
      %v752 = vadd.f32 %v340, %v751
      %v753 = vpop.f32.mrf.mxu0
      %v754 = vadd.f32 %v340, %v753
      %755 = vmatmul.bf16.gmra.mxu0 %v593
      %v756 = vpop.f32.mrf.mxu0
      %v757 = vadd.f32 %v340, %v756
      %v758 = vpop.f32.mrf.mxu0
      %v759 = vadd.f32 %v340, %v758
      %760 = vmatmul.bf16.gmra.mxu0 %v596
      %v761 = vpop.f32.mrf.mxu0
      %v762 = vadd.f32 %v340, %v761
      %v763 = vpop.f32.mrf.mxu0
      %v764 = vadd.f32 %v340, %v763
      %765 = vmatmul.bf16.gmra.mxu0 %v599
      %v766 = vpop.f32.mrf.mxu0
      %v767 = vadd.f32 %v340, %v766
      %v768 = vpop.f32.mrf.mxu0
      %v769 = vadd.f32 %v340, %v768
      %770 = vmatmul.bf16.gmra.mxu0 %v602
      %v771 = vpop.f32.mrf.mxu0
      %v772 = vadd.f32 %v340, %v771
      %v773 = vpop.f32.mrf.mxu0
      %v774 = vadd.f32 %v340, %v773
      %775 = vmatmul.bf16.gmra.mxu0 %v605
      %v776 = vpop.f32.mrf.mxu0
      %v777 = vadd.f32 %v340, %v776
      %v778 = vpop.f32.mrf.mxu0
      %v779 = vadd.f32 %v340, %v778
      %780 = vmatmul.bf16.gmra.mxu0 %v608
      %v781 = vpop.f32.mrf.mxu0
      %v782 = vadd.f32 %v340, %v781
      %v783 = vpop.f32.mrf.mxu0
      %v784 = vadd.f32 %v340, %v783
      %785 = vdwg.mxu0
      %v786 = vround.ne.pseudo %v627
      %v787 = vround.ne.pseudo %v629
      %v788 = vround.ne.pseudo %v632
      %v789 = vround.ne.pseudo %v634
      %v790 = vround.ne.pseudo %v637
      %v791 = vround.ne.pseudo %v639
      %v792 = vround.ne.pseudo %v642
      %v793 = vround.ne.pseudo %v644
      %v794 = vround.ne.pseudo %v647
      %v795 = vround.ne.pseudo %v649
      %v796 = vround.ne.pseudo %v652
      %v797 = vround.ne.pseudo %v654
      %v798 = vround.ne.pseudo %v657
      %v799 = vround.ne.pseudo %v659
      %v800 = vround.ne.pseudo %v662
      %v801 = vround.ne.pseudo %v664
      %v802 = vround.ne.pseudo %v667
      %v803 = vround.ne.pseudo %v669
      %v804 = vround.ne.pseudo %v672
      %v805 = vround.ne.pseudo %v674
      %v806 = vround.ne.pseudo %v677
      %v807 = vround.ne.pseudo %v679
      %v808 = vround.ne.pseudo %v682
      %v809 = vround.ne.pseudo %v684
      %v810 = vround.ne.pseudo %v687
      %v811 = vround.ne.pseudo %v689
      %v812 = vround.ne.pseudo %v692
      %v813 = vround.ne.pseudo %v694
      %v814 = vround.ne.pseudo %v697
      %v815 = vround.ne.pseudo %v699
      %v816 = vround.ne.pseudo %v702
      %v817 = vround.ne.pseudo %v704
      %v818 = vround.ne.pseudo %v707
      %v819 = vround.ne.pseudo %v709
      %v820 = vround.ne.pseudo %v712
      %v821 = vround.ne.pseudo %v714
      %v822 = vround.ne.pseudo %v717
      %v823 = vround.ne.pseudo %v719
      %v824 = vround.ne.pseudo %v722
      %v825 = vround.ne.pseudo %v724
      %v826 = vround.ne.pseudo %v727
      %v827 = vround.ne.pseudo %v729
      %v828 = vround.ne.pseudo %v732
      %v829 = vround.ne.pseudo %v734
      %v830 = vround.ne.pseudo %v737
      %v831 = vround.ne.pseudo %v739
      %v832 = vround.ne.pseudo %v742
      %v833 = vround.ne.pseudo %v744
      %v834 = vround.ne.pseudo %v747
      %v835 = vround.ne.pseudo %v749
      %v836 = vround.ne.pseudo %v752
      %v837 = vround.ne.pseudo %v754
      %v838 = vround.ne.pseudo %v757
      %v839 = vround.ne.pseudo %v759
      %v840 = vround.ne.pseudo %v762
      %v841 = vround.ne.pseudo %v764
      %v842 = vround.ne.pseudo %v767
      %v843 = vround.ne.pseudo %v769
      %v844 = vround.ne.pseudo %v772
      %v845 = vround.ne.pseudo %v774
      %v846 = vround.ne.pseudo %v777
      %v847 = vround.ne.pseudo %v779
      %v848 = vround.ne.pseudo %v782
      %v849 = vround.ne.pseudo %v784
      %v850 = vld [vmem:[%s3] sm:$0x1]
      %v852 = vperm.slane %v850, 0
      %v854 = vsub.f32 %v786, %v852
      %v855 = vsub.f32 %v787, %v852
      %v856 = vsub.f32 %v788, %v852
      %v857 = vsub.f32 %v789, %v852
      %v858 = vsub.f32 %v790, %v852
      %v859 = vsub.f32 %v791, %v852
      %v860 = vsub.f32 %v792, %v852
      %v861 = vsub.f32 %v793, %v852
      %v862 = vsub.f32 %v794, %v852
      %v863 = vsub.f32 %v795, %v852
      %v864 = vsub.f32 %v796, %v852
      %v865 = vsub.f32 %v797, %v852
      %v866 = vsub.f32 %v798, %v852
      %v867 = vsub.f32 %v799, %v852
      %v868 = vsub.f32 %v800, %v852
      %v869 = vsub.f32 %v801, %v852
      %v870 = vsub.f32 %v802, %v852
      %v871 = vsub.f32 %v803, %v852
      %v872 = vsub.f32 %v804, %v852
      %v873 = vsub.f32 %v805, %v852
      %v874 = vsub.f32 %v806, %v852
      %v875 = vsub.f32 %v807, %v852
      %v876 = vsub.f32 %v808, %v852
      %v877 = vsub.f32 %v809, %v852
      %v878 = vsub.f32 %v810, %v852
      %v879 = vsub.f32 %v811, %v852
      %v880 = vsub.f32 %v812, %v852
      %v881 = vsub.f32 %v813, %v852
      %v882 = vsub.f32 %v814, %v852
      %v883 = vsub.f32 %v815, %v852
      %v884 = vsub.f32 %v816, %v852
      %v885 = vsub.f32 %v817, %v852
      %v886 = vsub.f32 %v818, %v852
      %v887 = vsub.f32 %v819, %v852
      %v888 = vsub.f32 %v820, %v852
      %v889 = vsub.f32 %v821, %v852
      %v890 = vsub.f32 %v822, %v852
      %v891 = vsub.f32 %v823, %v852
      %v892 = vsub.f32 %v824, %v852
      %v893 = vsub.f32 %v825, %v852
      %v894 = vsub.f32 %v826, %v852
      %v895 = vsub.f32 %v827, %v852
      %v896 = vsub.f32 %v828, %v852
      %v897 = vsub.f32 %v829, %v852
      %v898 = vsub.f32 %v830, %v852
      %v899 = vsub.f32 %v831, %v852
      %v900 = vsub.f32 %v832, %v852
      %v901 = vsub.f32 %v833, %v852
      %v902 = vsub.f32 %v834, %v852
      %v903 = vsub.f32 %v835, %v852
      %v904 = vsub.f32 %v836, %v852
      %v905 = vsub.f32 %v837, %v852
      %v906 = vsub.f32 %v838, %v852
      %v907 = vsub.f32 %v839, %v852
      %v908 = vsub.f32 %v840, %v852
      %v909 = vsub.f32 %v841, %v852
      %v910 = vsub.f32 %v842, %v852
      %v911 = vsub.f32 %v843, %v852
      %v912 = vsub.f32 %v844, %v852
      %v913 = vsub.f32 %v845, %v852
      %v914 = vsub.f32 %v846, %v852
      %v915 = vsub.f32 %v847, %v852
      %v916 = vsub.f32 %v848, %v852
      %v917 = vsub.f32 %v849, %v852
      %vm918 = vcmp.lt.f32.partialorder %v854, 0.0
      %vm919 = vcmp.lt.f32.partialorder %v855, 0.0
      %vm920 = vcmp.lt.f32.partialorder %v856, 0.0
      %vm921 = vcmp.lt.f32.partialorder %v857, 0.0
      %vm922 = vcmp.lt.f32.partialorder %v858, 0.0
      %vm923 = vcmp.lt.f32.partialorder %v859, 0.0
      %vm924 = vcmp.lt.f32.partialorder %v860, 0.0
      %vm925 = vcmp.lt.f32.partialorder %v861, 0.0
      %vm926 = vcmp.lt.f32.partialorder %v862, 0.0
      %vm927 = vcmp.lt.f32.partialorder %v863, 0.0
      %vm928 = vcmp.lt.f32.partialorder %v864, 0.0
      %vm929 = vcmp.lt.f32.partialorder %v865, 0.0
      %vm930 = vcmp.lt.f32.partialorder %v866, 0.0
      %vm931 = vcmp.lt.f32.partialorder %v867, 0.0
      %vm932 = vcmp.lt.f32.partialorder %v868, 0.0
      %vm933 = vcmp.lt.f32.partialorder %v869, 0.0
      %vm934 = vcmp.lt.f32.partialorder %v870, 0.0
      %vm935 = vcmp.lt.f32.partialorder %v871, 0.0
      %vm936 = vcmp.lt.f32.partialorder %v872, 0.0
      %vm937 = vcmp.lt.f32.partialorder %v873, 0.0
      %vm938 = vcmp.lt.f32.partialorder %v874, 0.0
      %vm939 = vcmp.lt.f32.partialorder %v875, 0.0
      %vm940 = vcmp.lt.f32.partialorder %v876, 0.0
      %vm941 = vcmp.lt.f32.partialorder %v877, 0.0
      %vm942 = vcmp.lt.f32.partialorder %v878, 0.0
      %vm943 = vcmp.lt.f32.partialorder %v879, 0.0
      %vm944 = vcmp.lt.f32.partialorder %v880, 0.0
      %vm945 = vcmp.lt.f32.partialorder %v881, 0.0
      %vm946 = vcmp.lt.f32.partialorder %v882, 0.0
      %vm947 = vcmp.lt.f32.partialorder %v883, 0.0
      %vm948 = vcmp.lt.f32.partialorder %v884, 0.0
      %vm949 = vcmp.lt.f32.partialorder %v885, 0.0
      %vm950 = vcmp.lt.f32.partialorder %v886, 0.0
      %vm951 = vcmp.lt.f32.partialorder %v887, 0.0
      %vm952 = vcmp.lt.f32.partialorder %v888, 0.0
      %vm953 = vcmp.lt.f32.partialorder %v889, 0.0
      %vm954 = vcmp.lt.f32.partialorder %v890, 0.0
      %vm955 = vcmp.lt.f32.partialorder %v891, 0.0
      %vm956 = vcmp.lt.f32.partialorder %v892, 0.0
      %vm957 = vcmp.lt.f32.partialorder %v893, 0.0
      %vm958 = vcmp.lt.f32.partialorder %v894, 0.0
      %vm959 = vcmp.lt.f32.partialorder %v895, 0.0
      %vm960 = vcmp.lt.f32.partialorder %v896, 0.0
      %vm961 = vcmp.lt.f32.partialorder %v897, 0.0
      %vm962 = vcmp.lt.f32.partialorder %v898, 0.0
      %vm963 = vcmp.lt.f32.partialorder %v899, 0.0
      %vm964 = vcmp.lt.f32.partialorder %v900, 0.0
      %vm965 = vcmp.lt.f32.partialorder %v901, 0.0
      %vm966 = vcmp.lt.f32.partialorder %v902, 0.0
      %vm967 = vcmp.lt.f32.partialorder %v903, 0.0
      %vm968 = vcmp.lt.f32.partialorder %v904, 0.0
      %vm969 = vcmp.lt.f32.partialorder %v905, 0.0
      %vm970 = vcmp.lt.f32.partialorder %v906, 0.0
      %vm971 = vcmp.lt.f32.partialorder %v907, 0.0
      %vm972 = vcmp.lt.f32.partialorder %v908, 0.0
      %vm973 = vcmp.lt.f32.partialorder %v909, 0.0
      %vm974 = vcmp.lt.f32.partialorder %v910, 0.0
      %vm975 = vcmp.lt.f32.partialorder %v911, 0.0
      %vm976 = vcmp.lt.f32.partialorder %v912, 0.0
      %vm977 = vcmp.lt.f32.partialorder %v913, 0.0
      %vm978 = vcmp.lt.f32.partialorder %v914, 0.0
      %vm979 = vcmp.lt.f32.partialorder %v915, 0.0
      %vm980 = vcmp.lt.f32.partialorder %v916, 0.0
      %vm981 = vcmp.lt.f32.partialorder %v917, 0.0
      %v982 = vsel %vm918, 1.0, -1.0
      %v983 = vsel %vm919, 1.0, -1.0
      %v984 = vsel %vm920, 1.0, -1.0
      %v985 = vsel %vm921, 1.0, -1.0
      %v986 = vsel %vm922, 1.0, -1.0
      %v987 = vsel %vm923, 1.0, -1.0
      %v988 = vsel %vm924, 1.0, -1.0
      %v989 = vsel %vm925, 1.0, -1.0
      %v990 = vsel %vm926, 1.0, -1.0
      %v991 = vsel %vm927, 1.0, -1.0
      %v992 = vsel %vm928, 1.0, -1.0
      %v993 = vsel %vm929, 1.0, -1.0
      %v994 = vsel %vm930, 1.0, -1.0
      %v995 = vsel %vm931, 1.0, -1.0
      %v996 = vsel %vm932, 1.0, -1.0
      %v997 = vsel %vm933, 1.0, -1.0
      %v998 = vsel %vm934, 1.0, -1.0
      %v999 = vsel %vm935, 1.0, -1.0
      %v1000 = vsel %vm936, 1.0, -1.0
      %v1001 = vsel %vm937, 1.0, -1.0
      %v1002 = vsel %vm938, 1.0, -1.0
      %v1003 = vsel %vm939, 1.0, -1.0
      %v1004 = vsel %vm940, 1.0, -1.0
      %v1005 = vsel %vm941, 1.0, -1.0
      %v1006 = vsel %vm942, 1.0, -1.0
      %v1007 = vsel %vm943, 1.0, -1.0
      %v1008 = vsel %vm944, 1.0, -1.0
      %v1009 = vsel %vm945, 1.0, -1.0
      %v1010 = vsel %vm946, 1.0, -1.0
      %v1011 = vsel %vm947, 1.0, -1.0
      %v1012 = vsel %vm948, 1.0, -1.0
      %v1013 = vsel %vm949, 1.0, -1.0
      %v1014 = vsel %vm950, 1.0, -1.0
      %v1015 = vsel %vm951, 1.0, -1.0
      %v1016 = vsel %vm952, 1.0, -1.0
      %v1017 = vsel %vm953, 1.0, -1.0
      %v1018 = vsel %vm954, 1.0, -1.0
      %v1019 = vsel %vm955, 1.0, -1.0
      %v1020 = vsel %vm956, 1.0, -1.0
      %v1021 = vsel %vm957, 1.0, -1.0
      %v1022 = vsel %vm958, 1.0, -1.0
      %v1023 = vsel %vm959, 1.0, -1.0
      %v1024 = vsel %vm960, 1.0, -1.0
      %v1025 = vsel %vm961, 1.0, -1.0
      %v1026 = vsel %vm962, 1.0, -1.0
      %v1027 = vsel %vm963, 1.0, -1.0
      %v1028 = vsel %vm964, 1.0, -1.0
      %v1029 = vsel %vm965, 1.0, -1.0
      %v1030 = vsel %vm966, 1.0, -1.0
      %v1031 = vsel %vm967, 1.0, -1.0
      %v1032 = vsel %vm968, 1.0, -1.0
      %v1033 = vsel %vm969, 1.0, -1.0
      %v1034 = vsel %vm970, 1.0, -1.0
      %v1035 = vsel %vm971, 1.0, -1.0
      %v1036 = vsel %vm972, 1.0, -1.0
      %v1037 = vsel %vm973, 1.0, -1.0
      %v1038 = vsel %vm974, 1.0, -1.0
      %v1039 = vsel %vm975, 1.0, -1.0
      %v1040 = vsel %vm976, 1.0, -1.0
      %v1041 = vsel %vm977, 1.0, -1.0
      %v1042 = vsel %vm978, 1.0, -1.0
      %v1043 = vsel %vm979, 1.0, -1.0
      %v1044 = vsel %vm980, 1.0, -1.0
      %v1045 = vsel %vm981, 1.0, -1.0
      %v1046 = vadd.f32 %v854, 0.5
      %v1047 = vadd.f32 %v855, 0.5
      %v1048 = vadd.f32 %v856, 0.5
      %v1049 = vadd.f32 %v857, 0.5
      %v1050 = vadd.f32 %v858, 0.5
      %v1051 = vadd.f32 %v859, 0.5
      %v1052 = vadd.f32 %v860, 0.5
      %v1053 = vadd.f32 %v861, 0.5
      %v1054 = vadd.f32 %v862, 0.5
      %v1055 = vadd.f32 %v863, 0.5
      %v1056 = vadd.f32 %v864, 0.5
      %v1057 = vadd.f32 %v865, 0.5
      %v1058 = vadd.f32 %v866, 0.5
      %v1059 = vadd.f32 %v867, 0.5
      %v1060 = vadd.f32 %v868, 0.5
      %v1061 = vadd.f32 %v869, 0.5
      %v1062 = vadd.f32 %v870, 0.5
      %v1063 = vadd.f32 %v871, 0.5
      %v1064 = vadd.f32 %v872, 0.5
      %v1065 = vadd.f32 %v873, 0.5
      %v1066 = vadd.f32 %v874, 0.5
      %v1067 = vadd.f32 %v875, 0.5
      %v1068 = vadd.f32 %v876, 0.5
      %v1069 = vadd.f32 %v877, 0.5
      %v1070 = vadd.f32 %v878, 0.5
      %v1071 = vadd.f32 %v879, 0.5
      %v1072 = vadd.f32 %v880, 0.5
      %v1073 = vadd.f32 %v881, 0.5
      %v1074 = vadd.f32 %v882, 0.5
      %v1075 = vadd.f32 %v883, 0.5
      %v1076 = vadd.f32 %v884, 0.5
      %v1077 = vadd.f32 %v885, 0.5
      %v1078 = vadd.f32 %v886, 0.5
      %v1079 = vadd.f32 %v887, 0.5
      %v1080 = vadd.f32 %v888, 0.5
      %v1081 = vadd.f32 %v889, 0.5
      %v1082 = vadd.f32 %v890, 0.5
      %v1083 = vadd.f32 %v891, 0.5
      %v1084 = vadd.f32 %v892, 0.5
      %v1085 = vadd.f32 %v893, 0.5
      %v1086 = vadd.f32 %v894, 0.5
      %v1087 = vadd.f32 %v895, 0.5
      %v1088 = vadd.f32 %v896, 0.5
      %v1089 = vadd.f32 %v897, 0.5
      %v1090 = vadd.f32 %v898, 0.5
      %v1091 = vadd.f32 %v899, 0.5
      %v1092 = vadd.f32 %v900, 0.5
      %v1093 = vadd.f32 %v901, 0.5
      %v1094 = vadd.f32 %v902, 0.5
      %v1095 = vadd.f32 %v903, 0.5
      %v1096 = vadd.f32 %v904, 0.5
      %v1097 = vadd.f32 %v905, 0.5
      %v1098 = vadd.f32 %v906, 0.5
      %v1099 = vadd.f32 %v907, 0.5
      %v1100 = vadd.f32 %v908, 0.5
      %v1101 = vadd.f32 %v909, 0.5
      %v1102 = vadd.f32 %v910, 0.5
      %v1103 = vadd.f32 %v911, 0.5
      %v1104 = vadd.f32 %v912, 0.5
      %v1105 = vadd.f32 %v913, 0.5
      %v1106 = vadd.f32 %v914, 0.5
      %v1107 = vadd.f32 %v915, 0.5
      %v1108 = vadd.f32 %v916, 0.5
      %v1109 = vadd.f32 %v917, 0.5
      %v1110 = vmul.f32 %v982, %v1046
      %v1111 = vmul.f32 %v983, %v1047
      %v1112 = vmul.f32 %v984, %v1048
      %v1113 = vmul.f32 %v985, %v1049
      %v1114 = vmul.f32 %v986, %v1050
      %v1115 = vmul.f32 %v987, %v1051
      %v1116 = vmul.f32 %v988, %v1052
      %v1117 = vmul.f32 %v989, %v1053
      %v1118 = vmul.f32 %v990, %v1054
      %v1119 = vmul.f32 %v991, %v1055
      %v1120 = vmul.f32 %v992, %v1056
      %v1121 = vmul.f32 %v993, %v1057
      %v1122 = vmul.f32 %v994, %v1058
      %v1123 = vmul.f32 %v995, %v1059
      %v1124 = vmul.f32 %v996, %v1060
      %v1125 = vmul.f32 %v997, %v1061
      %v1126 = vmul.f32 %v998, %v1062
      %v1127 = vmul.f32 %v999, %v1063
      %v1128 = vmul.f32 %v1000, %v1064
      %v1129 = vmul.f32 %v1001, %v1065
      %v1130 = vmul.f32 %v1002, %v1066
      %v1131 = vmul.f32 %v1003, %v1067
      %v1132 = vmul.f32 %v1004, %v1068
      %v1133 = vmul.f32 %v1005, %v1069
      %v1134 = vmul.f32 %v1006, %v1070
      %v1135 = vmul.f32 %v1007, %v1071
      %v1136 = vmul.f32 %v1008, %v1072
      %v1137 = vmul.f32 %v1009, %v1073
      %v1138 = vmul.f32 %v1010, %v1074
      %v1139 = vmul.f32 %v1011, %v1075
      %v1140 = vmul.f32 %v1012, %v1076
      %v1141 = vmul.f32 %v1013, %v1077
      %v1142 = vmul.f32 %v1014, %v1078
      %v1143 = vmul.f32 %v1015, %v1079
      %v1144 = vmul.f32 %v1016, %v1080
      %v1145 = vmul.f32 %v1017, %v1081
      %v1146 = vmul.f32 %v1018, %v1082
      %v1147 = vmul.f32 %v1019, %v1083
      %v1148 = vmul.f32 %v1020, %v1084
      %v1149 = vmul.f32 %v1021, %v1085
      %v1150 = vmul.f32 %v1022, %v1086
      %v1151 = vmul.f32 %v1023, %v1087
      %v1152 = vmul.f32 %v1024, %v1088
      %v1153 = vmul.f32 %v1025, %v1089
      %v1154 = vmul.f32 %v1026, %v1090
      %v1155 = vmul.f32 %v1027, %v1091
      %v1156 = vmul.f32 %v1028, %v1092
      %v1157 = vmul.f32 %v1029, %v1093
      %v1158 = vmul.f32 %v1030, %v1094
      %v1159 = vmul.f32 %v1031, %v1095
      %v1160 = vmul.f32 %v1032, %v1096
      %v1161 = vmul.f32 %v1033, %v1097
      %v1162 = vmul.f32 %v1034, %v1098
      %v1163 = vmul.f32 %v1035, %v1099
      %v1164 = vmul.f32 %v1036, %v1100
      %v1165 = vmul.f32 %v1037, %v1101
      %v1166 = vmul.f32 %v1038, %v1102
      %v1167 = vmul.f32 %v1039, %v1103
      %v1168 = vmul.f32 %v1040, %v1104
      %v1169 = vmul.f32 %v1041, %v1105
      %v1170 = vmul.f32 %v1042, %v1106
      %v1171 = vmul.f32 %v1043, %v1107
      %v1172 = vmul.f32 %v1044, %v1108
      %v1173 = vmul.f32 %v1045, %v1109
      %v1174 = vld [vmem:[%s4] sm:$0x1]
      %v1176 = vperm.slane %v1174, 0
      %v1178 = vmul.f32 %v1110, %v1176
      %v1179 = vmul.f32 %v1111, %v1176
      %v1180 = vmul.f32 %v1112, %v1176
      %v1181 = vmul.f32 %v1113, %v1176
      %v1182 = vmul.f32 %v1114, %v1176
      %v1183 = vmul.f32 %v1115, %v1176
      %v1184 = vmul.f32 %v1116, %v1176
      %v1185 = vmul.f32 %v1117, %v1176
      %v1186 = vmul.f32 %v1118, %v1176
      %v1187 = vmul.f32 %v1119, %v1176
      %v1188 = vmul.f32 %v1120, %v1176
      %v1189 = vmul.f32 %v1121, %v1176
      %v1190 = vmul.f32 %v1122, %v1176
      %v1191 = vmul.f32 %v1123, %v1176
      %v1192 = vmul.f32 %v1124, %v1176
      %v1193 = vmul.f32 %v1125, %v1176
      %v1194 = vmul.f32 %v1126, %v1176
      %v1195 = vmul.f32 %v1127, %v1176
      %v1196 = vmul.f32 %v1128, %v1176
      %v1197 = vmul.f32 %v1129, %v1176
      %v1198 = vmul.f32 %v1130, %v1176
      %v1199 = vmul.f32 %v1131, %v1176
      %v1200 = vmul.f32 %v1132, %v1176
      %v1201 = vmul.f32 %v1133, %v1176
      %v1202 = vmul.f32 %v1134, %v1176
      %v1203 = vmul.f32 %v1135, %v1176
      %v1204 = vmul.f32 %v1136, %v1176
      %v1205 = vmul.f32 %v1137, %v1176
      %v1206 = vmul.f32 %v1138, %v1176
      %v1207 = vmul.f32 %v1139, %v1176
      %v1208 = vmul.f32 %v1140, %v1176
      %v1209 = vmul.f32 %v1141, %v1176
      %v1210 = vmul.f32 %v1142, %v1176
      %v1211 = vmul.f32 %v1143, %v1176
      %v1212 = vmul.f32 %v1144, %v1176
      %v1213 = vmul.f32 %v1145, %v1176
      %v1214 = vmul.f32 %v1146, %v1176
      %v1215 = vmul.f32 %v1147, %v1176
      %v1216 = vmul.f32 %v1148, %v1176
      %v1217 = vmul.f32 %v1149, %v1176
      %v1218 = vmul.f32 %v1150, %v1176
      %v1219 = vmul.f32 %v1151, %v1176
      %v1220 = vmul.f32 %v1152, %v1176
      %v1221 = vmul.f32 %v1153, %v1176
      %v1222 = vmul.f32 %v1154, %v1176
      %v1223 = vmul.f32 %v1155, %v1176
      %v1224 = vmul.f32 %v1156, %v1176
      %v1225 = vmul.f32 %v1157, %v1176
      %v1226 = vmul.f32 %v1158, %v1176
      %v1227 = vmul.f32 %v1159, %v1176
      %v1228 = vmul.f32 %v1160, %v1176
      %v1229 = vmul.f32 %v1161, %v1176
      %v1230 = vmul.f32 %v1162, %v1176
      %v1231 = vmul.f32 %v1163, %v1176
      %v1232 = vmul.f32 %v1164, %v1176
      %v1233 = vmul.f32 %v1165, %v1176
      %v1234 = vmul.f32 %v1166, %v1176
      %v1235 = vmul.f32 %v1167, %v1176
      %v1236 = vmul.f32 %v1168, %v1176
      %v1237 = vmul.f32 %v1169, %v1176
      %v1238 = vmul.f32 %v1170, %v1176
      %v1239 = vmul.f32 %v1171, %v1176
      %v1240 = vmul.f32 %v1172, %v1176
      %v1241 = vmul.f32 %v1173, %v1176
      %v1242 = vxor.u32 %v1178, 2147483648
      %v1243 = vxor.u32 %v1179, 2147483648
      %v1244 = vxor.u32 %v1180, 2147483648
      %v1245 = vxor.u32 %v1181, 2147483648
      %v1246 = vxor.u32 %v1182, 2147483648
      %v1247 = vxor.u32 %v1183, 2147483648
      %v1248 = vxor.u32 %v1184, 2147483648
      %v1249 = vxor.u32 %v1185, 2147483648
      %v1250 = vxor.u32 %v1186, 2147483648
      %v1251 = vxor.u32 %v1187, 2147483648
      %v1252 = vxor.u32 %v1188, 2147483648
      %v1253 = vxor.u32 %v1189, 2147483648
      %v1254 = vxor.u32 %v1190, 2147483648
      %v1255 = vxor.u32 %v1191, 2147483648
      %v1256 = vxor.u32 %v1192, 2147483648
      %v1257 = vxor.u32 %v1193, 2147483648
      %v1258 = vxor.u32 %v1194, 2147483648
      %v1259 = vxor.u32 %v1195, 2147483648
      %v1260 = vxor.u32 %v1196, 2147483648
      %v1261 = vxor.u32 %v1197, 2147483648
      %v1262 = vxor.u32 %v1198, 2147483648
      %v1263 = vxor.u32 %v1199, 2147483648
      %v1264 = vxor.u32 %v1200, 2147483648
      %v1265 = vxor.u32 %v1201, 2147483648
      %v1266 = vxor.u32 %v1202, 2147483648
      %v1267 = vxor.u32 %v1203, 2147483648
      %v1268 = vxor.u32 %v1204, 2147483648
      %v1269 = vxor.u32 %v1205, 2147483648
      %v1270 = vxor.u32 %v1206, 2147483648
      %v1271 = vxor.u32 %v1207, 2147483648
      %v1272 = vxor.u32 %v1208, 2147483648
      %v1273 = vxor.u32 %v1209, 2147483648
      %v1274 = vxor.u32 %v1210, 2147483648
      %v1275 = vxor.u32 %v1211, 2147483648
      %v1276 = vxor.u32 %v1212, 2147483648
      %v1277 = vxor.u32 %v1213, 2147483648
      %v1278 = vxor.u32 %v1214, 2147483648
      %v1279 = vxor.u32 %v1215, 2147483648
      %v1280 = vxor.u32 %v1216, 2147483648
      %v1281 = vxor.u32 %v1217, 2147483648
      %v1282 = vxor.u32 %v1218, 2147483648
      %v1283 = vxor.u32 %v1219, 2147483648
      %v1284 = vxor.u32 %v1220, 2147483648
      %v1285 = vxor.u32 %v1221, 2147483648
      %v1286 = vxor.u32 %v1222, 2147483648
      %v1287 = vxor.u32 %v1223, 2147483648
      %v1288 = vxor.u32 %v1224, 2147483648
      %v1289 = vxor.u32 %v1225, 2147483648
      %v1290 = vxor.u32 %v1226, 2147483648
      %v1291 = vxor.u32 %v1227, 2147483648
      %v1292 = vxor.u32 %v1228, 2147483648
      %v1293 = vxor.u32 %v1229, 2147483648
      %v1294 = vxor.u32 %v1230, 2147483648
      %v1295 = vxor.u32 %v1231, 2147483648
      %v1296 = vxor.u32 %v1232, 2147483648
      %v1297 = vxor.u32 %v1233, 2147483648
      %v1298 = vxor.u32 %v1234, 2147483648
      %v1299 = vxor.u32 %v1235, 2147483648
      %v1300 = vxor.u32 %v1236, 2147483648
      %v1301 = vxor.u32 %v1237, 2147483648
      %v1302 = vxor.u32 %v1238, 2147483648
      %v1303 = vxor.u32 %v1239, 2147483648
      %v1304 = vxor.u32 %v1240, 2147483648
      %v1305 = vxor.u32 %v1241, 2147483648
      %v1306 = vmul.f32 %v1242, 1.442695
      %v1307 = vpow.pop %v1306
      %v1308 = vmul.f32 %v1243, 1.442695
      %v1309 = vpow.pop %v1308
      %v1310 = vmul.f32 %v1244, 1.442695
      %v1311 = vpow.pop %v1310
      %v1312 = vmul.f32 %v1245, 1.442695
      %v1313 = vpow.pop %v1312
      %v1314 = vmul.f32 %v1246, 1.442695
      %v1315 = vpow.pop %v1314
      %v1316 = vmul.f32 %v1247, 1.442695
      %v1317 = vpow.pop %v1316
      %v1318 = vmul.f32 %v1248, 1.442695
      %v1319 = vpow.pop %v1318
      %v1320 = vmul.f32 %v1249, 1.442695
      %v1321 = vpow.pop %v1320
      %v1322 = vmul.f32 %v1250, 1.442695
      %v1323 = vpow.pop %v1322
      %v1324 = vmul.f32 %v1251, 1.442695
      %v1325 = vpow.pop %v1324
      %v1326 = vmul.f32 %v1252, 1.442695
      %v1327 = vpow.pop %v1326
      %v1328 = vmul.f32 %v1253, 1.442695
      %v1329 = vpow.pop %v1328
      %v1330 = vmul.f32 %v1254, 1.442695
      %v1331 = vpow.pop %v1330
      %v1332 = vmul.f32 %v1255, 1.442695
      %v1333 = vpow.pop %v1332
      %v1334 = vmul.f32 %v1256, 1.442695
      %v1335 = vpow.pop %v1334
      %v1336 = vmul.f32 %v1257, 1.442695
      %v1337 = vpow.pop %v1336
      %v1338 = vmul.f32 %v1258, 1.442695
      %v1339 = vpow.pop %v1338
      %v1340 = vmul.f32 %v1259, 1.442695
      %v1341 = vpow.pop %v1340
      %v1342 = vmul.f32 %v1260, 1.442695
      %v1343 = vpow.pop %v1342
      %v1344 = vmul.f32 %v1261, 1.442695
      %v1345 = vpow.pop %v1344
      %v1346 = vmul.f32 %v1262, 1.442695
      %v1347 = vpow.pop %v1346
      %v1348 = vmul.f32 %v1263, 1.442695
      %v1349 = vpow.pop %v1348
      %v1350 = vmul.f32 %v1264, 1.442695
      %v1351 = vpow.pop %v1350
      %v1352 = vmul.f32 %v1265, 1.442695
      %v1353 = vpow.pop %v1352
      %v1354 = vmul.f32 %v1266, 1.442695
      %v1355 = vpow.pop %v1354
      %v1356 = vmul.f32 %v1267, 1.442695
      %v1357 = vpow.pop %v1356
      %v1358 = vmul.f32 %v1268, 1.442695
      %v1359 = vpow.pop %v1358
      %v1360 = vmul.f32 %v1269, 1.442695
      %v1361 = vpow.pop %v1360
      %v1362 = vmul.f32 %v1270, 1.442695
      %v1363 = vpow.pop %v1362
      %v1364 = vmul.f32 %v1271, 1.442695
      %v1365 = vpow.pop %v1364
      %v1366 = vmul.f32 %v1272, 1.442695
      %v1367 = vpow.pop %v1366
      %v1368 = vmul.f32 %v1273, 1.442695
      %v1369 = vpow.pop %v1368
      %v1370 = vmul.f32 %v1274, 1.442695
      %v1371 = vpow.pop %v1370
      %v1372 = vmul.f32 %v1275, 1.442695
      %v1373 = vpow.pop %v1372
      %v1374 = vmul.f32 %v1276, 1.442695
      %v1375 = vpow.pop %v1374
      %v1376 = vmul.f32 %v1277, 1.442695
      %v1377 = vpow.pop %v1376
      %v1378 = vmul.f32 %v1278, 1.442695
      %v1379 = vpow.pop %v1378
      %v1380 = vmul.f32 %v1279, 1.442695
      %v1381 = vpow.pop %v1380
      %v1382 = vmul.f32 %v1280, 1.442695
      %v1383 = vpow.pop %v1382
      %v1384 = vmul.f32 %v1281, 1.442695
      %v1385 = vpow.pop %v1384
      %v1386 = vmul.f32 %v1282, 1.442695
      %v1387 = vpow.pop %v1386
      %v1388 = vmul.f32 %v1283, 1.442695
      %v1389 = vpow.pop %v1388
      %v1390 = vmul.f32 %v1284, 1.442695
      %v1391 = vpow.pop %v1390
      %v1392 = vmul.f32 %v1285, 1.442695
      %v1393 = vpow.pop %v1392
      %v1394 = vmul.f32 %v1286, 1.442695
      %v1395 = vpow.pop %v1394
      %v1396 = vmul.f32 %v1287, 1.442695
      %v1397 = vpow.pop %v1396
      %v1398 = vmul.f32 %v1288, 1.442695
      %v1399 = vpow.pop %v1398
      %v1400 = vmul.f32 %v1289, 1.442695
      %v1401 = vpow.pop %v1400
      %v1402 = vmul.f32 %v1290, 1.442695
      %v1403 = vpow.pop %v1402
      %v1404 = vmul.f32 %v1291, 1.442695
      %v1405 = vpow.pop %v1404
      %v1406 = vmul.f32 %v1292, 1.442695
      %v1407 = vpow.pop %v1406
      %v1408 = vmul.f32 %v1293, 1.442695
      %v1409 = vpow.pop %v1408
      %v1410 = vmul.f32 %v1294, 1.442695
      %v1411 = vpow.pop %v1410
      %v1412 = vmul.f32 %v1295, 1.442695
      %v1413 = vpow.pop %v1412
      %v1414 = vmul.f32 %v1296, 1.442695
      %v1415 = vpow.pop %v1414
      %v1416 = vmul.f32 %v1297, 1.442695
      %v1417 = vpow.pop %v1416
      %v1418 = vmul.f32 %v1298, 1.442695
      %v1419 = vpow.pop %v1418
      %v1420 = vmul.f32 %v1299, 1.442695
      %v1421 = vpow.pop %v1420
      %v1422 = vmul.f32 %v1300, 1.442695
      %v1423 = vpow.pop %v1422
      %v1424 = vmul.f32 %v1301, 1.442695
      %v1425 = vpow.pop %v1424
      %v1426 = vmul.f32 %v1302, 1.442695
      %v1427 = vpow.pop %v1426
      %v1428 = vmul.f32 %v1303, 1.442695
      %v1429 = vpow.pop %v1428
      %v1430 = vmul.f32 %v1304, 1.442695
      %v1431 = vpow.pop %v1430
      %v1432 = vmul.f32 %v1305, 1.442695
      %v1433 = vpow.pop %v1432
      %v1434 = vadd.f32 %v1307, 1.0
      %v1435 = vadd.f32 %v1309, 1.0
      %v1436 = vadd.f32 %v1311, 1.0
      %v1437 = vadd.f32 %v1313, 1.0
      %v1438 = vadd.f32 %v1315, 1.0
      %v1439 = vadd.f32 %v1317, 1.0
      %v1440 = vadd.f32 %v1319, 1.0
      %v1441 = vadd.f32 %v1321, 1.0
      %v1442 = vadd.f32 %v1323, 1.0
      %v1443 = vadd.f32 %v1325, 1.0
      %v1444 = vadd.f32 %v1327, 1.0
      %v1445 = vadd.f32 %v1329, 1.0
      %v1446 = vadd.f32 %v1331, 1.0
      %v1447 = vadd.f32 %v1333, 1.0
      %v1448 = vadd.f32 %v1335, 1.0
      %v1449 = vadd.f32 %v1337, 1.0
      %v1450 = vadd.f32 %v1339, 1.0
      %v1451 = vadd.f32 %v1341, 1.0
      %v1452 = vadd.f32 %v1343, 1.0
      %v1453 = vadd.f32 %v1345, 1.0
      %v1454 = vadd.f32 %v1347, 1.0
      %v1455 = vadd.f32 %v1349, 1.0
      %v1456 = vadd.f32 %v1351, 1.0
      %v1457 = vadd.f32 %v1353, 1.0
      %v1458 = vadd.f32 %v1355, 1.0
      %v1459 = vadd.f32 %v1357, 1.0
      %v1460 = vadd.f32 %v1359, 1.0
      %v1461 = vadd.f32 %v1361, 1.0
      %v1462 = vadd.f32 %v1363, 1.0
      %v1463 = vadd.f32 %v1365, 1.0
      %v1464 = vadd.f32 %v1367, 1.0
      %v1465 = vadd.f32 %v1369, 1.0
      %v1466 = vadd.f32 %v1371, 1.0
      %v1467 = vadd.f32 %v1373, 1.0
      %v1468 = vadd.f32 %v1375, 1.0
      %v1469 = vadd.f32 %v1377, 1.0
      %v1470 = vadd.f32 %v1379, 1.0
      %v1471 = vadd.f32 %v1381, 1.0
      %v1472 = vadd.f32 %v1383, 1.0
      %v1473 = vadd.f32 %v1385, 1.0
      %v1474 = vadd.f32 %v1387, 1.0
      %v1475 = vadd.f32 %v1389, 1.0
      %v1476 = vadd.f32 %v1391, 1.0
      %v1477 = vadd.f32 %v1393, 1.0
      %v1478 = vadd.f32 %v1395, 1.0
      %v1479 = vadd.f32 %v1397, 1.0
      %v1480 = vadd.f32 %v1399, 1.0
      %v1481 = vadd.f32 %v1401, 1.0
      %v1482 = vadd.f32 %v1403, 1.0
      %v1483 = vadd.f32 %v1405, 1.0
      %v1484 = vadd.f32 %v1407, 1.0
      %v1485 = vadd.f32 %v1409, 1.0
      %v1486 = vadd.f32 %v1411, 1.0
      %v1487 = vadd.f32 %v1413, 1.0
      %v1488 = vadd.f32 %v1415, 1.0
      %v1489 = vadd.f32 %v1417, 1.0
      %v1490 = vadd.f32 %v1419, 1.0
      %v1491 = vadd.f32 %v1421, 1.0
      %v1492 = vadd.f32 %v1423, 1.0
      %v1493 = vadd.f32 %v1425, 1.0
      %v1494 = vadd.f32 %v1427, 1.0
      %v1495 = vadd.f32 %v1429, 1.0
      %v1496 = vadd.f32 %v1431, 1.0
      %v1497 = vadd.f32 %v1433, 1.0
      %v1498 = vrcp.pop %v1434
      %v1499 = vmul.f32 %v1434, %v1498
      %v1500 = vsub.f32 1.0, %v1499
      %v1501 = vmul.f32 %v1498, %v1500
      %v1502 = vadd.f32 %v1498, %v1501
      %vm1503 = vweird.f32 %v1434
      %vm1504 = vweird.f32 %v1498
      %vm1505 = vmor %vm1503, %vm1504
      %v1506 = vsel %vm1505, %v1498, %v1502
      %v1507 = vand.u32 2147483647, %v1434
      %vm1508 = vcmp.eq.f32.partialorder %v1507, 8.507059e+37
      %v1509 = vand.u32 %v1434, 2147483648
      %v1510 = vor.u32 1.1754944e-38, %v1509
      %v1511 = vsel %vm1508, %v1510, %v1506
      %v1512 = vmul.f32 1.0, %v1511
      %v1513 = vrcp.pop %v1435
      %v1514 = vmul.f32 %v1435, %v1513
      %v1515 = vsub.f32 1.0, %v1514
      %v1516 = vmul.f32 %v1513, %v1515
      %v1517 = vadd.f32 %v1513, %v1516
      %vm1518 = vweird.f32 %v1435
      %vm1519 = vweird.f32 %v1513
      %vm1520 = vmor %vm1518, %vm1519
      %v1521 = vsel %vm1520, %v1513, %v1517
      %v1522 = vand.u32 2147483647, %v1435
      %vm1523 = vcmp.eq.f32.partialorder %v1522, 8.507059e+37
      %v1524 = vand.u32 %v1435, 2147483648
      %v1525 = vor.u32 1.1754944e-38, %v1524
      %v1526 = vsel %vm1523, %v1525, %v1521
      %v1527 = vmul.f32 1.0, %v1526
      %v1528 = vrcp.pop %v1436
      %v1529 = vmul.f32 %v1436, %v1528
      %v1530 = vsub.f32 1.0, %v1529
      %v1531 = vmul.f32 %v1528, %v1530
      %v1532 = vadd.f32 %v1528, %v1531
      %vm1533 = vweird.f32 %v1436
      %vm1534 = vweird.f32 %v1528
      %vm1535 = vmor %vm1533, %vm1534
      %v1536 = vsel %vm1535, %v1528, %v1532
      %v1537 = vand.u32 2147483647, %v1436
      %vm1538 = vcmp.eq.f32.partialorder %v1537, 8.507059e+37
      %v1539 = vand.u32 %v1436, 2147483648
      %v1540 = vor.u32 1.1754944e-38, %v1539
      %v1541 = vsel %vm1538, %v1540, %v1536
      %v1542 = vmul.f32 1.0, %v1541
      %v1543 = vrcp.pop %v1437
      %v1544 = vmul.f32 %v1437, %v1543
      %v1545 = vsub.f32 1.0, %v1544
      %v1546 = vmul.f32 %v1543, %v1545
      %v1547 = vadd.f32 %v1543, %v1546
      %vm1548 = vweird.f32 %v1437
      %vm1549 = vweird.f32 %v1543
      %vm1550 = vmor %vm1548, %vm1549
      %v1551 = vsel %vm1550, %v1543, %v1547
      %v1552 = vand.u32 2147483647, %v1437
      %vm1553 = vcmp.eq.f32.partialorder %v1552, 8.507059e+37
      %v1554 = vand.u32 %v1437, 2147483648
      %v1555 = vor.u32 1.1754944e-38, %v1554
      %v1556 = vsel %vm1553, %v1555, %v1551
      %v1557 = vmul.f32 1.0, %v1556
      %v1558 = vrcp.pop %v1438
      %v1559 = vmul.f32 %v1438, %v1558
      %v1560 = vsub.f32 1.0, %v1559
      %v1561 = vmul.f32 %v1558, %v1560
      %v1562 = vadd.f32 %v1558, %v1561
      %vm1563 = vweird.f32 %v1438
      %vm1564 = vweird.f32 %v1558
      %vm1565 = vmor %vm1563, %vm1564
      %v1566 = vsel %vm1565, %v1558, %v1562
      %v1567 = vand.u32 2147483647, %v1438
      %vm1568 = vcmp.eq.f32.partialorder %v1567, 8.507059e+37
      %v1569 = vand.u32 %v1438, 2147483648
      %v1570 = vor.u32 1.1754944e-38, %v1569
      %v1571 = vsel %vm1568, %v1570, %v1566
      %v1572 = vmul.f32 1.0, %v1571
      %v1573 = vrcp.pop %v1439
      %v1574 = vmul.f32 %v1439, %v1573
      %v1575 = vsub.f32 1.0, %v1574
      %v1576 = vmul.f32 %v1573, %v1575
      %v1577 = vadd.f32 %v1573, %v1576
      %vm1578 = vweird.f32 %v1439
      %vm1579 = vweird.f32 %v1573
      %vm1580 = vmor %vm1578, %vm1579
      %v1581 = vsel %vm1580, %v1573, %v1577
      %v1582 = vand.u32 2147483647, %v1439
      %vm1583 = vcmp.eq.f32.partialorder %v1582, 8.507059e+37
      %v1584 = vand.u32 %v1439, 2147483648
      %v1585 = vor.u32 1.1754944e-38, %v1584
      %v1586 = vsel %vm1583, %v1585, %v1581
      %v1587 = vmul.f32 1.0, %v1586
      %v1588 = vrcp.pop %v1440
      %v1589 = vmul.f32 %v1440, %v1588
      %v1590 = vsub.f32 1.0, %v1589
      %v1591 = vmul.f32 %v1588, %v1590
      %v1592 = vadd.f32 %v1588, %v1591
      %vm1593 = vweird.f32 %v1440
      %vm1594 = vweird.f32 %v1588
      %vm1595 = vmor %vm1593, %vm1594
      %v1596 = vsel %vm1595, %v1588, %v1592
      %v1597 = vand.u32 2147483647, %v1440
      %vm1598 = vcmp.eq.f32.partialorder %v1597, 8.507059e+37
      %v1599 = vand.u32 %v1440, 2147483648
      %v1600 = vor.u32 1.1754944e-38, %v1599
      %v1601 = vsel %vm1598, %v1600, %v1596
      %v1602 = vmul.f32 1.0, %v1601
      %v1603 = vrcp.pop %v1441
      %v1604 = vmul.f32 %v1441, %v1603
      %v1605 = vsub.f32 1.0, %v1604
      %v1606 = vmul.f32 %v1603, %v1605
      %v1607 = vadd.f32 %v1603, %v1606
      %vm1608 = vweird.f32 %v1441
      %vm1609 = vweird.f32 %v1603
      %vm1610 = vmor %vm1608, %vm1609
      %v1611 = vsel %vm1610, %v1603, %v1607
      %v1612 = vand.u32 2147483647, %v1441
      %vm1613 = vcmp.eq.f32.partialorder %v1612, 8.507059e+37
      %v1614 = vand.u32 %v1441, 2147483648
      %v1615 = vor.u32 1.1754944e-38, %v1614
      %v1616 = vsel %vm1613, %v1615, %v1611
      %v1617 = vmul.f32 1.0, %v1616
      %v1618 = vrcp.pop %v1442
      %v1619 = vmul.f32 %v1442, %v1618
      %v1620 = vsub.f32 1.0, %v1619
      %v1621 = vmul.f32 %v1618, %v1620
      %v1622 = vadd.f32 %v1618, %v1621
      %vm1623 = vweird.f32 %v1442
      %vm1624 = vweird.f32 %v1618
      %vm1625 = vmor %vm1623, %vm1624
      %v1626 = vsel %vm1625, %v1618, %v1622
      %v1627 = vand.u32 2147483647, %v1442
      %vm1628 = vcmp.eq.f32.partialorder %v1627, 8.507059e+37
      %v1629 = vand.u32 %v1442, 2147483648
      %v1630 = vor.u32 1.1754944e-38, %v1629
      %v1631 = vsel %vm1628, %v1630, %v1626
      %v1632 = vmul.f32 1.0, %v1631
      %v1633 = vrcp.pop %v1443
      %v1634 = vmul.f32 %v1443, %v1633
      %v1635 = vsub.f32 1.0, %v1634
      %v1636 = vmul.f32 %v1633, %v1635
      %v1637 = vadd.f32 %v1633, %v1636
      %vm1638 = vweird.f32 %v1443
      %vm1639 = vweird.f32 %v1633
      %vm1640 = vmor %vm1638, %vm1639
      %v1641 = vsel %vm1640, %v1633, %v1637
      %v1642 = vand.u32 2147483647, %v1443
      %vm1643 = vcmp.eq.f32.partialorder %v1642, 8.507059e+37
      %v1644 = vand.u32 %v1443, 2147483648
      %v1645 = vor.u32 1.1754944e-38, %v1644
      %v1646 = vsel %vm1643, %v1645, %v1641
      %v1647 = vmul.f32 1.0, %v1646
      %v1648 = vrcp.pop %v1444
      %v1649 = vmul.f32 %v1444, %v1648
      %v1650 = vsub.f32 1.0, %v1649
      %v1651 = vmul.f32 %v1648, %v1650
      %v1652 = vadd.f32 %v1648, %v1651
      %vm1653 = vweird.f32 %v1444
      %vm1654 = vweird.f32 %v1648
      %vm1655 = vmor %vm1653, %vm1654
      %v1656 = vsel %vm1655, %v1648, %v1652
      %v1657 = vand.u32 2147483647, %v1444
      %vm1658 = vcmp.eq.f32.partialorder %v1657, 8.507059e+37
      %v1659 = vand.u32 %v1444, 2147483648
      %v1660 = vor.u32 1.1754944e-38, %v1659
      %v1661 = vsel %vm1658, %v1660, %v1656
      %v1662 = vmul.f32 1.0, %v1661
      %v1663 = vrcp.pop %v1445
      %v1664 = vmul.f32 %v1445, %v1663
      %v1665 = vsub.f32 1.0, %v1664
      %v1666 = vmul.f32 %v1663, %v1665
      %v1667 = vadd.f32 %v1663, %v1666
      %vm1668 = vweird.f32 %v1445
      %vm1669 = vweird.f32 %v1663
      %vm1670 = vmor %vm1668, %vm1669
      %v1671 = vsel %vm1670, %v1663, %v1667
      %v1672 = vand.u32 2147483647, %v1445
      %vm1673 = vcmp.eq.f32.partialorder %v1672, 8.507059e+37
      %v1674 = vand.u32 %v1445, 2147483648
      %v1675 = vor.u32 1.1754944e-38, %v1674
      %v1676 = vsel %vm1673, %v1675, %v1671
      %v1677 = vmul.f32 1.0, %v1676
      %v1678 = vrcp.pop %v1446
      %v1679 = vmul.f32 %v1446, %v1678
      %v1680 = vsub.f32 1.0, %v1679
      %v1681 = vmul.f32 %v1678, %v1680
      %v1682 = vadd.f32 %v1678, %v1681
      %vm1683 = vweird.f32 %v1446
      %vm1684 = vweird.f32 %v1678
      %vm1685 = vmor %vm1683, %vm1684
      %v1686 = vsel %vm1685, %v1678, %v1682
      %v1687 = vand.u32 2147483647, %v1446
      %vm1688 = vcmp.eq.f32.partialorder %v1687, 8.507059e+37
      %v1689 = vand.u32 %v1446, 2147483648
      %v1690 = vor.u32 1.1754944e-38, %v1689
      %v1691 = vsel %vm1688, %v1690, %v1686
      %v1692 = vmul.f32 1.0, %v1691
      %v1693 = vrcp.pop %v1447
      %v1694 = vmul.f32 %v1447, %v1693
      %v1695 = vsub.f32 1.0, %v1694
      %v1696 = vmul.f32 %v1693, %v1695
      %v1697 = vadd.f32 %v1693, %v1696
      %vm1698 = vweird.f32 %v1447
      %vm1699 = vweird.f32 %v1693
      %vm1700 = vmor %vm1698, %vm1699
      %v1701 = vsel %vm1700, %v1693, %v1697
      %v1702 = vand.u32 2147483647, %v1447
      %vm1703 = vcmp.eq.f32.partialorder %v1702, 8.507059e+37
      %v1704 = vand.u32 %v1447, 2147483648
      %v1705 = vor.u32 1.1754944e-38, %v1704
      %v1706 = vsel %vm1703, %v1705, %v1701
      %v1707 = vmul.f32 1.0, %v1706
      %v1708 = vrcp.pop %v1448
      %v1709 = vmul.f32 %v1448, %v1708
      %v1710 = vsub.f32 1.0, %v1709
      %v1711 = vmul.f32 %v1708, %v1710
      %v1712 = vadd.f32 %v1708, %v1711
      %vm1713 = vweird.f32 %v1448
      %vm1714 = vweird.f32 %v1708
      %vm1715 = vmor %vm1713, %vm1714
      %v1716 = vsel %vm1715, %v1708, %v1712
      %v1717 = vand.u32 2147483647, %v1448
      %vm1718 = vcmp.eq.f32.partialorder %v1717, 8.507059e+37
      %v1719 = vand.u32 %v1448, 2147483648
      %v1720 = vor.u32 1.1754944e-38, %v1719
      %v1721 = vsel %vm1718, %v1720, %v1716
      %v1722 = vmul.f32 1.0, %v1721
      %v1723 = vrcp.pop %v1449
      %v1724 = vmul.f32 %v1449, %v1723
      %v1725 = vsub.f32 1.0, %v1724
      %v1726 = vmul.f32 %v1723, %v1725
      %v1727 = vadd.f32 %v1723, %v1726
      %vm1728 = vweird.f32 %v1449
      %vm1729 = vweird.f32 %v1723
      %vm1730 = vmor %vm1728, %vm1729
      %v1731 = vsel %vm1730, %v1723, %v1727
      %v1732 = vand.u32 2147483647, %v1449
      %vm1733 = vcmp.eq.f32.partialorder %v1732, 8.507059e+37
      %v1734 = vand.u32 %v1449, 2147483648
      %v1735 = vor.u32 1.1754944e-38, %v1734
      %v1736 = vsel %vm1733, %v1735, %v1731
      %v1737 = vmul.f32 1.0, %v1736
      %v1738 = vrcp.pop %v1450
      %v1739 = vmul.f32 %v1450, %v1738
      %v1740 = vsub.f32 1.0, %v1739
      %v1741 = vmul.f32 %v1738, %v1740
      %v1742 = vadd.f32 %v1738, %v1741
      %vm1743 = vweird.f32 %v1450
      %vm1744 = vweird.f32 %v1738
      %vm1745 = vmor %vm1743, %vm1744
      %v1746 = vsel %vm1745, %v1738, %v1742
      %v1747 = vand.u32 2147483647, %v1450
      %vm1748 = vcmp.eq.f32.partialorder %v1747, 8.507059e+37
      %v1749 = vand.u32 %v1450, 2147483648
      %v1750 = vor.u32 1.1754944e-38, %v1749
      %v1751 = vsel %vm1748, %v1750, %v1746
      %v1752 = vmul.f32 1.0, %v1751
      %v1753 = vrcp.pop %v1451
      %v1754 = vmul.f32 %v1451, %v1753
      %v1755 = vsub.f32 1.0, %v1754
      %v1756 = vmul.f32 %v1753, %v1755
      %v1757 = vadd.f32 %v1753, %v1756
      %vm1758 = vweird.f32 %v1451
      %vm1759 = vweird.f32 %v1753
      %vm1760 = vmor %vm1758, %vm1759
      %v1761 = vsel %vm1760, %v1753, %v1757
      %v1762 = vand.u32 2147483647, %v1451
      %vm1763 = vcmp.eq.f32.partialorder %v1762, 8.507059e+37
      %v1764 = vand.u32 %v1451, 2147483648
      %v1765 = vor.u32 1.1754944e-38, %v1764
      %v1766 = vsel %vm1763, %v1765, %v1761
      %v1767 = vmul.f32 1.0, %v1766
      %v1768 = vrcp.pop %v1452
      %v1769 = vmul.f32 %v1452, %v1768
      %v1770 = vsub.f32 1.0, %v1769
      %v1771 = vmul.f32 %v1768, %v1770
      %v1772 = vadd.f32 %v1768, %v1771
      %vm1773 = vweird.f32 %v1452
      %vm1774 = vweird.f32 %v1768
      %vm1775 = vmor %vm1773, %vm1774
      %v1776 = vsel %vm1775, %v1768, %v1772
      %v1777 = vand.u32 2147483647, %v1452
      %vm1778 = vcmp.eq.f32.partialorder %v1777, 8.507059e+37
      %v1779 = vand.u32 %v1452, 2147483648
      %v1780 = vor.u32 1.1754944e-38, %v1779
      %v1781 = vsel %vm1778, %v1780, %v1776
      %v1782 = vmul.f32 1.0, %v1781
      %v1783 = vrcp.pop %v1453
      %v1784 = vmul.f32 %v1453, %v1783
      %v1785 = vsub.f32 1.0, %v1784
      %v1786 = vmul.f32 %v1783, %v1785
      %v1787 = vadd.f32 %v1783, %v1786
      %vm1788 = vweird.f32 %v1453
      %vm1789 = vweird.f32 %v1783
      %vm1790 = vmor %vm1788, %vm1789
      %v1791 = vsel %vm1790, %v1783, %v1787
      %v1792 = vand.u32 2147483647, %v1453
      %vm1793 = vcmp.eq.f32.partialorder %v1792, 8.507059e+37
      %v1794 = vand.u32 %v1453, 2147483648
      %v1795 = vor.u32 1.1754944e-38, %v1794
      %v1796 = vsel %vm1793, %v1795, %v1791
      %v1797 = vmul.f32 1.0, %v1796
      %v1798 = vrcp.pop %v1454
      %v1799 = vmul.f32 %v1454, %v1798
      %v1800 = vsub.f32 1.0, %v1799
      %v1801 = vmul.f32 %v1798, %v1800
      %v1802 = vadd.f32 %v1798, %v1801
      %vm1803 = vweird.f32 %v1454
      %vm1804 = vweird.f32 %v1798
      %vm1805 = vmor %vm1803, %vm1804
      %v1806 = vsel %vm1805, %v1798, %v1802
      %v1807 = vand.u32 2147483647, %v1454
      %vm1808 = vcmp.eq.f32.partialorder %v1807, 8.507059e+37
      %v1809 = vand.u32 %v1454, 2147483648
      %v1810 = vor.u32 1.1754944e-38, %v1809
      %v1811 = vsel %vm1808, %v1810, %v1806
      %v1812 = vmul.f32 1.0, %v1811
      %v1813 = vrcp.pop %v1455
      %v1814 = vmul.f32 %v1455, %v1813
      %v1815 = vsub.f32 1.0, %v1814
      %v1816 = vmul.f32 %v1813, %v1815
      %v1817 = vadd.f32 %v1813, %v1816
      %vm1818 = vweird.f32 %v1455
      %vm1819 = vweird.f32 %v1813
      %vm1820 = vmor %vm1818, %vm1819
      %v1821 = vsel %vm1820, %v1813, %v1817
      %v1822 = vand.u32 2147483647, %v1455
      %vm1823 = vcmp.eq.f32.partialorder %v1822, 8.507059e+37
      %v1824 = vand.u32 %v1455, 2147483648
      %v1825 = vor.u32 1.1754944e-38, %v1824
      %v1826 = vsel %vm1823, %v1825, %v1821
      %v1827 = vmul.f32 1.0, %v1826
      %v1828 = vrcp.pop %v1456
      %v1829 = vmul.f32 %v1456, %v1828
      %v1830 = vsub.f32 1.0, %v1829
      %v1831 = vmul.f32 %v1828, %v1830
      %v1832 = vadd.f32 %v1828, %v1831
      %vm1833 = vweird.f32 %v1456
      %vm1834 = vweird.f32 %v1828
      %vm1835 = vmor %vm1833, %vm1834
      %v1836 = vsel %vm1835, %v1828, %v1832
      %v1837 = vand.u32 2147483647, %v1456
      %vm1838 = vcmp.eq.f32.partialorder %v1837, 8.507059e+37
      %v1839 = vand.u32 %v1456, 2147483648
      %v1840 = vor.u32 1.1754944e-38, %v1839
      %v1841 = vsel %vm1838, %v1840, %v1836
      %v1842 = vmul.f32 1.0, %v1841
      %v1843 = vrcp.pop %v1457
      %v1844 = vmul.f32 %v1457, %v1843
      %v1845 = vsub.f32 1.0, %v1844
      %v1846 = vmul.f32 %v1843, %v1845
      %v1847 = vadd.f32 %v1843, %v1846
      %vm1848 = vweird.f32 %v1457
      %vm1849 = vweird.f32 %v1843
      %vm1850 = vmor %vm1848, %vm1849
      %v1851 = vsel %vm1850, %v1843, %v1847
      %v1852 = vand.u32 2147483647, %v1457
      %vm1853 = vcmp.eq.f32.partialorder %v1852, 8.507059e+37
      %v1854 = vand.u32 %v1457, 2147483648
      %v1855 = vor.u32 1.1754944e-38, %v1854
      %v1856 = vsel %vm1853, %v1855, %v1851
      %v1857 = vmul.f32 1.0, %v1856
      %v1858 = vrcp.pop %v1458
      %v1859 = vmul.f32 %v1458, %v1858
      %v1860 = vsub.f32 1.0, %v1859
      %v1861 = vmul.f32 %v1858, %v1860
      %v1862 = vadd.f32 %v1858, %v1861
      %vm1863 = vweird.f32 %v1458
      %vm1864 = vweird.f32 %v1858
      %vm1865 = vmor %vm1863, %vm1864
      %v1866 = vsel %vm1865, %v1858, %v1862
      %v1867 = vand.u32 2147483647, %v1458
      %vm1868 = vcmp.eq.f32.partialorder %v1867, 8.507059e+37
      %v1869 = vand.u32 %v1458, 2147483648
      %v1870 = vor.u32 1.1754944e-38, %v1869
      %v1871 = vsel %vm1868, %v1870, %v1866
      %v1872 = vmul.f32 1.0, %v1871
      %v1873 = vrcp.pop %v1459
      %v1874 = vmul.f32 %v1459, %v1873
      %v1875 = vsub.f32 1.0, %v1874
      %v1876 = vmul.f32 %v1873, %v1875
      %v1877 = vadd.f32 %v1873, %v1876
      %vm1878 = vweird.f32 %v1459
      %vm1879 = vweird.f32 %v1873
      %vm1880 = vmor %vm1878, %vm1879
      %v1881 = vsel %vm1880, %v1873, %v1877
      %v1882 = vand.u32 2147483647, %v1459
      %vm1883 = vcmp.eq.f32.partialorder %v1882, 8.507059e+37
      %v1884 = vand.u32 %v1459, 2147483648
      %v1885 = vor.u32 1.1754944e-38, %v1884
      %v1886 = vsel %vm1883, %v1885, %v1881
      %v1887 = vmul.f32 1.0, %v1886
      %v1888 = vrcp.pop %v1460
      %v1889 = vmul.f32 %v1460, %v1888
      %v1890 = vsub.f32 1.0, %v1889
      %v1891 = vmul.f32 %v1888, %v1890
      %v1892 = vadd.f32 %v1888, %v1891
      %vm1893 = vweird.f32 %v1460
      %vm1894 = vweird.f32 %v1888
      %vm1895 = vmor %vm1893, %vm1894
      %v1896 = vsel %vm1895, %v1888, %v1892
      %v1897 = vand.u32 2147483647, %v1460
      %vm1898 = vcmp.eq.f32.partialorder %v1897, 8.507059e+37
      %v1899 = vand.u32 %v1460, 2147483648
      %v1900 = vor.u32 1.1754944e-38, %v1899
      %v1901 = vsel %vm1898, %v1900, %v1896
      %v1902 = vmul.f32 1.0, %v1901
      %v1903 = vrcp.pop %v1461
      %v1904 = vmul.f32 %v1461, %v1903
      %v1905 = vsub.f32 1.0, %v1904
      %v1906 = vmul.f32 %v1903, %v1905
      %v1907 = vadd.f32 %v1903, %v1906
      %vm1908 = vweird.f32 %v1461
      %vm1909 = vweird.f32 %v1903
      %vm1910 = vmor %vm1908, %vm1909
      %v1911 = vsel %vm1910, %v1903, %v1907
      %v1912 = vand.u32 2147483647, %v1461
      %vm1913 = vcmp.eq.f32.partialorder %v1912, 8.507059e+37
      %v1914 = vand.u32 %v1461, 2147483648
      %v1915 = vor.u32 1.1754944e-38, %v1914
      %v1916 = vsel %vm1913, %v1915, %v1911
      %v1917 = vmul.f32 1.0, %v1916
      %v1918 = vrcp.pop %v1462
      %v1919 = vmul.f32 %v1462, %v1918
      %v1920 = vsub.f32 1.0, %v1919
      %v1921 = vmul.f32 %v1918, %v1920
      %v1922 = vadd.f32 %v1918, %v1921
      %vm1923 = vweird.f32 %v1462
      %vm1924 = vweird.f32 %v1918
      %vm1925 = vmor %vm1923, %vm1924
      %v1926 = vsel %vm1925, %v1918, %v1922
      %v1927 = vand.u32 2147483647, %v1462
      %vm1928 = vcmp.eq.f32.partialorder %v1927, 8.507059e+37
      %v1929 = vand.u32 %v1462, 2147483648
      %v1930 = vor.u32 1.1754944e-38, %v1929
      %v1931 = vsel %vm1928, %v1930, %v1926
      %v1932 = vmul.f32 1.0, %v1931
      %v1933 = vrcp.pop %v1463
      %v1934 = vmul.f32 %v1463, %v1933
      %v1935 = vsub.f32 1.0, %v1934
      %v1936 = vmul.f32 %v1933, %v1935
      %v1937 = vadd.f32 %v1933, %v1936
      %vm1938 = vweird.f32 %v1463
      %vm1939 = vweird.f32 %v1933
      %vm1940 = vmor %vm1938, %vm1939
      %v1941 = vsel %vm1940, %v1933, %v1937
      %v1942 = vand.u32 2147483647, %v1463
      %vm1943 = vcmp.eq.f32.partialorder %v1942, 8.507059e+37
      %v1944 = vand.u32 %v1463, 2147483648
      %v1945 = vor.u32 1.1754944e-38, %v1944
      %v1946 = vsel %vm1943, %v1945, %v1941
      %v1947 = vmul.f32 1.0, %v1946
      %v1948 = vrcp.pop %v1464
      %v1949 = vmul.f32 %v1464, %v1948
      %v1950 = vsub.f32 1.0, %v1949
      %v1951 = vmul.f32 %v1948, %v1950
      %v1952 = vadd.f32 %v1948, %v1951
      %vm1953 = vweird.f32 %v1464
      %vm1954 = vweird.f32 %v1948
      %vm1955 = vmor %vm1953, %vm1954
      %v1956 = vsel %vm1955, %v1948, %v1952
      %v1957 = vand.u32 2147483647, %v1464
      %vm1958 = vcmp.eq.f32.partialorder %v1957, 8.507059e+37
      %v1959 = vand.u32 %v1464, 2147483648
      %v1960 = vor.u32 1.1754944e-38, %v1959
      %v1961 = vsel %vm1958, %v1960, %v1956
      %v1962 = vmul.f32 1.0, %v1961
      %v1963 = vrcp.pop %v1465
      %v1964 = vmul.f32 %v1465, %v1963
      %v1965 = vsub.f32 1.0, %v1964
      %v1966 = vmul.f32 %v1963, %v1965
      %v1967 = vadd.f32 %v1963, %v1966
      %vm1968 = vweird.f32 %v1465
      %vm1969 = vweird.f32 %v1963
      %vm1970 = vmor %vm1968, %vm1969
      %v1971 = vsel %vm1970, %v1963, %v1967
      %v1972 = vand.u32 2147483647, %v1465
      %vm1973 = vcmp.eq.f32.partialorder %v1972, 8.507059e+37
      %v1974 = vand.u32 %v1465, 2147483648
      %v1975 = vor.u32 1.1754944e-38, %v1974
      %v1976 = vsel %vm1973, %v1975, %v1971
      %v1977 = vmul.f32 1.0, %v1976
      %v1978 = vrcp.pop %v1466
      %v1979 = vmul.f32 %v1466, %v1978
      %v1980 = vsub.f32 1.0, %v1979
      %v1981 = vmul.f32 %v1978, %v1980
      %v1982 = vadd.f32 %v1978, %v1981
      %vm1983 = vweird.f32 %v1466
      %vm1984 = vweird.f32 %v1978
      %vm1985 = vmor %vm1983, %vm1984
      %v1986 = vsel %vm1985, %v1978, %v1982
      %v1987 = vand.u32 2147483647, %v1466
      %vm1988 = vcmp.eq.f32.partialorder %v1987, 8.507059e+37
      %v1989 = vand.u32 %v1466, 2147483648
      %v1990 = vor.u32 1.1754944e-38, %v1989
      %v1991 = vsel %vm1988, %v1990, %v1986
      %v1992 = vmul.f32 1.0, %v1991
      %v1993 = vrcp.pop %v1467
      %v1994 = vmul.f32 %v1467, %v1993
      %v1995 = vsub.f32 1.0, %v1994
      %v1996 = vmul.f32 %v1993, %v1995
      %v1997 = vadd.f32 %v1993, %v1996
      %vm1998 = vweird.f32 %v1467
      %vm1999 = vweird.f32 %v1993
      %vm2000 = vmor %vm1998, %vm1999
      %v2001 = vsel %vm2000, %v1993, %v1997
      %v2002 = vand.u32 2147483647, %v1467
      %vm2003 = vcmp.eq.f32.partialorder %v2002, 8.507059e+37
      %v2004 = vand.u32 %v1467, 2147483648
      %v2005 = vor.u32 1.1754944e-38, %v2004
      %v2006 = vsel %vm2003, %v2005, %v2001
      %v2007 = vmul.f32 1.0, %v2006
      %v2008 = vrcp.pop %v1468
      %v2009 = vmul.f32 %v1468, %v2008
      %v2010 = vsub.f32 1.0, %v2009
      %v2011 = vmul.f32 %v2008, %v2010
      %v2012 = vadd.f32 %v2008, %v2011
      %vm2013 = vweird.f32 %v1468
      %vm2014 = vweird.f32 %v2008
      %vm2015 = vmor %vm2013, %vm2014
      %v2016 = vsel %vm2015, %v2008, %v2012
      %v2017 = vand.u32 2147483647, %v1468
      %vm2018 = vcmp.eq.f32.partialorder %v2017, 8.507059e+37
      %v2019 = vand.u32 %v1468, 2147483648
      %v2020 = vor.u32 1.1754944e-38, %v2019
      %v2021 = vsel %vm2018, %v2020, %v2016
      %v2022 = vmul.f32 1.0, %v2021
      %v2023 = vrcp.pop %v1469
      %v2024 = vmul.f32 %v1469, %v2023
      %v2025 = vsub.f32 1.0, %v2024
      %v2026 = vmul.f32 %v2023, %v2025
      %v2027 = vadd.f32 %v2023, %v2026
      %vm2028 = vweird.f32 %v1469
      %vm2029 = vweird.f32 %v2023
      %vm2030 = vmor %vm2028, %vm2029
      %v2031 = vsel %vm2030, %v2023, %v2027
      %v2032 = vand.u32 2147483647, %v1469
      %vm2033 = vcmp.eq.f32.partialorder %v2032, 8.507059e+37
      %v2034 = vand.u32 %v1469, 2147483648
      %v2035 = vor.u32 1.1754944e-38, %v2034
      %v2036 = vsel %vm2033, %v2035, %v2031
      %v2037 = vmul.f32 1.0, %v2036
      %v2038 = vrcp.pop %v1470
      %v2039 = vmul.f32 %v1470, %v2038
      %v2040 = vsub.f32 1.0, %v2039
      %v2041 = vmul.f32 %v2038, %v2040
      %v2042 = vadd.f32 %v2038, %v2041
      %vm2043 = vweird.f32 %v1470
      %vm2044 = vweird.f32 %v2038
      %vm2045 = vmor %vm2043, %vm2044
      %v2046 = vsel %vm2045, %v2038, %v2042
      %v2047 = vand.u32 2147483647, %v1470
      %vm2048 = vcmp.eq.f32.partialorder %v2047, 8.507059e+37
      %v2049 = vand.u32 %v1470, 2147483648
      %v2050 = vor.u32 1.1754944e-38, %v2049
      %v2051 = vsel %vm2048, %v2050, %v2046
      %v2052 = vmul.f32 1.0, %v2051
      %v2053 = vrcp.pop %v1471
      %v2054 = vmul.f32 %v1471, %v2053
      %v2055 = vsub.f32 1.0, %v2054
      %v2056 = vmul.f32 %v2053, %v2055
      %v2057 = vadd.f32 %v2053, %v2056
      %vm2058 = vweird.f32 %v1471
      %vm2059 = vweird.f32 %v2053
      %vm2060 = vmor %vm2058, %vm2059
      %v2061 = vsel %vm2060, %v2053, %v2057
      %v2062 = vand.u32 2147483647, %v1471
      %vm2063 = vcmp.eq.f32.partialorder %v2062, 8.507059e+37
      %v2064 = vand.u32 %v1471, 2147483648
      %v2065 = vor.u32 1.1754944e-38, %v2064
      %v2066 = vsel %vm2063, %v2065, %v2061
      %v2067 = vmul.f32 1.0, %v2066
      %v2068 = vrcp.pop %v1472
      %v2069 = vmul.f32 %v1472, %v2068
      %v2070 = vsub.f32 1.0, %v2069
      %v2071 = vmul.f32 %v2068, %v2070
      %v2072 = vadd.f32 %v2068, %v2071
      %vm2073 = vweird.f32 %v1472
      %vm2074 = vweird.f32 %v2068
      %vm2075 = vmor %vm2073, %vm2074
      %v2076 = vsel %vm2075, %v2068, %v2072
      %v2077 = vand.u32 2147483647, %v1472
      %vm2078 = vcmp.eq.f32.partialorder %v2077, 8.507059e+37
      %v2079 = vand.u32 %v1472, 2147483648
      %v2080 = vor.u32 1.1754944e-38, %v2079
      %v2081 = vsel %vm2078, %v2080, %v2076
      %v2082 = vmul.f32 1.0, %v2081
      %v2083 = vrcp.pop %v1473
      %v2084 = vmul.f32 %v1473, %v2083
      %v2085 = vsub.f32 1.0, %v2084
      %v2086 = vmul.f32 %v2083, %v2085
      %v2087 = vadd.f32 %v2083, %v2086
      %vm2088 = vweird.f32 %v1473
      %vm2089 = vweird.f32 %v2083
      %vm2090 = vmor %vm2088, %vm2089
      %v2091 = vsel %vm2090, %v2083, %v2087
      %v2092 = vand.u32 2147483647, %v1473
      %vm2093 = vcmp.eq.f32.partialorder %v2092, 8.507059e+37
      %v2094 = vand.u32 %v1473, 2147483648
      %v2095 = vor.u32 1.1754944e-38, %v2094
      %v2096 = vsel %vm2093, %v2095, %v2091
      %v2097 = vmul.f32 1.0, %v2096
      %v2098 = vrcp.pop %v1474
      %v2099 = vmul.f32 %v1474, %v2098
      %v2100 = vsub.f32 1.0, %v2099
      %v2101 = vmul.f32 %v2098, %v2100
      %v2102 = vadd.f32 %v2098, %v2101
      %vm2103 = vweird.f32 %v1474
      %vm2104 = vweird.f32 %v2098
      %vm2105 = vmor %vm2103, %vm2104
      %v2106 = vsel %vm2105, %v2098, %v2102
      %v2107 = vand.u32 2147483647, %v1474
      %vm2108 = vcmp.eq.f32.partialorder %v2107, 8.507059e+37
      %v2109 = vand.u32 %v1474, 2147483648
      %v2110 = vor.u32 1.1754944e-38, %v2109
      %v2111 = vsel %vm2108, %v2110, %v2106
      %v2112 = vmul.f32 1.0, %v2111
      %v2113 = vrcp.pop %v1475
      %v2114 = vmul.f32 %v1475, %v2113
      %v2115 = vsub.f32 1.0, %v2114
      %v2116 = vmul.f32 %v2113, %v2115
      %v2117 = vadd.f32 %v2113, %v2116
      %vm2118 = vweird.f32 %v1475
      %vm2119 = vweird.f32 %v2113
      %vm2120 = vmor %vm2118, %vm2119
      %v2121 = vsel %vm2120, %v2113, %v2117
      %v2122 = vand.u32 2147483647, %v1475
      %vm2123 = vcmp.eq.f32.partialorder %v2122, 8.507059e+37
      %v2124 = vand.u32 %v1475, 2147483648
      %v2125 = vor.u32 1.1754944e-38, %v2124
      %v2126 = vsel %vm2123, %v2125, %v2121
      %v2127 = vmul.f32 1.0, %v2126
      %v2128 = vrcp.pop %v1476
      %v2129 = vmul.f32 %v1476, %v2128
      %v2130 = vsub.f32 1.0, %v2129
      %v2131 = vmul.f32 %v2128, %v2130
      %v2132 = vadd.f32 %v2128, %v2131
      %vm2133 = vweird.f32 %v1476
      %vm2134 = vweird.f32 %v2128
      %vm2135 = vmor %vm2133, %vm2134
      %v2136 = vsel %vm2135, %v2128, %v2132
      %v2137 = vand.u32 2147483647, %v1476
      %vm2138 = vcmp.eq.f32.partialorder %v2137, 8.507059e+37
      %v2139 = vand.u32 %v1476, 2147483648
      %v2140 = vor.u32 1.1754944e-38, %v2139
      %v2141 = vsel %vm2138, %v2140, %v2136
      %v2142 = vmul.f32 1.0, %v2141
      %v2143 = vrcp.pop %v1477
      %v2144 = vmul.f32 %v1477, %v2143
      %v2145 = vsub.f32 1.0, %v2144
      %v2146 = vmul.f32 %v2143, %v2145
      %v2147 = vadd.f32 %v2143, %v2146
      %vm2148 = vweird.f32 %v1477
      %vm2149 = vweird.f32 %v2143
      %vm2150 = vmor %vm2148, %vm2149
      %v2151 = vsel %vm2150, %v2143, %v2147
      %v2152 = vand.u32 2147483647, %v1477
      %vm2153 = vcmp.eq.f32.partialorder %v2152, 8.507059e+37
      %v2154 = vand.u32 %v1477, 2147483648
      %v2155 = vor.u32 1.1754944e-38, %v2154
      %v2156 = vsel %vm2153, %v2155, %v2151
      %v2157 = vmul.f32 1.0, %v2156
      %v2158 = vrcp.pop %v1478
      %v2159 = vmul.f32 %v1478, %v2158
      %v2160 = vsub.f32 1.0, %v2159
      %v2161 = vmul.f32 %v2158, %v2160
      %v2162 = vadd.f32 %v2158, %v2161
      %vm2163 = vweird.f32 %v1478
      %vm2164 = vweird.f32 %v2158
      %vm2165 = vmor %vm2163, %vm2164
      %v2166 = vsel %vm2165, %v2158, %v2162
      %v2167 = vand.u32 2147483647, %v1478
      %vm2168 = vcmp.eq.f32.partialorder %v2167, 8.507059e+37
      %v2169 = vand.u32 %v1478, 2147483648
      %v2170 = vor.u32 1.1754944e-38, %v2169
      %v2171 = vsel %vm2168, %v2170, %v2166
      %v2172 = vmul.f32 1.0, %v2171
      %v2173 = vrcp.pop %v1479
      %v2174 = vmul.f32 %v1479, %v2173
      %v2175 = vsub.f32 1.0, %v2174
      %v2176 = vmul.f32 %v2173, %v2175
      %v2177 = vadd.f32 %v2173, %v2176
      %vm2178 = vweird.f32 %v1479
      %vm2179 = vweird.f32 %v2173
      %vm2180 = vmor %vm2178, %vm2179
      %v2181 = vsel %vm2180, %v2173, %v2177
      %v2182 = vand.u32 2147483647, %v1479
      %vm2183 = vcmp.eq.f32.partialorder %v2182, 8.507059e+37
      %v2184 = vand.u32 %v1479, 2147483648
      %v2185 = vor.u32 1.1754944e-38, %v2184
      %v2186 = vsel %vm2183, %v2185, %v2181
      %v2187 = vmul.f32 1.0, %v2186
      %v2188 = vrcp.pop %v1480
      %v2189 = vmul.f32 %v1480, %v2188
      %v2190 = vsub.f32 1.0, %v2189
      %v2191 = vmul.f32 %v2188, %v2190
      %v2192 = vadd.f32 %v2188, %v2191
      %vm2193 = vweird.f32 %v1480
      %vm2194 = vweird.f32 %v2188
      %vm2195 = vmor %vm2193, %vm2194
      %v2196 = vsel %vm2195, %v2188, %v2192
      %v2197 = vand.u32 2147483647, %v1480
      %vm2198 = vcmp.eq.f32.partialorder %v2197, 8.507059e+37
      %v2199 = vand.u32 %v1480, 2147483648
      %v2200 = vor.u32 1.1754944e-38, %v2199
      %v2201 = vsel %vm2198, %v2200, %v2196
      %v2202 = vmul.f32 1.0, %v2201
      %v2203 = vrcp.pop %v1481
      %v2204 = vmul.f32 %v1481, %v2203
      %v2205 = vsub.f32 1.0, %v2204
      %v2206 = vmul.f32 %v2203, %v2205
      %v2207 = vadd.f32 %v2203, %v2206
      %vm2208 = vweird.f32 %v1481
      %vm2209 = vweird.f32 %v2203
      %vm2210 = vmor %vm2208, %vm2209
      %v2211 = vsel %vm2210, %v2203, %v2207
      %v2212 = vand.u32 2147483647, %v1481
      %vm2213 = vcmp.eq.f32.partialorder %v2212, 8.507059e+37
      %v2214 = vand.u32 %v1481, 2147483648
      %v2215 = vor.u32 1.1754944e-38, %v2214
      %v2216 = vsel %vm2213, %v2215, %v2211
      %v2217 = vmul.f32 1.0, %v2216
      %v2218 = vrcp.pop %v1482
      %v2219 = vmul.f32 %v1482, %v2218
      %v2220 = vsub.f32 1.0, %v2219
      %v2221 = vmul.f32 %v2218, %v2220
      %v2222 = vadd.f32 %v2218, %v2221
      %vm2223 = vweird.f32 %v1482
      %vm2224 = vweird.f32 %v2218
      %vm2225 = vmor %vm2223, %vm2224
      %v2226 = vsel %vm2225, %v2218, %v2222
      %v2227 = vand.u32 2147483647, %v1482
      %vm2228 = vcmp.eq.f32.partialorder %v2227, 8.507059e+37
      %v2229 = vand.u32 %v1482, 2147483648
      %v2230 = vor.u32 1.1754944e-38, %v2229
      %v2231 = vsel %vm2228, %v2230, %v2226
      %v2232 = vmul.f32 1.0, %v2231
      %v2233 = vrcp.pop %v1483
      %v2234 = vmul.f32 %v1483, %v2233
      %v2235 = vsub.f32 1.0, %v2234
      %v2236 = vmul.f32 %v2233, %v2235
      %v2237 = vadd.f32 %v2233, %v2236
      %vm2238 = vweird.f32 %v1483
      %vm2239 = vweird.f32 %v2233
      %vm2240 = vmor %vm2238, %vm2239
      %v2241 = vsel %vm2240, %v2233, %v2237
      %v2242 = vand.u32 2147483647, %v1483
      %vm2243 = vcmp.eq.f32.partialorder %v2242, 8.507059e+37
      %v2244 = vand.u32 %v1483, 2147483648
      %v2245 = vor.u32 1.1754944e-38, %v2244
      %v2246 = vsel %vm2243, %v2245, %v2241
      %v2247 = vmul.f32 1.0, %v2246
      %v2248 = vrcp.pop %v1484
      %v2249 = vmul.f32 %v1484, %v2248
      %v2250 = vsub.f32 1.0, %v2249
      %v2251 = vmul.f32 %v2248, %v2250
      %v2252 = vadd.f32 %v2248, %v2251
      %vm2253 = vweird.f32 %v1484
      %vm2254 = vweird.f32 %v2248
      %vm2255 = vmor %vm2253, %vm2254
      %v2256 = vsel %vm2255, %v2248, %v2252
      %v2257 = vand.u32 2147483647, %v1484
      %vm2258 = vcmp.eq.f32.partialorder %v2257, 8.507059e+37
      %v2259 = vand.u32 %v1484, 2147483648
      %v2260 = vor.u32 1.1754944e-38, %v2259
      %v2261 = vsel %vm2258, %v2260, %v2256
      %v2262 = vmul.f32 1.0, %v2261
      %v2263 = vrcp.pop %v1485
      %v2264 = vmul.f32 %v1485, %v2263
      %v2265 = vsub.f32 1.0, %v2264
      %v2266 = vmul.f32 %v2263, %v2265
      %v2267 = vadd.f32 %v2263, %v2266
      %vm2268 = vweird.f32 %v1485
      %vm2269 = vweird.f32 %v2263
      %vm2270 = vmor %vm2268, %vm2269
      %v2271 = vsel %vm2270, %v2263, %v2267
      %v2272 = vand.u32 2147483647, %v1485
      %vm2273 = vcmp.eq.f32.partialorder %v2272, 8.507059e+37
      %v2274 = vand.u32 %v1485, 2147483648
      %v2275 = vor.u32 1.1754944e-38, %v2274
      %v2276 = vsel %vm2273, %v2275, %v2271
      %v2277 = vmul.f32 1.0, %v2276
      %v2278 = vrcp.pop %v1486
      %v2279 = vmul.f32 %v1486, %v2278
      %v2280 = vsub.f32 1.0, %v2279
      %v2281 = vmul.f32 %v2278, %v2280
      %v2282 = vadd.f32 %v2278, %v2281
      %vm2283 = vweird.f32 %v1486
      %vm2284 = vweird.f32 %v2278
      %vm2285 = vmor %vm2283, %vm2284
      %v2286 = vsel %vm2285, %v2278, %v2282
      %v2287 = vand.u32 2147483647, %v1486
      %vm2288 = vcmp.eq.f32.partialorder %v2287, 8.507059e+37
      %v2289 = vand.u32 %v1486, 2147483648
      %v2290 = vor.u32 1.1754944e-38, %v2289
      %v2291 = vsel %vm2288, %v2290, %v2286
      %v2292 = vmul.f32 1.0, %v2291
      %v2293 = vrcp.pop %v1487
      %v2294 = vmul.f32 %v1487, %v2293
      %v2295 = vsub.f32 1.0, %v2294
      %v2296 = vmul.f32 %v2293, %v2295
      %v2297 = vadd.f32 %v2293, %v2296
      %vm2298 = vweird.f32 %v1487
      %vm2299 = vweird.f32 %v2293
      %vm2300 = vmor %vm2298, %vm2299
      %v2301 = vsel %vm2300, %v2293, %v2297
      %v2302 = vand.u32 2147483647, %v1487
      %vm2303 = vcmp.eq.f32.partialorder %v2302, 8.507059e+37
      %v2304 = vand.u32 %v1487, 2147483648
      %v2305 = vor.u32 1.1754944e-38, %v2304
      %v2306 = vsel %vm2303, %v2305, %v2301
      %v2307 = vmul.f32 1.0, %v2306
      %v2308 = vrcp.pop %v1488
      %v2309 = vmul.f32 %v1488, %v2308
      %v2310 = vsub.f32 1.0, %v2309
      %v2311 = vmul.f32 %v2308, %v2310
      %v2312 = vadd.f32 %v2308, %v2311
      %vm2313 = vweird.f32 %v1488
      %vm2314 = vweird.f32 %v2308
      %vm2315 = vmor %vm2313, %vm2314
      %v2316 = vsel %vm2315, %v2308, %v2312
      %v2317 = vand.u32 2147483647, %v1488
      %vm2318 = vcmp.eq.f32.partialorder %v2317, 8.507059e+37
      %v2319 = vand.u32 %v1488, 2147483648
      %v2320 = vor.u32 1.1754944e-38, %v2319
      %v2321 = vsel %vm2318, %v2320, %v2316
      %v2322 = vmul.f32 1.0, %v2321
      %v2323 = vrcp.pop %v1489
      %v2324 = vmul.f32 %v1489, %v2323
      %v2325 = vsub.f32 1.0, %v2324
      %v2326 = vmul.f32 %v2323, %v2325
      %v2327 = vadd.f32 %v2323, %v2326
      %vm2328 = vweird.f32 %v1489
      %vm2329 = vweird.f32 %v2323
      %vm2330 = vmor %vm2328, %vm2329
      %v2331 = vsel %vm2330, %v2323, %v2327
      %v2332 = vand.u32 2147483647, %v1489
      %vm2333 = vcmp.eq.f32.partialorder %v2332, 8.507059e+37
      %v2334 = vand.u32 %v1489, 2147483648
      %v2335 = vor.u32 1.1754944e-38, %v2334
      %v2336 = vsel %vm2333, %v2335, %v2331
      %v2337 = vmul.f32 1.0, %v2336
      %v2338 = vrcp.pop %v1490
      %v2339 = vmul.f32 %v1490, %v2338
      %v2340 = vsub.f32 1.0, %v2339
      %v2341 = vmul.f32 %v2338, %v2340
      %v2342 = vadd.f32 %v2338, %v2341
      %vm2343 = vweird.f32 %v1490
      %vm2344 = vweird.f32 %v2338
      %vm2345 = vmor %vm2343, %vm2344
      %v2346 = vsel %vm2345, %v2338, %v2342
      %v2347 = vand.u32 2147483647, %v1490
      %vm2348 = vcmp.eq.f32.partialorder %v2347, 8.507059e+37
      %v2349 = vand.u32 %v1490, 2147483648
      %v2350 = vor.u32 1.1754944e-38, %v2349
      %v2351 = vsel %vm2348, %v2350, %v2346
      %v2352 = vmul.f32 1.0, %v2351
      %v2353 = vrcp.pop %v1491
      %v2354 = vmul.f32 %v1491, %v2353
      %v2355 = vsub.f32 1.0, %v2354
      %v2356 = vmul.f32 %v2353, %v2355
      %v2357 = vadd.f32 %v2353, %v2356
      %vm2358 = vweird.f32 %v1491
      %vm2359 = vweird.f32 %v2353
      %vm2360 = vmor %vm2358, %vm2359
      %v2361 = vsel %vm2360, %v2353, %v2357
      %v2362 = vand.u32 2147483647, %v1491
      %vm2363 = vcmp.eq.f32.partialorder %v2362, 8.507059e+37
      %v2364 = vand.u32 %v1491, 2147483648
      %v2365 = vor.u32 1.1754944e-38, %v2364
      %v2366 = vsel %vm2363, %v2365, %v2361
      %v2367 = vmul.f32 1.0, %v2366
      %v2368 = vrcp.pop %v1492
      %v2369 = vmul.f32 %v1492, %v2368
      %v2370 = vsub.f32 1.0, %v2369
      %v2371 = vmul.f32 %v2368, %v2370
      %v2372 = vadd.f32 %v2368, %v2371
      %vm2373 = vweird.f32 %v1492
      %vm2374 = vweird.f32 %v2368
      %vm2375 = vmor %vm2373, %vm2374
      %v2376 = vsel %vm2375, %v2368, %v2372
      %v2377 = vand.u32 2147483647, %v1492
      %vm2378 = vcmp.eq.f32.partialorder %v2377, 8.507059e+37
      %v2379 = vand.u32 %v1492, 2147483648
      %v2380 = vor.u32 1.1754944e-38, %v2379
      %v2381 = vsel %vm2378, %v2380, %v2376
      %v2382 = vmul.f32 1.0, %v2381
      %v2383 = vrcp.pop %v1493
      %v2384 = vmul.f32 %v1493, %v2383
      %v2385 = vsub.f32 1.0, %v2384
      %v2386 = vmul.f32 %v2383, %v2385
      %v2387 = vadd.f32 %v2383, %v2386
      %vm2388 = vweird.f32 %v1493
      %vm2389 = vweird.f32 %v2383
      %vm2390 = vmor %vm2388, %vm2389
      %v2391 = vsel %vm2390, %v2383, %v2387
      %v2392 = vand.u32 2147483647, %v1493
      %vm2393 = vcmp.eq.f32.partialorder %v2392, 8.507059e+37
      %v2394 = vand.u32 %v1493, 2147483648
      %v2395 = vor.u32 1.1754944e-38, %v2394
      %v2396 = vsel %vm2393, %v2395, %v2391
      %v2397 = vmul.f32 1.0, %v2396
      %v2398 = vrcp.pop %v1494
      %v2399 = vmul.f32 %v1494, %v2398
      %v2400 = vsub.f32 1.0, %v2399
      %v2401 = vmul.f32 %v2398, %v2400
      %v2402 = vadd.f32 %v2398, %v2401
      %vm2403 = vweird.f32 %v1494
      %vm2404 = vweird.f32 %v2398
      %vm2405 = vmor %vm2403, %vm2404
      %v2406 = vsel %vm2405, %v2398, %v2402
      %v2407 = vand.u32 2147483647, %v1494
      %vm2408 = vcmp.eq.f32.partialorder %v2407, 8.507059e+37
      %v2409 = vand.u32 %v1494, 2147483648
      %v2410 = vor.u32 1.1754944e-38, %v2409
      %v2411 = vsel %vm2408, %v2410, %v2406
      %v2412 = vmul.f32 1.0, %v2411
      %v2413 = vrcp.pop %v1495
      %v2414 = vmul.f32 %v1495, %v2413
      %v2415 = vsub.f32 1.0, %v2414
      %v2416 = vmul.f32 %v2413, %v2415
      %v2417 = vadd.f32 %v2413, %v2416
      %vm2418 = vweird.f32 %v1495
      %vm2419 = vweird.f32 %v2413
      %vm2420 = vmor %vm2418, %vm2419
      %v2421 = vsel %vm2420, %v2413, %v2417
      %v2422 = vand.u32 2147483647, %v1495
      %vm2423 = vcmp.eq.f32.partialorder %v2422, 8.507059e+37
      %v2424 = vand.u32 %v1495, 2147483648
      %v2425 = vor.u32 1.1754944e-38, %v2424
      %v2426 = vsel %vm2423, %v2425, %v2421
      %v2427 = vmul.f32 1.0, %v2426
      %v2428 = vrcp.pop %v1496
      %v2429 = vmul.f32 %v1496, %v2428
      %v2430 = vsub.f32 1.0, %v2429
      %v2431 = vmul.f32 %v2428, %v2430
      %v2432 = vadd.f32 %v2428, %v2431
      %vm2433 = vweird.f32 %v1496
      %vm2434 = vweird.f32 %v2428
      %vm2435 = vmor %vm2433, %vm2434
      %v2436 = vsel %vm2435, %v2428, %v2432
      %v2437 = vand.u32 2147483647, %v1496
      %vm2438 = vcmp.eq.f32.partialorder %v2437, 8.507059e+37
      %v2439 = vand.u32 %v1496, 2147483648
      %v2440 = vor.u32 1.1754944e-38, %v2439
      %v2441 = vsel %vm2438, %v2440, %v2436
      %v2442 = vmul.f32 1.0, %v2441
      %v2443 = vrcp.pop %v1497
      %v2444 = vmul.f32 %v1497, %v2443
      %v2445 = vsub.f32 1.0, %v2444
      %v2446 = vmul.f32 %v2443, %v2445
      %v2447 = vadd.f32 %v2443, %v2446
      %vm2448 = vweird.f32 %v1497
      %vm2449 = vweird.f32 %v2443
      %vm2450 = vmor %vm2448, %vm2449
      %v2451 = vsel %vm2450, %v2443, %v2447
      %v2452 = vand.u32 2147483647, %v1497
      %vm2453 = vcmp.eq.f32.partialorder %v2452, 8.507059e+37
      %v2454 = vand.u32 %v1497, 2147483648
      %v2455 = vor.u32 1.1754944e-38, %v2454
      %v2456 = vsel %vm2453, %v2455, %v2451
      %v2457 = vmul.f32 1.0, %v2456
      %v2458 = vsub.f32 %v854, 0.5
      %v2459 = vsub.f32 %v855, 0.5
      %v2460 = vsub.f32 %v856, 0.5
      %v2461 = vsub.f32 %v857, 0.5
      %v2462 = vsub.f32 %v858, 0.5
      %v2463 = vsub.f32 %v859, 0.5
      %v2464 = vsub.f32 %v860, 0.5
      %v2465 = vsub.f32 %v861, 0.5
      %v2466 = vsub.f32 %v862, 0.5
      %v2467 = vsub.f32 %v863, 0.5
      %v2468 = vsub.f32 %v864, 0.5
      %v2469 = vsub.f32 %v865, 0.5
      %v2470 = vsub.f32 %v866, 0.5
      %v2471 = vsub.f32 %v867, 0.5
      %v2472 = vsub.f32 %v868, 0.5
      %v2473 = vsub.f32 %v869, 0.5
      %v2474 = vsub.f32 %v870, 0.5
      %v2475 = vsub.f32 %v871, 0.5
      %v2476 = vsub.f32 %v872, 0.5
      %v2477 = vsub.f32 %v873, 0.5
      %v2478 = vsub.f32 %v874, 0.5
      %v2479 = vsub.f32 %v875, 0.5
      %v2480 = vsub.f32 %v876, 0.5
      %v2481 = vsub.f32 %v877, 0.5
      %v2482 = vsub.f32 %v878, 0.5
      %v2483 = vsub.f32 %v879, 0.5
      %v2484 = vsub.f32 %v880, 0.5
      %v2485 = vsub.f32 %v881, 0.5
      %v2486 = vsub.f32 %v882, 0.5
      %v2487 = vsub.f32 %v883, 0.5
      %v2488 = vsub.f32 %v884, 0.5
      %v2489 = vsub.f32 %v885, 0.5
      %v2490 = vsub.f32 %v886, 0.5
      %v2491 = vsub.f32 %v887, 0.5
      %v2492 = vsub.f32 %v888, 0.5
      %v2493 = vsub.f32 %v889, 0.5
      %v2494 = vsub.f32 %v890, 0.5
      %v2495 = vsub.f32 %v891, 0.5
      %v2496 = vsub.f32 %v892, 0.5
      %v2497 = vsub.f32 %v893, 0.5
      %v2498 = vsub.f32 %v894, 0.5
      %v2499 = vsub.f32 %v895, 0.5
      %v2500 = vsub.f32 %v896, 0.5
      %v2501 = vsub.f32 %v897, 0.5
      %v2502 = vsub.f32 %v898, 0.5
      %v2503 = vsub.f32 %v899, 0.5
      %v2504 = vsub.f32 %v900, 0.5
      %v2505 = vsub.f32 %v901, 0.5
      %v2506 = vsub.f32 %v902, 0.5
      %v2507 = vsub.f32 %v903, 0.5
      %v2508 = vsub.f32 %v904, 0.5
      %v2509 = vsub.f32 %v905, 0.5
      %v2510 = vsub.f32 %v906, 0.5
      %v2511 = vsub.f32 %v907, 0.5
      %v2512 = vsub.f32 %v908, 0.5
      %v2513 = vsub.f32 %v909, 0.5
      %v2514 = vsub.f32 %v910, 0.5
      %v2515 = vsub.f32 %v911, 0.5
      %v2516 = vsub.f32 %v912, 0.5
      %v2517 = vsub.f32 %v913, 0.5
      %v2518 = vsub.f32 %v914, 0.5
      %v2519 = vsub.f32 %v915, 0.5
      %v2520 = vsub.f32 %v916, 0.5
      %v2521 = vsub.f32 %v917, 0.5
      %v2522 = vmul.f32 %v982, %v2458
      %v2523 = vmul.f32 %v983, %v2459
      %v2524 = vmul.f32 %v984, %v2460
      %v2525 = vmul.f32 %v985, %v2461
      %v2526 = vmul.f32 %v986, %v2462
      %v2527 = vmul.f32 %v987, %v2463
      %v2528 = vmul.f32 %v988, %v2464
      %v2529 = vmul.f32 %v989, %v2465
      %v2530 = vmul.f32 %v990, %v2466
      %v2531 = vmul.f32 %v991, %v2467
      %v2532 = vmul.f32 %v992, %v2468
      %v2533 = vmul.f32 %v993, %v2469
      %v2534 = vmul.f32 %v994, %v2470
      %v2535 = vmul.f32 %v995, %v2471
      %v2536 = vmul.f32 %v996, %v2472
      %v2537 = vmul.f32 %v997, %v2473
      %v2538 = vmul.f32 %v998, %v2474
      %v2539 = vmul.f32 %v999, %v2475
      %v2540 = vmul.f32 %v1000, %v2476
      %v2541 = vmul.f32 %v1001, %v2477
      %v2542 = vmul.f32 %v1002, %v2478
      %v2543 = vmul.f32 %v1003, %v2479
      %v2544 = vmul.f32 %v1004, %v2480
      %v2545 = vmul.f32 %v1005, %v2481
      %v2546 = vmul.f32 %v1006, %v2482
      %v2547 = vmul.f32 %v1007, %v2483
      %v2548 = vmul.f32 %v1008, %v2484
      %v2549 = vmul.f32 %v1009, %v2485
      %v2550 = vmul.f32 %v1010, %v2486
      %v2551 = vmul.f32 %v1011, %v2487
      %v2552 = vmul.f32 %v1012, %v2488
      %v2553 = vmul.f32 %v1013, %v2489
      %v2554 = vmul.f32 %v1014, %v2490
      %v2555 = vmul.f32 %v1015, %v2491
      %v2556 = vmul.f32 %v1016, %v2492
      %v2557 = vmul.f32 %v1017, %v2493
      %v2558 = vmul.f32 %v1018, %v2494
      %v2559 = vmul.f32 %v1019, %v2495
      %v2560 = vmul.f32 %v1020, %v2496
      %v2561 = vmul.f32 %v1021, %v2497
      %v2562 = vmul.f32 %v1022, %v2498
      %v2563 = vmul.f32 %v1023, %v2499
      %v2564 = vmul.f32 %v1024, %v2500
      %v2565 = vmul.f32 %v1025, %v2501
      %v2566 = vmul.f32 %v1026, %v2502
      %v2567 = vmul.f32 %v1027, %v2503
      %v2568 = vmul.f32 %v1028, %v2504
      %v2569 = vmul.f32 %v1029, %v2505
      %v2570 = vmul.f32 %v1030, %v2506
      %v2571 = vmul.f32 %v1031, %v2507
      %v2572 = vmul.f32 %v1032, %v2508
      %v2573 = vmul.f32 %v1033, %v2509
      %v2574 = vmul.f32 %v1034, %v2510
      %v2575 = vmul.f32 %v1035, %v2511
      %v2576 = vmul.f32 %v1036, %v2512
      %v2577 = vmul.f32 %v1037, %v2513
      %v2578 = vmul.f32 %v1038, %v2514
      %v2579 = vmul.f32 %v1039, %v2515
      %v2580 = vmul.f32 %v1040, %v2516
      %v2581 = vmul.f32 %v1041, %v2517
      %v2582 = vmul.f32 %v1042, %v2518
      %v2583 = vmul.f32 %v1043, %v2519
      %v2584 = vmul.f32 %v1044, %v2520
      %v2585 = vmul.f32 %v1045, %v2521
      %v2586 = vmul.f32 %v2522, %v1176
      %v2587 = vmul.f32 %v2523, %v1176
      %v2588 = vmul.f32 %v2524, %v1176
      %v2589 = vmul.f32 %v2525, %v1176
      %v2590 = vmul.f32 %v2526, %v1176
      %v2591 = vmul.f32 %v2527, %v1176
      %v2592 = vmul.f32 %v2528, %v1176
      %v2593 = vmul.f32 %v2529, %v1176
      %v2594 = vmul.f32 %v2530, %v1176
      %v2595 = vmul.f32 %v2531, %v1176
      %v2596 = vmul.f32 %v2532, %v1176
      %v2597 = vmul.f32 %v2533, %v1176
      %v2598 = vmul.f32 %v2534, %v1176
      %v2599 = vmul.f32 %v2535, %v1176
      %v2600 = vmul.f32 %v2536, %v1176
      %v2601 = vmul.f32 %v2537, %v1176
      %v2602 = vmul.f32 %v2538, %v1176
      %v2603 = vmul.f32 %v2539, %v1176
      %v2604 = vmul.f32 %v2540, %v1176
      %v2605 = vmul.f32 %v2541, %v1176
      %v2606 = vmul.f32 %v2542, %v1176
      %v2607 = vmul.f32 %v2543, %v1176
      %v2608 = vmul.f32 %v2544, %v1176
      %v2609 = vmul.f32 %v2545, %v1176
      %v2610 = vmul.f32 %v2546, %v1176
      %v2611 = vmul.f32 %v2547, %v1176
      %v2612 = vmul.f32 %v2548, %v1176
      %v2613 = vmul.f32 %v2549, %v1176
      %v2614 = vmul.f32 %v2550, %v1176
      %v2615 = vmul.f32 %v2551, %v1176
      %v2616 = vmul.f32 %v2552, %v1176
      %v2617 = vmul.f32 %v2553, %v1176
      %v2618 = vmul.f32 %v2554, %v1176
      %v2619 = vmul.f32 %v2555, %v1176
      %v2620 = vmul.f32 %v2556, %v1176
      %v2621 = vmul.f32 %v2557, %v1176
      %v2622 = vmul.f32 %v2558, %v1176
      %v2623 = vmul.f32 %v2559, %v1176
      %v2624 = vmul.f32 %v2560, %v1176
      %v2625 = vmul.f32 %v2561, %v1176
      %v2626 = vmul.f32 %v2562, %v1176
      %v2627 = vmul.f32 %v2563, %v1176
      %v2628 = vmul.f32 %v2564, %v1176
      %v2629 = vmul.f32 %v2565, %v1176
      %v2630 = vmul.f32 %v2566, %v1176
      %v2631 = vmul.f32 %v2567, %v1176
      %v2632 = vmul.f32 %v2568, %v1176
      %v2633 = vmul.f32 %v2569, %v1176
      %v2634 = vmul.f32 %v2570, %v1176
      %v2635 = vmul.f32 %v2571, %v1176
      %v2636 = vmul.f32 %v2572, %v1176
      %v2637 = vmul.f32 %v2573, %v1176
      %v2638 = vmul.f32 %v2574, %v1176
      %v2639 = vmul.f32 %v2575, %v1176
      %v2640 = vmul.f32 %v2576, %v1176
      %v2641 = vmul.f32 %v2577, %v1176
      %v2642 = vmul.f32 %v2578, %v1176
      %v2643 = vmul.f32 %v2579, %v1176
      %v2644 = vmul.f32 %v2580, %v1176
      %v2645 = vmul.f32 %v2581, %v1176
      %v2646 = vmul.f32 %v2582, %v1176
      %v2647 = vmul.f32 %v2583, %v1176
      %v2648 = vmul.f32 %v2584, %v1176
      %v2649 = vmul.f32 %v2585, %v1176
      %v2650 = vxor.u32 %v2586, 2147483648
      %v2651 = vxor.u32 %v2587, 2147483648
      %v2652 = vxor.u32 %v2588, 2147483648
      %v2653 = vxor.u32 %v2589, 2147483648
      %v2654 = vxor.u32 %v2590, 2147483648
      %v2655 = vxor.u32 %v2591, 2147483648
      %v2656 = vxor.u32 %v2592, 2147483648
      %v2657 = vxor.u32 %v2593, 2147483648
      %v2658 = vxor.u32 %v2594, 2147483648
      %v2659 = vxor.u32 %v2595, 2147483648
      %v2660 = vxor.u32 %v2596, 2147483648
      %v2661 = vxor.u32 %v2597, 2147483648
      %v2662 = vxor.u32 %v2598, 2147483648
      %v2663 = vxor.u32 %v2599, 2147483648
      %v2664 = vxor.u32 %v2600, 2147483648
      %v2665 = vxor.u32 %v2601, 2147483648
      %v2666 = vxor.u32 %v2602, 2147483648
      %v2667 = vxor.u32 %v2603, 2147483648
      %v2668 = vxor.u32 %v2604, 2147483648
      %v2669 = vxor.u32 %v2605, 2147483648
      %v2670 = vxor.u32 %v2606, 2147483648
      %v2671 = vxor.u32 %v2607, 2147483648
      %v2672 = vxor.u32 %v2608, 2147483648
      %v2673 = vxor.u32 %v2609, 2147483648
      %v2674 = vxor.u32 %v2610, 2147483648
      %v2675 = vxor.u32 %v2611, 2147483648
      %v2676 = vxor.u32 %v2612, 2147483648
      %v2677 = vxor.u32 %v2613, 2147483648
      %v2678 = vxor.u32 %v2614, 2147483648
      %v2679 = vxor.u32 %v2615, 2147483648
      %v2680 = vxor.u32 %v2616, 2147483648
      %v2681 = vxor.u32 %v2617, 2147483648
      %v2682 = vxor.u32 %v2618, 2147483648
      %v2683 = vxor.u32 %v2619, 2147483648
      %v2684 = vxor.u32 %v2620, 2147483648
      %v2685 = vxor.u32 %v2621, 2147483648
      %v2686 = vxor.u32 %v2622, 2147483648
      %v2687 = vxor.u32 %v2623, 2147483648
      %v2688 = vxor.u32 %v2624, 2147483648
      %v2689 = vxor.u32 %v2625, 2147483648
      %v2690 = vxor.u32 %v2626, 2147483648
      %v2691 = vxor.u32 %v2627, 2147483648
      %v2692 = vxor.u32 %v2628, 2147483648
      %v2693 = vxor.u32 %v2629, 2147483648
      %v2694 = vxor.u32 %v2630, 2147483648
      %v2695 = vxor.u32 %v2631, 2147483648
      %v2696 = vxor.u32 %v2632, 2147483648
      %v2697 = vxor.u32 %v2633, 2147483648
      %v2698 = vxor.u32 %v2634, 2147483648
      %v2699 = vxor.u32 %v2635, 2147483648
      %v2700 = vxor.u32 %v2636, 2147483648
      %v2701 = vxor.u32 %v2637, 2147483648
      %v2702 = vxor.u32 %v2638, 2147483648
      %v2703 = vxor.u32 %v2639, 2147483648
      %v2704 = vxor.u32 %v2640, 2147483648
      %v2705 = vxor.u32 %v2641, 2147483648
      %v2706 = vxor.u32 %v2642, 2147483648
      %v2707 = vxor.u32 %v2643, 2147483648
      %v2708 = vxor.u32 %v2644, 2147483648
      %v2709 = vxor.u32 %v2645, 2147483648
      %v2710 = vxor.u32 %v2646, 2147483648
      %v2711 = vxor.u32 %v2647, 2147483648
      %v2712 = vxor.u32 %v2648, 2147483648
      %v2713 = vxor.u32 %v2649, 2147483648
      %v2714 = vmul.f32 %v2650, 1.442695
      %v2715 = vpow.pop %v2714
      %v2716 = vmul.f32 %v2651, 1.442695
      %v2717 = vpow.pop %v2716
      %v2718 = vmul.f32 %v2652, 1.442695
      %v2719 = vpow.pop %v2718
      %v2720 = vmul.f32 %v2653, 1.442695
      %v2721 = vpow.pop %v2720
      %v2722 = vmul.f32 %v2654, 1.442695
      %v2723 = vpow.pop %v2722
      %v2724 = vmul.f32 %v2655, 1.442695
      %v2725 = vpow.pop %v2724
      %v2726 = vmul.f32 %v2656, 1.442695
      %v2727 = vpow.pop %v2726
      %v2728 = vmul.f32 %v2657, 1.442695
      %v2729 = vpow.pop %v2728
      %v2730 = vmul.f32 %v2658, 1.442695
      %v2731 = vpow.pop %v2730
      %v2732 = vmul.f32 %v2659, 1.442695
      %v2733 = vpow.pop %v2732
      %v2734 = vmul.f32 %v2660, 1.442695
      %v2735 = vpow.pop %v2734
      %v2736 = vmul.f32 %v2661, 1.442695
      %v2737 = vpow.pop %v2736
      %v2738 = vmul.f32 %v2662, 1.442695
      %v2739 = vpow.pop %v2738
      %v2740 = vmul.f32 %v2663, 1.442695
      %v2741 = vpow.pop %v2740
      %v2742 = vmul.f32 %v2664, 1.442695
      %v2743 = vpow.pop %v2742
      %v2744 = vmul.f32 %v2665, 1.442695
      %v2745 = vpow.pop %v2744
      %v2746 = vmul.f32 %v2666, 1.442695
      %v2747 = vpow.pop %v2746
      %v2748 = vmul.f32 %v2667, 1.442695
      %v2749 = vpow.pop %v2748
      %v2750 = vmul.f32 %v2668, 1.442695
      %v2751 = vpow.pop %v2750
      %v2752 = vmul.f32 %v2669, 1.442695
      %v2753 = vpow.pop %v2752
      %v2754 = vmul.f32 %v2670, 1.442695
      %v2755 = vpow.pop %v2754
      %v2756 = vmul.f32 %v2671, 1.442695
      %v2757 = vpow.pop %v2756
      %v2758 = vmul.f32 %v2672, 1.442695
      %v2759 = vpow.pop %v2758
      %v2760 = vmul.f32 %v2673, 1.442695
      %v2761 = vpow.pop %v2760
      %v2762 = vmul.f32 %v2674, 1.442695
      %v2763 = vpow.pop %v2762
      %v2764 = vmul.f32 %v2675, 1.442695
      %v2765 = vpow.pop %v2764
      %v2766 = vmul.f32 %v2676, 1.442695
      %v2767 = vpow.pop %v2766
      %v2768 = vmul.f32 %v2677, 1.442695
      %v2769 = vpow.pop %v2768
      %v2770 = vmul.f32 %v2678, 1.442695
      %v2771 = vpow.pop %v2770
      %v2772 = vmul.f32 %v2679, 1.442695
      %v2773 = vpow.pop %v2772
      %v2774 = vmul.f32 %v2680, 1.442695
      %v2775 = vpow.pop %v2774
      %v2776 = vmul.f32 %v2681, 1.442695
      %v2777 = vpow.pop %v2776
      %v2778 = vmul.f32 %v2682, 1.442695
      %v2779 = vpow.pop %v2778
      %v2780 = vmul.f32 %v2683, 1.442695
      %v2781 = vpow.pop %v2780
      %v2782 = vmul.f32 %v2684, 1.442695
      %v2783 = vpow.pop %v2782
      %v2784 = vmul.f32 %v2685, 1.442695
      %v2785 = vpow.pop %v2784
      %v2786 = vmul.f32 %v2686, 1.442695
      %v2787 = vpow.pop %v2786
      %v2788 = vmul.f32 %v2687, 1.442695
      %v2789 = vpow.pop %v2788
      %v2790 = vmul.f32 %v2688, 1.442695
      %v2791 = vpow.pop %v2790
      %v2792 = vmul.f32 %v2689, 1.442695
      %v2793 = vpow.pop %v2792
      %v2794 = vmul.f32 %v2690, 1.442695
      %v2795 = vpow.pop %v2794
      %v2796 = vmul.f32 %v2691, 1.442695
      %v2797 = vpow.pop %v2796
      %v2798 = vmul.f32 %v2692, 1.442695
      %v2799 = vpow.pop %v2798
      %v2800 = vmul.f32 %v2693, 1.442695
      %v2801 = vpow.pop %v2800
      %v2802 = vmul.f32 %v2694, 1.442695
      %v2803 = vpow.pop %v2802
      %v2804 = vmul.f32 %v2695, 1.442695
      %v2805 = vpow.pop %v2804
      %v2806 = vmul.f32 %v2696, 1.442695
      %v2807 = vpow.pop %v2806
      %v2808 = vmul.f32 %v2697, 1.442695
      %v2809 = vpow.pop %v2808
      %v2810 = vmul.f32 %v2698, 1.442695
      %v2811 = vpow.pop %v2810
      %v2812 = vmul.f32 %v2699, 1.442695
      %v2813 = vpow.pop %v2812
      %v2814 = vmul.f32 %v2700, 1.442695
      %v2815 = vpow.pop %v2814
      %v2816 = vmul.f32 %v2701, 1.442695
      %v2817 = vpow.pop %v2816
      %v2818 = vmul.f32 %v2702, 1.442695
      %v2819 = vpow.pop %v2818
      %v2820 = vmul.f32 %v2703, 1.442695
      %v2821 = vpow.pop %v2820
      %v2822 = vmul.f32 %v2704, 1.442695
      %v2823 = vpow.pop %v2822
      %v2824 = vmul.f32 %v2705, 1.442695
      %v2825 = vpow.pop %v2824
      %v2826 = vmul.f32 %v2706, 1.442695
      %v2827 = vpow.pop %v2826
      %v2828 = vmul.f32 %v2707, 1.442695
      %v2829 = vpow.pop %v2828
      %v2830 = vmul.f32 %v2708, 1.442695
      %v2831 = vpow.pop %v2830
      %v2832 = vmul.f32 %v2709, 1.442695
      %v2833 = vpow.pop %v2832
      %v2834 = vmul.f32 %v2710, 1.442695
      %v2835 = vpow.pop %v2834
      %v2836 = vmul.f32 %v2711, 1.442695
      %v2837 = vpow.pop %v2836
      %v2838 = vmul.f32 %v2712, 1.442695
      %v2839 = vpow.pop %v2838
      %v2840 = vmul.f32 %v2713, 1.442695
      %v2841 = vpow.pop %v2840
      %v2842 = vadd.f32 %v2715, 1.0
      %v2843 = vadd.f32 %v2717, 1.0
      %v2844 = vadd.f32 %v2719, 1.0
      %v2845 = vadd.f32 %v2721, 1.0
      %v2846 = vadd.f32 %v2723, 1.0
      %v2847 = vadd.f32 %v2725, 1.0
      %v2848 = vadd.f32 %v2727, 1.0
      %v2849 = vadd.f32 %v2729, 1.0
      %v2850 = vadd.f32 %v2731, 1.0
      %v2851 = vadd.f32 %v2733, 1.0
      %v2852 = vadd.f32 %v2735, 1.0
      %v2853 = vadd.f32 %v2737, 1.0
      %v2854 = vadd.f32 %v2739, 1.0
      %v2855 = vadd.f32 %v2741, 1.0
      %v2856 = vadd.f32 %v2743, 1.0
      %v2857 = vadd.f32 %v2745, 1.0
      %v2858 = vadd.f32 %v2747, 1.0
      %v2859 = vadd.f32 %v2749, 1.0
      %v2860 = vadd.f32 %v2751, 1.0
      %v2861 = vadd.f32 %v2753, 1.0
      %v2862 = vadd.f32 %v2755, 1.0
      %v2863 = vadd.f32 %v2757, 1.0
      %v2864 = vadd.f32 %v2759, 1.0
      %v2865 = vadd.f32 %v2761, 1.0
      %v2866 = vadd.f32 %v2763, 1.0
      %v2867 = vadd.f32 %v2765, 1.0
      %v2868 = vadd.f32 %v2767, 1.0
      %v2869 = vadd.f32 %v2769, 1.0
      %v2870 = vadd.f32 %v2771, 1.0
      %v2871 = vadd.f32 %v2773, 1.0
      %v2872 = vadd.f32 %v2775, 1.0
      %v2873 = vadd.f32 %v2777, 1.0
      %v2874 = vadd.f32 %v2779, 1.0
      %v2875 = vadd.f32 %v2781, 1.0
      %v2876 = vadd.f32 %v2783, 1.0
      %v2877 = vadd.f32 %v2785, 1.0
      %v2878 = vadd.f32 %v2787, 1.0
      %v2879 = vadd.f32 %v2789, 1.0
      %v2880 = vadd.f32 %v2791, 1.0
      %v2881 = vadd.f32 %v2793, 1.0
      %v2882 = vadd.f32 %v2795, 1.0
      %v2883 = vadd.f32 %v2797, 1.0
      %v2884 = vadd.f32 %v2799, 1.0
      %v2885 = vadd.f32 %v2801, 1.0
      %v2886 = vadd.f32 %v2803, 1.0
      %v2887 = vadd.f32 %v2805, 1.0
      %v2888 = vadd.f32 %v2807, 1.0
      %v2889 = vadd.f32 %v2809, 1.0
      %v2890 = vadd.f32 %v2811, 1.0
      %v2891 = vadd.f32 %v2813, 1.0
      %v2892 = vadd.f32 %v2815, 1.0
      %v2893 = vadd.f32 %v2817, 1.0
      %v2894 = vadd.f32 %v2819, 1.0
      %v2895 = vadd.f32 %v2821, 1.0
      %v2896 = vadd.f32 %v2823, 1.0
      %v2897 = vadd.f32 %v2825, 1.0
      %v2898 = vadd.f32 %v2827, 1.0
      %v2899 = vadd.f32 %v2829, 1.0
      %v2900 = vadd.f32 %v2831, 1.0
      %v2901 = vadd.f32 %v2833, 1.0
      %v2902 = vadd.f32 %v2835, 1.0
      %v2903 = vadd.f32 %v2837, 1.0
      %v2904 = vadd.f32 %v2839, 1.0
      %v2905 = vadd.f32 %v2841, 1.0
      %v2906 = vrcp.pop %v2842
      %v2907 = vmul.f32 %v2842, %v2906
      %v2908 = vsub.f32 1.0, %v2907
      %v2909 = vmul.f32 %v2906, %v2908
      %v2910 = vadd.f32 %v2906, %v2909
      %vm2911 = vweird.f32 %v2842
      %vm2912 = vweird.f32 %v2906
      %vm2913 = vmor %vm2911, %vm2912
      %v2914 = vsel %vm2913, %v2906, %v2910
      %v2915 = vand.u32 2147483647, %v2842
      %vm2916 = vcmp.eq.f32.partialorder %v2915, 8.507059e+37
      %v2917 = vand.u32 %v2842, 2147483648
      %v2918 = vor.u32 1.1754944e-38, %v2917
      %v2919 = vsel %vm2916, %v2918, %v2914
      %v2920 = vmul.f32 1.0, %v2919
      %v2921 = vrcp.pop %v2843
      %v2922 = vmul.f32 %v2843, %v2921
      %v2923 = vsub.f32 1.0, %v2922
      %v2924 = vmul.f32 %v2921, %v2923
      %v2925 = vadd.f32 %v2921, %v2924
      %vm2926 = vweird.f32 %v2843
      %vm2927 = vweird.f32 %v2921
      %vm2928 = vmor %vm2926, %vm2927
      %v2929 = vsel %vm2928, %v2921, %v2925
      %v2930 = vand.u32 2147483647, %v2843
      %vm2931 = vcmp.eq.f32.partialorder %v2930, 8.507059e+37
      %v2932 = vand.u32 %v2843, 2147483648
      %v2933 = vor.u32 1.1754944e-38, %v2932
      %v2934 = vsel %vm2931, %v2933, %v2929
      %v2935 = vmul.f32 1.0, %v2934
      %v2936 = vrcp.pop %v2844
      %v2937 = vmul.f32 %v2844, %v2936
      %v2938 = vsub.f32 1.0, %v2937
      %v2939 = vmul.f32 %v2936, %v2938
      %v2940 = vadd.f32 %v2936, %v2939
      %vm2941 = vweird.f32 %v2844
      %vm2942 = vweird.f32 %v2936
      %vm2943 = vmor %vm2941, %vm2942
      %v2944 = vsel %vm2943, %v2936, %v2940
      %v2945 = vand.u32 2147483647, %v2844
      %vm2946 = vcmp.eq.f32.partialorder %v2945, 8.507059e+37
      %v2947 = vand.u32 %v2844, 2147483648
      %v2948 = vor.u32 1.1754944e-38, %v2947
      %v2949 = vsel %vm2946, %v2948, %v2944
      %v2950 = vmul.f32 1.0, %v2949
      %v2951 = vrcp.pop %v2845
      %v2952 = vmul.f32 %v2845, %v2951
      %v2953 = vsub.f32 1.0, %v2952
      %v2954 = vmul.f32 %v2951, %v2953
      %v2955 = vadd.f32 %v2951, %v2954
      %vm2956 = vweird.f32 %v2845
      %vm2957 = vweird.f32 %v2951
      %vm2958 = vmor %vm2956, %vm2957
      %v2959 = vsel %vm2958, %v2951, %v2955
      %v2960 = vand.u32 2147483647, %v2845
      %vm2961 = vcmp.eq.f32.partialorder %v2960, 8.507059e+37
      %v2962 = vand.u32 %v2845, 2147483648
      %v2963 = vor.u32 1.1754944e-38, %v2962
      %v2964 = vsel %vm2961, %v2963, %v2959
      %v2965 = vmul.f32 1.0, %v2964
      %v2966 = vrcp.pop %v2846
      %v2967 = vmul.f32 %v2846, %v2966
      %v2968 = vsub.f32 1.0, %v2967
      %v2969 = vmul.f32 %v2966, %v2968
      %v2970 = vadd.f32 %v2966, %v2969
      %vm2971 = vweird.f32 %v2846
      %vm2972 = vweird.f32 %v2966
      %vm2973 = vmor %vm2971, %vm2972
      %v2974 = vsel %vm2973, %v2966, %v2970
      %v2975 = vand.u32 2147483647, %v2846
      %vm2976 = vcmp.eq.f32.partialorder %v2975, 8.507059e+37
      %v2977 = vand.u32 %v2846, 2147483648
      %v2978 = vor.u32 1.1754944e-38, %v2977
      %v2979 = vsel %vm2976, %v2978, %v2974
      %v2980 = vmul.f32 1.0, %v2979
      %v2981 = vrcp.pop %v2847
      %v2982 = vmul.f32 %v2847, %v2981
      %v2983 = vsub.f32 1.0, %v2982
      %v2984 = vmul.f32 %v2981, %v2983
      %v2985 = vadd.f32 %v2981, %v2984
      %vm2986 = vweird.f32 %v2847
      %vm2987 = vweird.f32 %v2981
      %vm2988 = vmor %vm2986, %vm2987
      %v2989 = vsel %vm2988, %v2981, %v2985
      %v2990 = vand.u32 2147483647, %v2847
      %vm2991 = vcmp.eq.f32.partialorder %v2990, 8.507059e+37
      %v2992 = vand.u32 %v2847, 2147483648
      %v2993 = vor.u32 1.1754944e-38, %v2992
      %v2994 = vsel %vm2991, %v2993, %v2989
      %v2995 = vmul.f32 1.0, %v2994
      %v2996 = vrcp.pop %v2848
      %v2997 = vmul.f32 %v2848, %v2996
      %v2998 = vsub.f32 1.0, %v2997
      %v2999 = vmul.f32 %v2996, %v2998
      %v3000 = vadd.f32 %v2996, %v2999
      %vm3001 = vweird.f32 %v2848
      %vm3002 = vweird.f32 %v2996
      %vm3003 = vmor %vm3001, %vm3002
      %v3004 = vsel %vm3003, %v2996, %v3000
      %v3005 = vand.u32 2147483647, %v2848
      %vm3006 = vcmp.eq.f32.partialorder %v3005, 8.507059e+37
      %v3007 = vand.u32 %v2848, 2147483648
      %v3008 = vor.u32 1.1754944e-38, %v3007
      %v3009 = vsel %vm3006, %v3008, %v3004
      %v3010 = vmul.f32 1.0, %v3009
      %v3011 = vrcp.pop %v2849
      %v3012 = vmul.f32 %v2849, %v3011
      %v3013 = vsub.f32 1.0, %v3012
      %v3014 = vmul.f32 %v3011, %v3013
      %v3015 = vadd.f32 %v3011, %v3014
      %vm3016 = vweird.f32 %v2849
      %vm3017 = vweird.f32 %v3011
      %vm3018 = vmor %vm3016, %vm3017
      %v3019 = vsel %vm3018, %v3011, %v3015
      %v3020 = vand.u32 2147483647, %v2849
      %vm3021 = vcmp.eq.f32.partialorder %v3020, 8.507059e+37
      %v3022 = vand.u32 %v2849, 2147483648
      %v3023 = vor.u32 1.1754944e-38, %v3022
      %v3024 = vsel %vm3021, %v3023, %v3019
      %v3025 = vmul.f32 1.0, %v3024
      %v3026 = vrcp.pop %v2850
      %v3027 = vmul.f32 %v2850, %v3026
      %v3028 = vsub.f32 1.0, %v3027
      %v3029 = vmul.f32 %v3026, %v3028
      %v3030 = vadd.f32 %v3026, %v3029
      %vm3031 = vweird.f32 %v2850
      %vm3032 = vweird.f32 %v3026
      %vm3033 = vmor %vm3031, %vm3032
      %v3034 = vsel %vm3033, %v3026, %v3030
      %v3035 = vand.u32 2147483647, %v2850
      %vm3036 = vcmp.eq.f32.partialorder %v3035, 8.507059e+37
      %v3037 = vand.u32 %v2850, 2147483648
      %v3038 = vor.u32 1.1754944e-38, %v3037
      %v3039 = vsel %vm3036, %v3038, %v3034
      %v3040 = vmul.f32 1.0, %v3039
      %v3041 = vrcp.pop %v2851
      %v3042 = vmul.f32 %v2851, %v3041
      %v3043 = vsub.f32 1.0, %v3042
      %v3044 = vmul.f32 %v3041, %v3043
      %v3045 = vadd.f32 %v3041, %v3044
      %vm3046 = vweird.f32 %v2851
      %vm3047 = vweird.f32 %v3041
      %vm3048 = vmor %vm3046, %vm3047
      %v3049 = vsel %vm3048, %v3041, %v3045
      %v3050 = vand.u32 2147483647, %v2851
      %vm3051 = vcmp.eq.f32.partialorder %v3050, 8.507059e+37
      %v3052 = vand.u32 %v2851, 2147483648
      %v3053 = vor.u32 1.1754944e-38, %v3052
      %v3054 = vsel %vm3051, %v3053, %v3049
      %v3055 = vmul.f32 1.0, %v3054
      %v3056 = vrcp.pop %v2852
      %v3057 = vmul.f32 %v2852, %v3056
      %v3058 = vsub.f32 1.0, %v3057
      %v3059 = vmul.f32 %v3056, %v3058
      %v3060 = vadd.f32 %v3056, %v3059
      %vm3061 = vweird.f32 %v2852
      %vm3062 = vweird.f32 %v3056
      %vm3063 = vmor %vm3061, %vm3062
      %v3064 = vsel %vm3063, %v3056, %v3060
      %v3065 = vand.u32 2147483647, %v2852
      %vm3066 = vcmp.eq.f32.partialorder %v3065, 8.507059e+37
      %v3067 = vand.u32 %v2852, 2147483648
      %v3068 = vor.u32 1.1754944e-38, %v3067
      %v3069 = vsel %vm3066, %v3068, %v3064
      %v3070 = vmul.f32 1.0, %v3069
      %v3071 = vrcp.pop %v2853
      %v3072 = vmul.f32 %v2853, %v3071
      %v3073 = vsub.f32 1.0, %v3072
      %v3074 = vmul.f32 %v3071, %v3073
      %v3075 = vadd.f32 %v3071, %v3074
      %vm3076 = vweird.f32 %v2853
      %vm3077 = vweird.f32 %v3071
      %vm3078 = vmor %vm3076, %vm3077
      %v3079 = vsel %vm3078, %v3071, %v3075
      %v3080 = vand.u32 2147483647, %v2853
      %vm3081 = vcmp.eq.f32.partialorder %v3080, 8.507059e+37
      %v3082 = vand.u32 %v2853, 2147483648
      %v3083 = vor.u32 1.1754944e-38, %v3082
      %v3084 = vsel %vm3081, %v3083, %v3079
      %v3085 = vmul.f32 1.0, %v3084
      %v3086 = vrcp.pop %v2854
      %v3087 = vmul.f32 %v2854, %v3086
      %v3088 = vsub.f32 1.0, %v3087
      %v3089 = vmul.f32 %v3086, %v3088
      %v3090 = vadd.f32 %v3086, %v3089
      %vm3091 = vweird.f32 %v2854
      %vm3092 = vweird.f32 %v3086
      %vm3093 = vmor %vm3091, %vm3092
      %v3094 = vsel %vm3093, %v3086, %v3090
      %v3095 = vand.u32 2147483647, %v2854
      %vm3096 = vcmp.eq.f32.partialorder %v3095, 8.507059e+37
      %v3097 = vand.u32 %v2854, 2147483648
      %v3098 = vor.u32 1.1754944e-38, %v3097
      %v3099 = vsel %vm3096, %v3098, %v3094
      %v3100 = vmul.f32 1.0, %v3099
      %v3101 = vrcp.pop %v2855
      %v3102 = vmul.f32 %v2855, %v3101
      %v3103 = vsub.f32 1.0, %v3102
      %v3104 = vmul.f32 %v3101, %v3103
      %v3105 = vadd.f32 %v3101, %v3104
      %vm3106 = vweird.f32 %v2855
      %vm3107 = vweird.f32 %v3101
      %vm3108 = vmor %vm3106, %vm3107
      %v3109 = vsel %vm3108, %v3101, %v3105
      %v3110 = vand.u32 2147483647, %v2855
      %vm3111 = vcmp.eq.f32.partialorder %v3110, 8.507059e+37
      %v3112 = vand.u32 %v2855, 2147483648
      %v3113 = vor.u32 1.1754944e-38, %v3112
      %v3114 = vsel %vm3111, %v3113, %v3109
      %v3115 = vmul.f32 1.0, %v3114
      %v3116 = vrcp.pop %v2856
      %v3117 = vmul.f32 %v2856, %v3116
      %v3118 = vsub.f32 1.0, %v3117
      %v3119 = vmul.f32 %v3116, %v3118
      %v3120 = vadd.f32 %v3116, %v3119
      %vm3121 = vweird.f32 %v2856
      %vm3122 = vweird.f32 %v3116
      %vm3123 = vmor %vm3121, %vm3122
      %v3124 = vsel %vm3123, %v3116, %v3120
      %v3125 = vand.u32 2147483647, %v2856
      %vm3126 = vcmp.eq.f32.partialorder %v3125, 8.507059e+37
      %v3127 = vand.u32 %v2856, 2147483648
      %v3128 = vor.u32 1.1754944e-38, %v3127
      %v3129 = vsel %vm3126, %v3128, %v3124
      %v3130 = vmul.f32 1.0, %v3129
      %v3131 = vrcp.pop %v2857
      %v3132 = vmul.f32 %v2857, %v3131
      %v3133 = vsub.f32 1.0, %v3132
      %v3134 = vmul.f32 %v3131, %v3133
      %v3135 = vadd.f32 %v3131, %v3134
      %vm3136 = vweird.f32 %v2857
      %vm3137 = vweird.f32 %v3131
      %vm3138 = vmor %vm3136, %vm3137
      %v3139 = vsel %vm3138, %v3131, %v3135
      %v3140 = vand.u32 2147483647, %v2857
      %vm3141 = vcmp.eq.f32.partialorder %v3140, 8.507059e+37
      %v3142 = vand.u32 %v2857, 2147483648
      %v3143 = vor.u32 1.1754944e-38, %v3142
      %v3144 = vsel %vm3141, %v3143, %v3139
      %v3145 = vmul.f32 1.0, %v3144
      %v3146 = vrcp.pop %v2858
      %v3147 = vmul.f32 %v2858, %v3146
      %v3148 = vsub.f32 1.0, %v3147
      %v3149 = vmul.f32 %v3146, %v3148
      %v3150 = vadd.f32 %v3146, %v3149
      %vm3151 = vweird.f32 %v2858
      %vm3152 = vweird.f32 %v3146
      %vm3153 = vmor %vm3151, %vm3152
      %v3154 = vsel %vm3153, %v3146, %v3150
      %v3155 = vand.u32 2147483647, %v2858
      %vm3156 = vcmp.eq.f32.partialorder %v3155, 8.507059e+37
      %v3157 = vand.u32 %v2858, 2147483648
      %v3158 = vor.u32 1.1754944e-38, %v3157
      %v3159 = vsel %vm3156, %v3158, %v3154
      %v3160 = vmul.f32 1.0, %v3159
      %v3161 = vrcp.pop %v2859
      %v3162 = vmul.f32 %v2859, %v3161
      %v3163 = vsub.f32 1.0, %v3162
      %v3164 = vmul.f32 %v3161, %v3163
      %v3165 = vadd.f32 %v3161, %v3164
      %vm3166 = vweird.f32 %v2859
      %vm3167 = vweird.f32 %v3161
      %vm3168 = vmor %vm3166, %vm3167
      %v3169 = vsel %vm3168, %v3161, %v3165
      %v3170 = vand.u32 2147483647, %v2859
      %vm3171 = vcmp.eq.f32.partialorder %v3170, 8.507059e+37
      %v3172 = vand.u32 %v2859, 2147483648
      %v3173 = vor.u32 1.1754944e-38, %v3172
      %v3174 = vsel %vm3171, %v3173, %v3169
      %v3175 = vmul.f32 1.0, %v3174
      %v3176 = vrcp.pop %v2860
      %v3177 = vmul.f32 %v2860, %v3176
      %v3178 = vsub.f32 1.0, %v3177
      %v3179 = vmul.f32 %v3176, %v3178
      %v3180 = vadd.f32 %v3176, %v3179
      %vm3181 = vweird.f32 %v2860
      %vm3182 = vweird.f32 %v3176
      %vm3183 = vmor %vm3181, %vm3182
      %v3184 = vsel %vm3183, %v3176, %v3180
      %v3185 = vand.u32 2147483647, %v2860
      %vm3186 = vcmp.eq.f32.partialorder %v3185, 8.507059e+37
      %v3187 = vand.u32 %v2860, 2147483648
      %v3188 = vor.u32 1.1754944e-38, %v3187
      %v3189 = vsel %vm3186, %v3188, %v3184
      %v3190 = vmul.f32 1.0, %v3189
      %v3191 = vrcp.pop %v2861
      %v3192 = vmul.f32 %v2861, %v3191
      %v3193 = vsub.f32 1.0, %v3192
      %v3194 = vmul.f32 %v3191, %v3193
      %v3195 = vadd.f32 %v3191, %v3194
      %vm3196 = vweird.f32 %v2861
      %vm3197 = vweird.f32 %v3191
      %vm3198 = vmor %vm3196, %vm3197
      %v3199 = vsel %vm3198, %v3191, %v3195
      %v3200 = vand.u32 2147483647, %v2861
      %vm3201 = vcmp.eq.f32.partialorder %v3200, 8.507059e+37
      %v3202 = vand.u32 %v2861, 2147483648
      %v3203 = vor.u32 1.1754944e-38, %v3202
      %v3204 = vsel %vm3201, %v3203, %v3199
      %v3205 = vmul.f32 1.0, %v3204
      %v3206 = vrcp.pop %v2862
      %v3207 = vmul.f32 %v2862, %v3206
      %v3208 = vsub.f32 1.0, %v3207
      %v3209 = vmul.f32 %v3206, %v3208
      %v3210 = vadd.f32 %v3206, %v3209
      %vm3211 = vweird.f32 %v2862
      %vm3212 = vweird.f32 %v3206
      %vm3213 = vmor %vm3211, %vm3212
      %v3214 = vsel %vm3213, %v3206, %v3210
      %v3215 = vand.u32 2147483647, %v2862
      %vm3216 = vcmp.eq.f32.partialorder %v3215, 8.507059e+37
      %v3217 = vand.u32 %v2862, 2147483648
      %v3218 = vor.u32 1.1754944e-38, %v3217
      %v3219 = vsel %vm3216, %v3218, %v3214
      %v3220 = vmul.f32 1.0, %v3219
      %v3221 = vrcp.pop %v2863
      %v3222 = vmul.f32 %v2863, %v3221
      %v3223 = vsub.f32 1.0, %v3222
      %v3224 = vmul.f32 %v3221, %v3223
      %v3225 = vadd.f32 %v3221, %v3224
      %vm3226 = vweird.f32 %v2863
      %vm3227 = vweird.f32 %v3221
      %vm3228 = vmor %vm3226, %vm3227
      %v3229 = vsel %vm3228, %v3221, %v3225
      %v3230 = vand.u32 2147483647, %v2863
      %vm3231 = vcmp.eq.f32.partialorder %v3230, 8.507059e+37
      %v3232 = vand.u32 %v2863, 2147483648
      %v3233 = vor.u32 1.1754944e-38, %v3232
      %v3234 = vsel %vm3231, %v3233, %v3229
      %v3235 = vmul.f32 1.0, %v3234
      %v3236 = vrcp.pop %v2864
      %v3237 = vmul.f32 %v2864, %v3236
      %v3238 = vsub.f32 1.0, %v3237
      %v3239 = vmul.f32 %v3236, %v3238
      %v3240 = vadd.f32 %v3236, %v3239
      %vm3241 = vweird.f32 %v2864
      %vm3242 = vweird.f32 %v3236
      %vm3243 = vmor %vm3241, %vm3242
      %v3244 = vsel %vm3243, %v3236, %v3240
      %v3245 = vand.u32 2147483647, %v2864
      %vm3246 = vcmp.eq.f32.partialorder %v3245, 8.507059e+37
      %v3247 = vand.u32 %v2864, 2147483648
      %v3248 = vor.u32 1.1754944e-38, %v3247
      %v3249 = vsel %vm3246, %v3248, %v3244
      %v3250 = vmul.f32 1.0, %v3249
      %v3251 = vrcp.pop %v2865
      %v3252 = vmul.f32 %v2865, %v3251
      %v3253 = vsub.f32 1.0, %v3252
      %v3254 = vmul.f32 %v3251, %v3253
      %v3255 = vadd.f32 %v3251, %v3254
      %vm3256 = vweird.f32 %v2865
      %vm3257 = vweird.f32 %v3251
      %vm3258 = vmor %vm3256, %vm3257
      %v3259 = vsel %vm3258, %v3251, %v3255
      %v3260 = vand.u32 2147483647, %v2865
      %vm3261 = vcmp.eq.f32.partialorder %v3260, 8.507059e+37
      %v3262 = vand.u32 %v2865, 2147483648
      %v3263 = vor.u32 1.1754944e-38, %v3262
      %v3264 = vsel %vm3261, %v3263, %v3259
      %v3265 = vmul.f32 1.0, %v3264
      %v3266 = vrcp.pop %v2866
      %v3267 = vmul.f32 %v2866, %v3266
      %v3268 = vsub.f32 1.0, %v3267
      %v3269 = vmul.f32 %v3266, %v3268
      %v3270 = vadd.f32 %v3266, %v3269
      %vm3271 = vweird.f32 %v2866
      %vm3272 = vweird.f32 %v3266
      %vm3273 = vmor %vm3271, %vm3272
      %v3274 = vsel %vm3273, %v3266, %v3270
      %v3275 = vand.u32 2147483647, %v2866
      %vm3276 = vcmp.eq.f32.partialorder %v3275, 8.507059e+37
      %v3277 = vand.u32 %v2866, 2147483648
      %v3278 = vor.u32 1.1754944e-38, %v3277
      %v3279 = vsel %vm3276, %v3278, %v3274
      %v3280 = vmul.f32 1.0, %v3279
      %v3281 = vrcp.pop %v2867
      %v3282 = vmul.f32 %v2867, %v3281
      %v3283 = vsub.f32 1.0, %v3282
      %v3284 = vmul.f32 %v3281, %v3283
      %v3285 = vadd.f32 %v3281, %v3284
      %vm3286 = vweird.f32 %v2867
      %vm3287 = vweird.f32 %v3281
      %vm3288 = vmor %vm3286, %vm3287
      %v3289 = vsel %vm3288, %v3281, %v3285
      %v3290 = vand.u32 2147483647, %v2867
      %vm3291 = vcmp.eq.f32.partialorder %v3290, 8.507059e+37
      %v3292 = vand.u32 %v2867, 2147483648
      %v3293 = vor.u32 1.1754944e-38, %v3292
      %v3294 = vsel %vm3291, %v3293, %v3289
      %v3295 = vmul.f32 1.0, %v3294
      %v3296 = vrcp.pop %v2868
      %v3297 = vmul.f32 %v2868, %v3296
      %v3298 = vsub.f32 1.0, %v3297
      %v3299 = vmul.f32 %v3296, %v3298
      %v3300 = vadd.f32 %v3296, %v3299
      %vm3301 = vweird.f32 %v2868
      %vm3302 = vweird.f32 %v3296
      %vm3303 = vmor %vm3301, %vm3302
      %v3304 = vsel %vm3303, %v3296, %v3300
      %v3305 = vand.u32 2147483647, %v2868
      %vm3306 = vcmp.eq.f32.partialorder %v3305, 8.507059e+37
      %v3307 = vand.u32 %v2868, 2147483648
      %v3308 = vor.u32 1.1754944e-38, %v3307
      %v3309 = vsel %vm3306, %v3308, %v3304
      %v3310 = vmul.f32 1.0, %v3309
      %v3311 = vrcp.pop %v2869
      %v3312 = vmul.f32 %v2869, %v3311
      %v3313 = vsub.f32 1.0, %v3312
      %v3314 = vmul.f32 %v3311, %v3313
      %v3315 = vadd.f32 %v3311, %v3314
      %vm3316 = vweird.f32 %v2869
      %vm3317 = vweird.f32 %v3311
      %vm3318 = vmor %vm3316, %vm3317
      %v3319 = vsel %vm3318, %v3311, %v3315
      %v3320 = vand.u32 2147483647, %v2869
      %vm3321 = vcmp.eq.f32.partialorder %v3320, 8.507059e+37
      %v3322 = vand.u32 %v2869, 2147483648
      %v3323 = vor.u32 1.1754944e-38, %v3322
      %v3324 = vsel %vm3321, %v3323, %v3319
      %v3325 = vmul.f32 1.0, %v3324
      %v3326 = vrcp.pop %v2870
      %v3327 = vmul.f32 %v2870, %v3326
      %v3328 = vsub.f32 1.0, %v3327
      %v3329 = vmul.f32 %v3326, %v3328
      %v3330 = vadd.f32 %v3326, %v3329
      %vm3331 = vweird.f32 %v2870
      %vm3332 = vweird.f32 %v3326
      %vm3333 = vmor %vm3331, %vm3332
      %v3334 = vsel %vm3333, %v3326, %v3330
      %v3335 = vand.u32 2147483647, %v2870
      %vm3336 = vcmp.eq.f32.partialorder %v3335, 8.507059e+37
      %v3337 = vand.u32 %v2870, 2147483648
      %v3338 = vor.u32 1.1754944e-38, %v3337
      %v3339 = vsel %vm3336, %v3338, %v3334
      %v3340 = vmul.f32 1.0, %v3339
      %v3341 = vrcp.pop %v2871
      %v3342 = vmul.f32 %v2871, %v3341
      %v3343 = vsub.f32 1.0, %v3342
      %v3344 = vmul.f32 %v3341, %v3343
      %v3345 = vadd.f32 %v3341, %v3344
      %vm3346 = vweird.f32 %v2871
      %vm3347 = vweird.f32 %v3341
      %vm3348 = vmor %vm3346, %vm3347
      %v3349 = vsel %vm3348, %v3341, %v3345
      %v3350 = vand.u32 2147483647, %v2871
      %vm3351 = vcmp.eq.f32.partialorder %v3350, 8.507059e+37
      %v3352 = vand.u32 %v2871, 2147483648
      %v3353 = vor.u32 1.1754944e-38, %v3352
      %v3354 = vsel %vm3351, %v3353, %v3349
      %v3355 = vmul.f32 1.0, %v3354
      %v3356 = vrcp.pop %v2872
      %v3357 = vmul.f32 %v2872, %v3356
      %v3358 = vsub.f32 1.0, %v3357
      %v3359 = vmul.f32 %v3356, %v3358
      %v3360 = vadd.f32 %v3356, %v3359
      %vm3361 = vweird.f32 %v2872
      %vm3362 = vweird.f32 %v3356
      %vm3363 = vmor %vm3361, %vm3362
      %v3364 = vsel %vm3363, %v3356, %v3360
      %v3365 = vand.u32 2147483647, %v2872
      %vm3366 = vcmp.eq.f32.partialorder %v3365, 8.507059e+37
      %v3367 = vand.u32 %v2872, 2147483648
      %v3368 = vor.u32 1.1754944e-38, %v3367
      %v3369 = vsel %vm3366, %v3368, %v3364
      %v3370 = vmul.f32 1.0, %v3369
      %v3371 = vrcp.pop %v2873
      %v3372 = vmul.f32 %v2873, %v3371
      %v3373 = vsub.f32 1.0, %v3372
      %v3374 = vmul.f32 %v3371, %v3373
      %v3375 = vadd.f32 %v3371, %v3374
      %vm3376 = vweird.f32 %v2873
      %vm3377 = vweird.f32 %v3371
      %vm3378 = vmor %vm3376, %vm3377
      %v3379 = vsel %vm3378, %v3371, %v3375
      %v3380 = vand.u32 2147483647, %v2873
      %vm3381 = vcmp.eq.f32.partialorder %v3380, 8.507059e+37
      %v3382 = vand.u32 %v2873, 2147483648
      %v3383 = vor.u32 1.1754944e-38, %v3382
      %v3384 = vsel %vm3381, %v3383, %v3379
      %v3385 = vmul.f32 1.0, %v3384
      %v3386 = vrcp.pop %v2874
      %v3387 = vmul.f32 %v2874, %v3386
      %v3388 = vsub.f32 1.0, %v3387
      %v3389 = vmul.f32 %v3386, %v3388
      %v3390 = vadd.f32 %v3386, %v3389
      %vm3391 = vweird.f32 %v2874
      %vm3392 = vweird.f32 %v3386
      %vm3393 = vmor %vm3391, %vm3392
      %v3394 = vsel %vm3393, %v3386, %v3390
      %v3395 = vand.u32 2147483647, %v2874
      %vm3396 = vcmp.eq.f32.partialorder %v3395, 8.507059e+37
      %v3397 = vand.u32 %v2874, 2147483648
      %v3398 = vor.u32 1.1754944e-38, %v3397
      %v3399 = vsel %vm3396, %v3398, %v3394
      %v3400 = vmul.f32 1.0, %v3399
      %v3401 = vrcp.pop %v2875
      %v3402 = vmul.f32 %v2875, %v3401
      %v3403 = vsub.f32 1.0, %v3402
      %v3404 = vmul.f32 %v3401, %v3403
      %v3405 = vadd.f32 %v3401, %v3404
      %vm3406 = vweird.f32 %v2875
      %vm3407 = vweird.f32 %v3401
      %vm3408 = vmor %vm3406, %vm3407
      %v3409 = vsel %vm3408, %v3401, %v3405
      %v3410 = vand.u32 2147483647, %v2875
      %vm3411 = vcmp.eq.f32.partialorder %v3410, 8.507059e+37
      %v3412 = vand.u32 %v2875, 2147483648
      %v3413 = vor.u32 1.1754944e-38, %v3412
      %v3414 = vsel %vm3411, %v3413, %v3409
      %v3415 = vmul.f32 1.0, %v3414
      %v3416 = vrcp.pop %v2876
      %v3417 = vmul.f32 %v2876, %v3416
      %v3418 = vsub.f32 1.0, %v3417
      %v3419 = vmul.f32 %v3416, %v3418
      %v3420 = vadd.f32 %v3416, %v3419
      %vm3421 = vweird.f32 %v2876
      %vm3422 = vweird.f32 %v3416
      %vm3423 = vmor %vm3421, %vm3422
      %v3424 = vsel %vm3423, %v3416, %v3420
      %v3425 = vand.u32 2147483647, %v2876
      %vm3426 = vcmp.eq.f32.partialorder %v3425, 8.507059e+37
      %v3427 = vand.u32 %v2876, 2147483648
      %v3428 = vor.u32 1.1754944e-38, %v3427
      %v3429 = vsel %vm3426, %v3428, %v3424
      %v3430 = vmul.f32 1.0, %v3429
      %v3431 = vrcp.pop %v2877
      %v3432 = vmul.f32 %v2877, %v3431
      %v3433 = vsub.f32 1.0, %v3432
      %v3434 = vmul.f32 %v3431, %v3433
      %v3435 = vadd.f32 %v3431, %v3434
      %vm3436 = vweird.f32 %v2877
      %vm3437 = vweird.f32 %v3431
      %vm3438 = vmor %vm3436, %vm3437
      %v3439 = vsel %vm3438, %v3431, %v3435
      %v3440 = vand.u32 2147483647, %v2877
      %vm3441 = vcmp.eq.f32.partialorder %v3440, 8.507059e+37
      %v3442 = vand.u32 %v2877, 2147483648
      %v3443 = vor.u32 1.1754944e-38, %v3442
      %v3444 = vsel %vm3441, %v3443, %v3439
      %v3445 = vmul.f32 1.0, %v3444
      %v3446 = vrcp.pop %v2878
      %v3447 = vmul.f32 %v2878, %v3446
      %v3448 = vsub.f32 1.0, %v3447
      %v3449 = vmul.f32 %v3446, %v3448
      %v3450 = vadd.f32 %v3446, %v3449
      %vm3451 = vweird.f32 %v2878
      %vm3452 = vweird.f32 %v3446
      %vm3453 = vmor %vm3451, %vm3452
      %v3454 = vsel %vm3453, %v3446, %v3450
      %v3455 = vand.u32 2147483647, %v2878
      %vm3456 = vcmp.eq.f32.partialorder %v3455, 8.507059e+37
      %v3457 = vand.u32 %v2878, 2147483648
      %v3458 = vor.u32 1.1754944e-38, %v3457
      %v3459 = vsel %vm3456, %v3458, %v3454
      %v3460 = vmul.f32 1.0, %v3459
      %v3461 = vrcp.pop %v2879
      %v3462 = vmul.f32 %v2879, %v3461
      %v3463 = vsub.f32 1.0, %v3462
      %v3464 = vmul.f32 %v3461, %v3463
      %v3465 = vadd.f32 %v3461, %v3464
      %vm3466 = vweird.f32 %v2879
      %vm3467 = vweird.f32 %v3461
      %vm3468 = vmor %vm3466, %vm3467
      %v3469 = vsel %vm3468, %v3461, %v3465
      %v3470 = vand.u32 2147483647, %v2879
      %vm3471 = vcmp.eq.f32.partialorder %v3470, 8.507059e+37
      %v3472 = vand.u32 %v2879, 2147483648
      %v3473 = vor.u32 1.1754944e-38, %v3472
      %v3474 = vsel %vm3471, %v3473, %v3469
      %v3475 = vmul.f32 1.0, %v3474
      %v3476 = vrcp.pop %v2880
      %v3477 = vmul.f32 %v2880, %v3476
      %v3478 = vsub.f32 1.0, %v3477
      %v3479 = vmul.f32 %v3476, %v3478
      %v3480 = vadd.f32 %v3476, %v3479
      %vm3481 = vweird.f32 %v2880
      %vm3482 = vweird.f32 %v3476
      %vm3483 = vmor %vm3481, %vm3482
      %v3484 = vsel %vm3483, %v3476, %v3480
      %v3485 = vand.u32 2147483647, %v2880
      %vm3486 = vcmp.eq.f32.partialorder %v3485, 8.507059e+37
      %v3487 = vand.u32 %v2880, 2147483648
      %v3488 = vor.u32 1.1754944e-38, %v3487
      %v3489 = vsel %vm3486, %v3488, %v3484
      %v3490 = vmul.f32 1.0, %v3489
      %v3491 = vrcp.pop %v2881
      %v3492 = vmul.f32 %v2881, %v3491
      %v3493 = vsub.f32 1.0, %v3492
      %v3494 = vmul.f32 %v3491, %v3493
      %v3495 = vadd.f32 %v3491, %v3494
      %vm3496 = vweird.f32 %v2881
      %vm3497 = vweird.f32 %v3491
      %vm3498 = vmor %vm3496, %vm3497
      %v3499 = vsel %vm3498, %v3491, %v3495
      %v3500 = vand.u32 2147483647, %v2881
      %vm3501 = vcmp.eq.f32.partialorder %v3500, 8.507059e+37
      %v3502 = vand.u32 %v2881, 2147483648
      %v3503 = vor.u32 1.1754944e-38, %v3502
      %v3504 = vsel %vm3501, %v3503, %v3499
      %v3505 = vmul.f32 1.0, %v3504
      %v3506 = vrcp.pop %v2882
      %v3507 = vmul.f32 %v2882, %v3506
      %v3508 = vsub.f32 1.0, %v3507
      %v3509 = vmul.f32 %v3506, %v3508
      %v3510 = vadd.f32 %v3506, %v3509
      %vm3511 = vweird.f32 %v2882
      %vm3512 = vweird.f32 %v3506
      %vm3513 = vmor %vm3511, %vm3512
      %v3514 = vsel %vm3513, %v3506, %v3510
      %v3515 = vand.u32 2147483647, %v2882
      %vm3516 = vcmp.eq.f32.partialorder %v3515, 8.507059e+37
      %v3517 = vand.u32 %v2882, 2147483648
      %v3518 = vor.u32 1.1754944e-38, %v3517
      %v3519 = vsel %vm3516, %v3518, %v3514
      %v3520 = vmul.f32 1.0, %v3519
      %v3521 = vrcp.pop %v2883
      %v3522 = vmul.f32 %v2883, %v3521
      %v3523 = vsub.f32 1.0, %v3522
      %v3524 = vmul.f32 %v3521, %v3523
      %v3525 = vadd.f32 %v3521, %v3524
      %vm3526 = vweird.f32 %v2883
      %vm3527 = vweird.f32 %v3521
      %vm3528 = vmor %vm3526, %vm3527
      %v3529 = vsel %vm3528, %v3521, %v3525
      %v3530 = vand.u32 2147483647, %v2883
      %vm3531 = vcmp.eq.f32.partialorder %v3530, 8.507059e+37
      %v3532 = vand.u32 %v2883, 2147483648
      %v3533 = vor.u32 1.1754944e-38, %v3532
      %v3534 = vsel %vm3531, %v3533, %v3529
      %v3535 = vmul.f32 1.0, %v3534
      %v3536 = vrcp.pop %v2884
      %v3537 = vmul.f32 %v2884, %v3536
      %v3538 = vsub.f32 1.0, %v3537
      %v3539 = vmul.f32 %v3536, %v3538
      %v3540 = vadd.f32 %v3536, %v3539
      %vm3541 = vweird.f32 %v2884
      %vm3542 = vweird.f32 %v3536
      %vm3543 = vmor %vm3541, %vm3542
      %v3544 = vsel %vm3543, %v3536, %v3540
      %v3545 = vand.u32 2147483647, %v2884
      %vm3546 = vcmp.eq.f32.partialorder %v3545, 8.507059e+37
      %v3547 = vand.u32 %v2884, 2147483648
      %v3548 = vor.u32 1.1754944e-38, %v3547
      %v3549 = vsel %vm3546, %v3548, %v3544
      %v3550 = vmul.f32 1.0, %v3549
      %v3551 = vrcp.pop %v2885
      %v3552 = vmul.f32 %v2885, %v3551
      %v3553 = vsub.f32 1.0, %v3552
      %v3554 = vmul.f32 %v3551, %v3553
      %v3555 = vadd.f32 %v3551, %v3554
      %vm3556 = vweird.f32 %v2885
      %vm3557 = vweird.f32 %v3551
      %vm3558 = vmor %vm3556, %vm3557
      %v3559 = vsel %vm3558, %v3551, %v3555
      %v3560 = vand.u32 2147483647, %v2885
      %vm3561 = vcmp.eq.f32.partialorder %v3560, 8.507059e+37
      %v3562 = vand.u32 %v2885, 2147483648
      %v3563 = vor.u32 1.1754944e-38, %v3562
      %v3564 = vsel %vm3561, %v3563, %v3559
      %v3565 = vmul.f32 1.0, %v3564
      %v3566 = vrcp.pop %v2886
      %v3567 = vmul.f32 %v2886, %v3566
      %v3568 = vsub.f32 1.0, %v3567
      %v3569 = vmul.f32 %v3566, %v3568
      %v3570 = vadd.f32 %v3566, %v3569
      %vm3571 = vweird.f32 %v2886
      %vm3572 = vweird.f32 %v3566
      %vm3573 = vmor %vm3571, %vm3572
      %v3574 = vsel %vm3573, %v3566, %v3570
      %v3575 = vand.u32 2147483647, %v2886
      %vm3576 = vcmp.eq.f32.partialorder %v3575, 8.507059e+37
      %v3577 = vand.u32 %v2886, 2147483648
      %v3578 = vor.u32 1.1754944e-38, %v3577
      %v3579 = vsel %vm3576, %v3578, %v3574
      %v3580 = vmul.f32 1.0, %v3579
      %v3581 = vrcp.pop %v2887
      %v3582 = vmul.f32 %v2887, %v3581
      %v3583 = vsub.f32 1.0, %v3582
      %v3584 = vmul.f32 %v3581, %v3583
      %v3585 = vadd.f32 %v3581, %v3584
      %vm3586 = vweird.f32 %v2887
      %vm3587 = vweird.f32 %v3581
      %vm3588 = vmor %vm3586, %vm3587
      %v3589 = vsel %vm3588, %v3581, %v3585
      %v3590 = vand.u32 2147483647, %v2887
      %vm3591 = vcmp.eq.f32.partialorder %v3590, 8.507059e+37
      %v3592 = vand.u32 %v2887, 2147483648
      %v3593 = vor.u32 1.1754944e-38, %v3592
      %v3594 = vsel %vm3591, %v3593, %v3589
      %v3595 = vmul.f32 1.0, %v3594
      %v3596 = vrcp.pop %v2888
      %v3597 = vmul.f32 %v2888, %v3596
      %v3598 = vsub.f32 1.0, %v3597
      %v3599 = vmul.f32 %v3596, %v3598
      %v3600 = vadd.f32 %v3596, %v3599
      %vm3601 = vweird.f32 %v2888
      %vm3602 = vweird.f32 %v3596
      %vm3603 = vmor %vm3601, %vm3602
      %v3604 = vsel %vm3603, %v3596, %v3600
      %v3605 = vand.u32 2147483647, %v2888
      %vm3606 = vcmp.eq.f32.partialorder %v3605, 8.507059e+37
      %v3607 = vand.u32 %v2888, 2147483648
      %v3608 = vor.u32 1.1754944e-38, %v3607
      %v3609 = vsel %vm3606, %v3608, %v3604
      %v3610 = vmul.f32 1.0, %v3609
      %v3611 = vrcp.pop %v2889
      %v3612 = vmul.f32 %v2889, %v3611
      %v3613 = vsub.f32 1.0, %v3612
      %v3614 = vmul.f32 %v3611, %v3613
      %v3615 = vadd.f32 %v3611, %v3614
      %vm3616 = vweird.f32 %v2889
      %vm3617 = vweird.f32 %v3611
      %vm3618 = vmor %vm3616, %vm3617
      %v3619 = vsel %vm3618, %v3611, %v3615
      %v3620 = vand.u32 2147483647, %v2889
      %vm3621 = vcmp.eq.f32.partialorder %v3620, 8.507059e+37
      %v3622 = vand.u32 %v2889, 2147483648
      %v3623 = vor.u32 1.1754944e-38, %v3622
      %v3624 = vsel %vm3621, %v3623, %v3619
      %v3625 = vmul.f32 1.0, %v3624
      %v3626 = vrcp.pop %v2890
      %v3627 = vmul.f32 %v2890, %v3626
      %v3628 = vsub.f32 1.0, %v3627
      %v3629 = vmul.f32 %v3626, %v3628
      %v3630 = vadd.f32 %v3626, %v3629
      %vm3631 = vweird.f32 %v2890
      %vm3632 = vweird.f32 %v3626
      %vm3633 = vmor %vm3631, %vm3632
      %v3634 = vsel %vm3633, %v3626, %v3630
      %v3635 = vand.u32 2147483647, %v2890
      %vm3636 = vcmp.eq.f32.partialorder %v3635, 8.507059e+37
      %v3637 = vand.u32 %v2890, 2147483648
      %v3638 = vor.u32 1.1754944e-38, %v3637
      %v3639 = vsel %vm3636, %v3638, %v3634
      %v3640 = vmul.f32 1.0, %v3639
      %v3641 = vrcp.pop %v2891
      %v3642 = vmul.f32 %v2891, %v3641
      %v3643 = vsub.f32 1.0, %v3642
      %v3644 = vmul.f32 %v3641, %v3643
      %v3645 = vadd.f32 %v3641, %v3644
      %vm3646 = vweird.f32 %v2891
      %vm3647 = vweird.f32 %v3641
      %vm3648 = vmor %vm3646, %vm3647
      %v3649 = vsel %vm3648, %v3641, %v3645
      %v3650 = vand.u32 2147483647, %v2891
      %vm3651 = vcmp.eq.f32.partialorder %v3650, 8.507059e+37
      %v3652 = vand.u32 %v2891, 2147483648
      %v3653 = vor.u32 1.1754944e-38, %v3652
      %v3654 = vsel %vm3651, %v3653, %v3649
      %v3655 = vmul.f32 1.0, %v3654
      %v3656 = vrcp.pop %v2892
      %v3657 = vmul.f32 %v2892, %v3656
      %v3658 = vsub.f32 1.0, %v3657
      %v3659 = vmul.f32 %v3656, %v3658
      %v3660 = vadd.f32 %v3656, %v3659
      %vm3661 = vweird.f32 %v2892
      %vm3662 = vweird.f32 %v3656
      %vm3663 = vmor %vm3661, %vm3662
      %v3664 = vsel %vm3663, %v3656, %v3660
      %v3665 = vand.u32 2147483647, %v2892
      %vm3666 = vcmp.eq.f32.partialorder %v3665, 8.507059e+37
      %v3667 = vand.u32 %v2892, 2147483648
      %v3668 = vor.u32 1.1754944e-38, %v3667
      %v3669 = vsel %vm3666, %v3668, %v3664
      %v3670 = vmul.f32 1.0, %v3669
      %v3671 = vrcp.pop %v2893
      %v3672 = vmul.f32 %v2893, %v3671
      %v3673 = vsub.f32 1.0, %v3672
      %v3674 = vmul.f32 %v3671, %v3673
      %v3675 = vadd.f32 %v3671, %v3674
      %vm3676 = vweird.f32 %v2893
      %vm3677 = vweird.f32 %v3671
      %vm3678 = vmor %vm3676, %vm3677
      %v3679 = vsel %vm3678, %v3671, %v3675
      %v3680 = vand.u32 2147483647, %v2893
      %vm3681 = vcmp.eq.f32.partialorder %v3680, 8.507059e+37
      %v3682 = vand.u32 %v2893, 2147483648
      %v3683 = vor.u32 1.1754944e-38, %v3682
      %v3684 = vsel %vm3681, %v3683, %v3679
      %v3685 = vmul.f32 1.0, %v3684
      %v3686 = vrcp.pop %v2894
      %v3687 = vmul.f32 %v2894, %v3686
      %v3688 = vsub.f32 1.0, %v3687
      %v3689 = vmul.f32 %v3686, %v3688
      %v3690 = vadd.f32 %v3686, %v3689
      %vm3691 = vweird.f32 %v2894
      %vm3692 = vweird.f32 %v3686
      %vm3693 = vmor %vm3691, %vm3692
      %v3694 = vsel %vm3693, %v3686, %v3690
      %v3695 = vand.u32 2147483647, %v2894
      %vm3696 = vcmp.eq.f32.partialorder %v3695, 8.507059e+37
      %v3697 = vand.u32 %v2894, 2147483648
      %v3698 = vor.u32 1.1754944e-38, %v3697
      %v3699 = vsel %vm3696, %v3698, %v3694
      %v3700 = vmul.f32 1.0, %v3699
      %v3701 = vrcp.pop %v2895
      %v3702 = vmul.f32 %v2895, %v3701
      %v3703 = vsub.f32 1.0, %v3702
      %v3704 = vmul.f32 %v3701, %v3703
      %v3705 = vadd.f32 %v3701, %v3704
      %vm3706 = vweird.f32 %v2895
      %vm3707 = vweird.f32 %v3701
      %vm3708 = vmor %vm3706, %vm3707
      %v3709 = vsel %vm3708, %v3701, %v3705
      %v3710 = vand.u32 2147483647, %v2895
      %vm3711 = vcmp.eq.f32.partialorder %v3710, 8.507059e+37
      %v3712 = vand.u32 %v2895, 2147483648
      %v3713 = vor.u32 1.1754944e-38, %v3712
      %v3714 = vsel %vm3711, %v3713, %v3709
      %v3715 = vmul.f32 1.0, %v3714
      %v3716 = vrcp.pop %v2896
      %v3717 = vmul.f32 %v2896, %v3716
      %v3718 = vsub.f32 1.0, %v3717
      %v3719 = vmul.f32 %v3716, %v3718
      %v3720 = vadd.f32 %v3716, %v3719
      %vm3721 = vweird.f32 %v2896
      %vm3722 = vweird.f32 %v3716
      %vm3723 = vmor %vm3721, %vm3722
      %v3724 = vsel %vm3723, %v3716, %v3720
      %v3725 = vand.u32 2147483647, %v2896
      %vm3726 = vcmp.eq.f32.partialorder %v3725, 8.507059e+37
      %v3727 = vand.u32 %v2896, 2147483648
      %v3728 = vor.u32 1.1754944e-38, %v3727
      %v3729 = vsel %vm3726, %v3728, %v3724
      %v3730 = vmul.f32 1.0, %v3729
      %v3731 = vrcp.pop %v2897
      %v3732 = vmul.f32 %v2897, %v3731
      %v3733 = vsub.f32 1.0, %v3732
      %v3734 = vmul.f32 %v3731, %v3733
      %v3735 = vadd.f32 %v3731, %v3734
      %vm3736 = vweird.f32 %v2897
      %vm3737 = vweird.f32 %v3731
      %vm3738 = vmor %vm3736, %vm3737
      %v3739 = vsel %vm3738, %v3731, %v3735
      %v3740 = vand.u32 2147483647, %v2897
      %vm3741 = vcmp.eq.f32.partialorder %v3740, 8.507059e+37
      %v3742 = vand.u32 %v2897, 2147483648
      %v3743 = vor.u32 1.1754944e-38, %v3742
      %v3744 = vsel %vm3741, %v3743, %v3739
      %v3745 = vmul.f32 1.0, %v3744
      %v3746 = vrcp.pop %v2898
      %v3747 = vmul.f32 %v2898, %v3746
      %v3748 = vsub.f32 1.0, %v3747
      %v3749 = vmul.f32 %v3746, %v3748
      %v3750 = vadd.f32 %v3746, %v3749
      %vm3751 = vweird.f32 %v2898
      %vm3752 = vweird.f32 %v3746
      %vm3753 = vmor %vm3751, %vm3752
      %v3754 = vsel %vm3753, %v3746, %v3750
      %v3755 = vand.u32 2147483647, %v2898
      %vm3756 = vcmp.eq.f32.partialorder %v3755, 8.507059e+37
      %v3757 = vand.u32 %v2898, 2147483648
      %v3758 = vor.u32 1.1754944e-38, %v3757
      %v3759 = vsel %vm3756, %v3758, %v3754
      %v3760 = vmul.f32 1.0, %v3759
      %v3761 = vrcp.pop %v2899
      %v3762 = vmul.f32 %v2899, %v3761
      %v3763 = vsub.f32 1.0, %v3762
      %v3764 = vmul.f32 %v3761, %v3763
      %v3765 = vadd.f32 %v3761, %v3764
      %vm3766 = vweird.f32 %v2899
      %vm3767 = vweird.f32 %v3761
      %vm3768 = vmor %vm3766, %vm3767
      %v3769 = vsel %vm3768, %v3761, %v3765
      %v3770 = vand.u32 2147483647, %v2899
      %vm3771 = vcmp.eq.f32.partialorder %v3770, 8.507059e+37
      %v3772 = vand.u32 %v2899, 2147483648
      %v3773 = vor.u32 1.1754944e-38, %v3772
      %v3774 = vsel %vm3771, %v3773, %v3769
      %v3775 = vmul.f32 1.0, %v3774
      %v3776 = vrcp.pop %v2900
      %v3777 = vmul.f32 %v2900, %v3776
      %v3778 = vsub.f32 1.0, %v3777
      %v3779 = vmul.f32 %v3776, %v3778
      %v3780 = vadd.f32 %v3776, %v3779
      %vm3781 = vweird.f32 %v2900
      %vm3782 = vweird.f32 %v3776
      %vm3783 = vmor %vm3781, %vm3782
      %v3784 = vsel %vm3783, %v3776, %v3780
      %v3785 = vand.u32 2147483647, %v2900
      %vm3786 = vcmp.eq.f32.partialorder %v3785, 8.507059e+37
      %v3787 = vand.u32 %v2900, 2147483648
      %v3788 = vor.u32 1.1754944e-38, %v3787
      %v3789 = vsel %vm3786, %v3788, %v3784
      %v3790 = vmul.f32 1.0, %v3789
      %v3791 = vrcp.pop %v2901
      %v3792 = vmul.f32 %v2901, %v3791
      %v3793 = vsub.f32 1.0, %v3792
      %v3794 = vmul.f32 %v3791, %v3793
      %v3795 = vadd.f32 %v3791, %v3794
      %vm3796 = vweird.f32 %v2901
      %vm3797 = vweird.f32 %v3791
      %vm3798 = vmor %vm3796, %vm3797
      %v3799 = vsel %vm3798, %v3791, %v3795
      %v3800 = vand.u32 2147483647, %v2901
      %vm3801 = vcmp.eq.f32.partialorder %v3800, 8.507059e+37
      %v3802 = vand.u32 %v2901, 2147483648
      %v3803 = vor.u32 1.1754944e-38, %v3802
      %v3804 = vsel %vm3801, %v3803, %v3799
      %v3805 = vmul.f32 1.0, %v3804
      %v3806 = vrcp.pop %v2902
      %v3807 = vmul.f32 %v2902, %v3806
      %v3808 = vsub.f32 1.0, %v3807
      %v3809 = vmul.f32 %v3806, %v3808
      %v3810 = vadd.f32 %v3806, %v3809
      %vm3811 = vweird.f32 %v2902
      %vm3812 = vweird.f32 %v3806
      %vm3813 = vmor %vm3811, %vm3812
      %v3814 = vsel %vm3813, %v3806, %v3810
      %v3815 = vand.u32 2147483647, %v2902
      %vm3816 = vcmp.eq.f32.partialorder %v3815, 8.507059e+37
      %v3817 = vand.u32 %v2902, 2147483648
      %v3818 = vor.u32 1.1754944e-38, %v3817
      %v3819 = vsel %vm3816, %v3818, %v3814
      %v3820 = vmul.f32 1.0, %v3819
      %v3821 = vrcp.pop %v2903
      %v3822 = vmul.f32 %v2903, %v3821
      %v3823 = vsub.f32 1.0, %v3822
      %v3824 = vmul.f32 %v3821, %v3823
      %v3825 = vadd.f32 %v3821, %v3824
      %vm3826 = vweird.f32 %v2903
      %vm3827 = vweird.f32 %v3821
      %vm3828 = vmor %vm3826, %vm3827
      %v3829 = vsel %vm3828, %v3821, %v3825
      %v3830 = vand.u32 2147483647, %v2903
      %vm3831 = vcmp.eq.f32.partialorder %v3830, 8.507059e+37
      %v3832 = vand.u32 %v2903, 2147483648
      %v3833 = vor.u32 1.1754944e-38, %v3832
      %v3834 = vsel %vm3831, %v3833, %v3829
      %v3835 = vmul.f32 1.0, %v3834
      %v3836 = vrcp.pop %v2904
      %v3837 = vmul.f32 %v2904, %v3836
      %v3838 = vsub.f32 1.0, %v3837
      %v3839 = vmul.f32 %v3836, %v3838
      %v3840 = vadd.f32 %v3836, %v3839
      %vm3841 = vweird.f32 %v2904
      %vm3842 = vweird.f32 %v3836
      %vm3843 = vmor %vm3841, %vm3842
      %v3844 = vsel %vm3843, %v3836, %v3840
      %v3845 = vand.u32 2147483647, %v2904
      %vm3846 = vcmp.eq.f32.partialorder %v3845, 8.507059e+37
      %v3847 = vand.u32 %v2904, 2147483648
      %v3848 = vor.u32 1.1754944e-38, %v3847
      %v3849 = vsel %vm3846, %v3848, %v3844
      %v3850 = vmul.f32 1.0, %v3849
      %v3851 = vrcp.pop %v2905
      %v3852 = vmul.f32 %v2905, %v3851
      %v3853 = vsub.f32 1.0, %v3852
      %v3854 = vmul.f32 %v3851, %v3853
      %v3855 = vadd.f32 %v3851, %v3854
      %vm3856 = vweird.f32 %v2905
      %vm3857 = vweird.f32 %v3851
      %vm3858 = vmor %vm3856, %vm3857
      %v3859 = vsel %vm3858, %v3851, %v3855
      %v3860 = vand.u32 2147483647, %v2905
      %vm3861 = vcmp.eq.f32.partialorder %v3860, 8.507059e+37
      %v3862 = vand.u32 %v2905, 2147483648
      %v3863 = vor.u32 1.1754944e-38, %v3862
      %v3864 = vsel %vm3861, %v3863, %v3859
      %v3865 = vmul.f32 1.0, %v3864
      %v3866 = vpack.c.bf16 %v786, %v786
      %v3867 = vpack.c.bf16 %v787, %v787
      %v3868 = vpack.c.bf16 %v788, %v788
      %v3869 = vpack.c.bf16 %v789, %v789
      %v3870 = vpack.c.bf16 %v790, %v790
      %v3871 = vpack.c.bf16 %v791, %v791
      %v3872 = vpack.c.bf16 %v792, %v792
      %v3873 = vpack.c.bf16 %v793, %v793
      %v3874 = vpack.c.bf16 %v794, %v794
      %v3875 = vpack.c.bf16 %v795, %v795
      %v3876 = vpack.c.bf16 %v796, %v796
      %v3877 = vpack.c.bf16 %v797, %v797
      %v3878 = vpack.c.bf16 %v798, %v798
      %v3879 = vpack.c.bf16 %v799, %v799
      %v3880 = vpack.c.bf16 %v800, %v800
      %v3881 = vpack.c.bf16 %v801, %v801
      %v3882 = vpack.c.bf16 %v802, %v802
      %v3883 = vpack.c.bf16 %v803, %v803
      %v3884 = vpack.c.bf16 %v804, %v804
      %v3885 = vpack.c.bf16 %v805, %v805
      %v3886 = vpack.c.bf16 %v806, %v806
      %v3887 = vpack.c.bf16 %v807, %v807
      %v3888 = vpack.c.bf16 %v808, %v808
      %v3889 = vpack.c.bf16 %v809, %v809
      %v3890 = vpack.c.bf16 %v810, %v810
      %v3891 = vpack.c.bf16 %v811, %v811
      %v3892 = vpack.c.bf16 %v812, %v812
      %v3893 = vpack.c.bf16 %v813, %v813
      %v3894 = vpack.c.bf16 %v814, %v814
      %v3895 = vpack.c.bf16 %v815, %v815
      %v3896 = vpack.c.bf16 %v816, %v816
      %v3897 = vpack.c.bf16 %v817, %v817
      %v3898 = vpack.c.bf16 %v818, %v818
      %v3899 = vpack.c.bf16 %v819, %v819
      %v3900 = vpack.c.bf16 %v820, %v820
      %v3901 = vpack.c.bf16 %v821, %v821
      %v3902 = vpack.c.bf16 %v822, %v822
      %v3903 = vpack.c.bf16 %v823, %v823
      %v3904 = vpack.c.bf16 %v824, %v824
      %v3905 = vpack.c.bf16 %v825, %v825
      %v3906 = vpack.c.bf16 %v826, %v826
      %v3907 = vpack.c.bf16 %v827, %v827
      %v3908 = vpack.c.bf16 %v828, %v828
      %v3909 = vpack.c.bf16 %v829, %v829
      %v3910 = vpack.c.bf16 %v830, %v830
      %v3911 = vpack.c.bf16 %v831, %v831
      %v3912 = vpack.c.bf16 %v832, %v832
      %v3913 = vpack.c.bf16 %v833, %v833
      %v3914 = vpack.c.bf16 %v834, %v834
      %v3915 = vpack.c.bf16 %v835, %v835
      %v3916 = vpack.c.bf16 %v836, %v836
      %v3917 = vpack.c.bf16 %v837, %v837
      %v3918 = vpack.c.bf16 %v838, %v838
      %v3919 = vpack.c.bf16 %v839, %v839
      %v3920 = vpack.c.bf16 %v840, %v840
      %v3921 = vpack.c.bf16 %v841, %v841
      %v3922 = vpack.c.bf16 %v842, %v842
      %v3923 = vpack.c.bf16 %v843, %v843
      %v3924 = vpack.c.bf16 %v844, %v844
      %v3925 = vpack.c.bf16 %v845, %v845
      %v3926 = vpack.c.bf16 %v846, %v846
      %v3927 = vpack.c.bf16 %v847, %v847
      %v3928 = vpack.c.bf16 %v848, %v848
      %v3929 = vpack.c.bf16 %v849, %v849
      %vm3930 = vcmask 257024
      %3931 = vst.msk [vmem:[%s261] sm:$0xf] %vm3930, %v3866
      %3932 = vst.msk [vmem:[%s261 + $0x4] sm:$0xf] %vm3930, %v3867
      %3933 = vst.msk [vmem:[%s261 + $0x8] sm:$0xf] %vm3930, %v3868
      %3934 = vst.msk [vmem:[%s261 + $0xc] sm:$0xf] %vm3930, %v3869
      %3935 = vst.msk [vmem:[%s261 + $0x10] sm:$0xf] %vm3930, %v3870
      %3936 = vst.msk [vmem:[%s261 + $0x14] sm:$0xf] %vm3930, %v3871
      %3937 = vst.msk [vmem:[%s261 + $0x18] sm:$0xf] %vm3930, %v3872
      %3938 = vst.msk [vmem:[%s261 + $0x1c] sm:$0xf] %vm3930, %v3873
      %3939 = vst.msk [vmem:[%s261 + $0x20] sm:$0xf] %vm3930, %v3874
      %3940 = vst.msk [vmem:[%s261 + $0x24] sm:$0xf] %vm3930, %v3875
      %3941 = vst.msk [vmem:[%s261 + $0x28] sm:$0xf] %vm3930, %v3876
      %3942 = vst.msk [vmem:[%s261 + $0x2c] sm:$0xf] %vm3930, %v3877
      %3943 = vst.msk [vmem:[%s261 + $0x30] sm:$0xf] %vm3930, %v3878
      %3944 = vst.msk [vmem:[%s261 + $0x34] sm:$0xf] %vm3930, %v3879
      %3945 = vst.msk [vmem:[%s261 + $0x38] sm:$0xf] %vm3930, %v3880
      %3946 = vst.msk [vmem:[%s261 + $0x3c] sm:$0xf] %vm3930, %v3881
      %3947 = vst.msk [vmem:[%s261 + $0x40] sm:$0xf] %vm3930, %v3882
      %3948 = vst.msk [vmem:[%s261 + $0x44] sm:$0xf] %vm3930, %v3883
      %3949 = vst.msk [vmem:[%s261 + $0x48] sm:$0xf] %vm3930, %v3884
      %3950 = vst.msk [vmem:[%s261 + $0x4c] sm:$0xf] %vm3930, %v3885
      %3951 = vst.msk [vmem:[%s261 + $0x50] sm:$0xf] %vm3930, %v3886
      %3952 = vst.msk [vmem:[%s261 + $0x54] sm:$0xf] %vm3930, %v3887
      %3953 = vst.msk [vmem:[%s261 + $0x58] sm:$0xf] %vm3930, %v3888
      %3954 = vst.msk [vmem:[%s261 + $0x5c] sm:$0xf] %vm3930, %v3889
      %3955 = vst.msk [vmem:[%s261 + $0x60] sm:$0xf] %vm3930, %v3890
      %3956 = vst.msk [vmem:[%s261 + $0x64] sm:$0xf] %vm3930, %v3891
      %3957 = vst.msk [vmem:[%s261 + $0x68] sm:$0xf] %vm3930, %v3892
      %3958 = vst.msk [vmem:[%s261 + $0x6c] sm:$0xf] %vm3930, %v3893
      %3959 = vst.msk [vmem:[%s261 + $0x70] sm:$0xf] %vm3930, %v3894
      %3960 = vst.msk [vmem:[%s261 + $0x74] sm:$0xf] %vm3930, %v3895
      %3961 = vst.msk [vmem:[%s261 + $0x78] sm:$0xf] %vm3930, %v3896
      %3962 = vst.msk [vmem:[%s261 + $0x7c] sm:$0xf] %vm3930, %v3897
      %3963 = vst.msk [vmem:[%s261 + $0x80] sm:$0xf] %vm3930, %v3898
      %3964 = vst.msk [vmem:[%s261 + $0x84] sm:$0xf] %vm3930, %v3899
      %3965 = vst.msk [vmem:[%s261 + $0x88] sm:$0xf] %vm3930, %v3900
      %3966 = vst.msk [vmem:[%s261 + $0x8c] sm:$0xf] %vm3930, %v3901
      %3967 = vst.msk [vmem:[%s261 + $0x90] sm:$0xf] %vm3930, %v3902
      %3968 = vst.msk [vmem:[%s261 + $0x94] sm:$0xf] %vm3930, %v3903
      %3969 = vst.msk [vmem:[%s261 + $0x98] sm:$0xf] %vm3930, %v3904
      %3970 = vst.msk [vmem:[%s261 + $0x9c] sm:$0xf] %vm3930, %v3905
      %3971 = vst.msk [vmem:[%s261 + $0xa0] sm:$0xf] %vm3930, %v3906
      %3972 = vst.msk [vmem:[%s261 + $0xa4] sm:$0xf] %vm3930, %v3907
      %3973 = vst.msk [vmem:[%s261 + $0xa8] sm:$0xf] %vm3930, %v3908
      %3974 = vst.msk [vmem:[%s261 + $0xac] sm:$0xf] %vm3930, %v3909
      %3975 = vst.msk [vmem:[%s261 + $0xb0] sm:$0xf] %vm3930, %v3910
      %3976 = vst.msk [vmem:[%s261 + $0xb4] sm:$0xf] %vm3930, %v3911
      %3977 = vst.msk [vmem:[%s261 + $0xb8] sm:$0xf] %vm3930, %v3912
      %3978 = vst.msk [vmem:[%s261 + $0xbc] sm:$0xf] %vm3930, %v3913
      %3979 = vst.msk [vmem:[%s261 + $0xc0] sm:$0xf] %vm3930, %v3914
      %3980 = vst.msk [vmem:[%s261 + $0xc4] sm:$0xf] %vm3930, %v3915
      %3981 = vst.msk [vmem:[%s261 + $0xc8] sm:$0xf] %vm3930, %v3916
      %3982 = vst.msk [vmem:[%s261 + $0xcc] sm:$0xf] %vm3930, %v3917
      %3983 = vst.msk [vmem:[%s261 + $0xd0] sm:$0xf] %vm3930, %v3918
      %3984 = vst.msk [vmem:[%s261 + $0xd4] sm:$0xf] %vm3930, %v3919
      %3985 = vst.msk [vmem:[%s261 + $0xd8] sm:$0xf] %vm3930, %v3920
      %3986 = vst.msk [vmem:[%s261 + $0xdc] sm:$0xf] %vm3930, %v3921
      %3987 = vst.msk [vmem:[%s261 + $0xe0] sm:$0xf] %vm3930, %v3922
      %3988 = vst.msk [vmem:[%s261 + $0xe4] sm:$0xf] %vm3930, %v3923
      %3989 = vst.msk [vmem:[%s261 + $0xe8] sm:$0xf] %vm3930, %v3924
      %3990 = vst.msk [vmem:[%s261 + $0xec] sm:$0xf] %vm3930, %v3925
      %3991 = vst.msk [vmem:[%s261 + $0xf0] sm:$0xf] %vm3930, %v3926
      %3992 = vst.msk [vmem:[%s261 + $0xf4] sm:$0xf] %vm3930, %v3927
      %3993 = vst.msk [vmem:[%s261 + $0xf8] sm:$0xf] %vm3930, %v3928
      %3994 = vst.msk [vmem:[%s261 + $0xfc] sm:$0xf] %vm3930, %v3929
      %v3995 = vsub.f32 %v1512, %v2920
      %v3996 = vsub.f32 %v1527, %v2935
      %v3997 = vsub.f32 %v1542, %v2950
      %v3998 = vsub.f32 %v1557, %v2965
      %v3999 = vsub.f32 %v1572, %v2980
      %v4000 = vsub.f32 %v1587, %v2995
      %v4001 = vsub.f32 %v1602, %v3010
      %v4002 = vsub.f32 %v1617, %v3025
      %v4003 = vsub.f32 %v1632, %v3040
      %v4004 = vsub.f32 %v1647, %v3055
      %v4005 = vsub.f32 %v1662, %v3070
      %v4006 = vsub.f32 %v1677, %v3085
      %v4007 = vsub.f32 %v1692, %v3100
      %v4008 = vsub.f32 %v1707, %v3115
      %v4009 = vsub.f32 %v1722, %v3130
      %v4010 = vsub.f32 %v1737, %v3145
      %v4011 = vsub.f32 %v1752, %v3160
      %v4012 = vsub.f32 %v1767, %v3175
      %v4013 = vsub.f32 %v1782, %v3190
      %v4014 = vsub.f32 %v1797, %v3205
      %v4015 = vsub.f32 %v1812, %v3220
      %v4016 = vsub.f32 %v1827, %v3235
      %v4017 = vsub.f32 %v1842, %v3250
      %v4018 = vsub.f32 %v1857, %v3265
      %v4019 = vsub.f32 %v1872, %v3280
      %v4020 = vsub.f32 %v1887, %v3295
      %v4021 = vsub.f32 %v1902, %v3310
      %v4022 = vsub.f32 %v1917, %v3325
      %v4023 = vsub.f32 %v1932, %v3340
      %v4024 = vsub.f32 %v1947, %v3355
      %v4025 = vsub.f32 %v1962, %v3370
      %v4026 = vsub.f32 %v1977, %v3385
      %v4027 = vsub.f32 %v1992, %v3400
      %v4028 = vsub.f32 %v2007, %v3415
      %v4029 = vsub.f32 %v2022, %v3430
      %v4030 = vsub.f32 %v2037, %v3445
      %v4031 = vsub.f32 %v2052, %v3460
      %v4032 = vsub.f32 %v2067, %v3475
      %v4033 = vsub.f32 %v2082, %v3490
      %v4034 = vsub.f32 %v2097, %v3505
      %v4035 = vsub.f32 %v2112, %v3520
      %v4036 = vsub.f32 %v2127, %v3535
      %v4037 = vsub.f32 %v2142, %v3550
      %v4038 = vsub.f32 %v2157, %v3565
      %v4039 = vsub.f32 %v2172, %v3580
      %v4040 = vsub.f32 %v2187, %v3595
      %v4041 = vsub.f32 %v2202, %v3610
      %v4042 = vsub.f32 %v2217, %v3625
      %v4043 = vsub.f32 %v2232, %v3640
      %v4044 = vsub.f32 %v2247, %v3655
      %v4045 = vsub.f32 %v2262, %v3670
      %v4046 = vsub.f32 %v2277, %v3685
      %v4047 = vsub.f32 %v2292, %v3700
      %v4048 = vsub.f32 %v2307, %v3715
      %v4049 = vsub.f32 %v2322, %v3730
      %v4050 = vsub.f32 %v2337, %v3745
      %v4051 = vsub.f32 %v2352, %v3760
      %v4052 = vsub.f32 %v2367, %v3775
      %v4053 = vsub.f32 %v2382, %v3790
      %v4054 = vsub.f32 %v2397, %v3805
      %v4055 = vsub.f32 %v2412, %v3820
      %v4056 = vsub.f32 %v2427, %v3835
      %v4057 = vsub.f32 %v2442, %v3850
      %v4058 = vsub.f32 %v2457, %v3865
      %v4059 = vand.u32 2147483647, %v3995
      %v4060 = vand.u32 2147483647, %v3996
      %v4061 = vand.u32 2147483647, %v3997
      %v4062 = vand.u32 2147483647, %v3998
      %v4063 = vand.u32 2147483647, %v3999
      %v4064 = vand.u32 2147483647, %v4000
      %v4065 = vand.u32 2147483647, %v4001
      %v4066 = vand.u32 2147483647, %v4002
      %v4067 = vand.u32 2147483647, %v4003
      %v4068 = vand.u32 2147483647, %v4004
      %v4069 = vand.u32 2147483647, %v4005
      %v4070 = vand.u32 2147483647, %v4006
      %v4071 = vand.u32 2147483647, %v4007
      %v4072 = vand.u32 2147483647, %v4008
      %v4073 = vand.u32 2147483647, %v4009
      %v4074 = vand.u32 2147483647, %v4010
      %v4075 = vand.u32 2147483647, %v4011
      %v4076 = vand.u32 2147483647, %v4012
      %v4077 = vand.u32 2147483647, %v4013
      %v4078 = vand.u32 2147483647, %v4014
      %v4079 = vand.u32 2147483647, %v4015
      %v4080 = vand.u32 2147483647, %v4016
      %v4081 = vand.u32 2147483647, %v4017
      %v4082 = vand.u32 2147483647, %v4018
      %v4083 = vand.u32 2147483647, %v4019
      %v4084 = vand.u32 2147483647, %v4020
      %v4085 = vand.u32 2147483647, %v4021
      %v4086 = vand.u32 2147483647, %v4022
      %v4087 = vand.u32 2147483647, %v4023
      %v4088 = vand.u32 2147483647, %v4024
      %v4089 = vand.u32 2147483647, %v4025
      %v4090 = vand.u32 2147483647, %v4026
      %v4091 = vand.u32 2147483647, %v4027
      %v4092 = vand.u32 2147483647, %v4028
      %v4093 = vand.u32 2147483647, %v4029
      %v4094 = vand.u32 2147483647, %v4030
      %v4095 = vand.u32 2147483647, %v4031
      %v4096 = vand.u32 2147483647, %v4032
      %v4097 = vand.u32 2147483647, %v4033
      %v4098 = vand.u32 2147483647, %v4034
      %v4099 = vand.u32 2147483647, %v4035
      %v4100 = vand.u32 2147483647, %v4036
      %v4101 = vand.u32 2147483647, %v4037
      %v4102 = vand.u32 2147483647, %v4038
      %v4103 = vand.u32 2147483647, %v4039
      %v4104 = vand.u32 2147483647, %v4040
      %v4105 = vand.u32 2147483647, %v4041
      %v4106 = vand.u32 2147483647, %v4042
      %v4107 = vand.u32 2147483647, %v4043
      %v4108 = vand.u32 2147483647, %v4044
      %v4109 = vand.u32 2147483647, %v4045
      %v4110 = vand.u32 2147483647, %v4046
      %v4111 = vand.u32 2147483647, %v4047
      %v4112 = vand.u32 2147483647, %v4048
      %v4113 = vand.u32 2147483647, %v4049
      %v4114 = vand.u32 2147483647, %v4050
      %v4115 = vand.u32 2147483647, %v4051
      %v4116 = vand.u32 2147483647, %v4052
      %v4117 = vand.u32 2147483647, %v4053
      %v4118 = vand.u32 2147483647, %v4054
      %v4119 = vand.u32 2147483647, %v4055
      %v4120 = vand.u32 2147483647, %v4056
      %v4121 = vand.u32 2147483647, %v4057
      %v4122 = vand.u32 2147483647, %v4058
      %v4123 = vmax.f32 %v4059, 1e-09
      %v4124 = vmax.f32 %v4060, 1e-09
      %v4125 = vmax.f32 %v4061, 1e-09
      %v4126 = vmax.f32 %v4062, 1e-09
      %v4127 = vmax.f32 %v4063, 1e-09
      %v4128 = vmax.f32 %v4064, 1e-09
      %v4129 = vmax.f32 %v4065, 1e-09
      %v4130 = vmax.f32 %v4066, 1e-09
      %v4131 = vmax.f32 %v4067, 1e-09
      %v4132 = vmax.f32 %v4068, 1e-09
      %v4133 = vmax.f32 %v4069, 1e-09
      %v4134 = vmax.f32 %v4070, 1e-09
      %v4135 = vmax.f32 %v4071, 1e-09
      %v4136 = vmax.f32 %v4072, 1e-09
      %v4137 = vmax.f32 %v4073, 1e-09
      %v4138 = vmax.f32 %v4074, 1e-09
      %v4139 = vmax.f32 %v4075, 1e-09
      %v4140 = vmax.f32 %v4076, 1e-09
      %v4141 = vmax.f32 %v4077, 1e-09
      %v4142 = vmax.f32 %v4078, 1e-09
      %v4143 = vmax.f32 %v4079, 1e-09
      %v4144 = vmax.f32 %v4080, 1e-09
      %v4145 = vmax.f32 %v4081, 1e-09
      %v4146 = vmax.f32 %v4082, 1e-09
      %v4147 = vmax.f32 %v4083, 1e-09
      %v4148 = vmax.f32 %v4084, 1e-09
      %v4149 = vmax.f32 %v4085, 1e-09
      %v4150 = vmax.f32 %v4086, 1e-09
      %v4151 = vmax.f32 %v4087, 1e-09
      %v4152 = vmax.f32 %v4088, 1e-09
      %v4153 = vmax.f32 %v4089, 1e-09
      %v4154 = vmax.f32 %v4090, 1e-09
      %v4155 = vmax.f32 %v4091, 1e-09
      %v4156 = vmax.f32 %v4092, 1e-09
      %v4157 = vmax.f32 %v4093, 1e-09
      %v4158 = vmax.f32 %v4094, 1e-09
      %v4159 = vmax.f32 %v4095, 1e-09
      %v4160 = vmax.f32 %v4096, 1e-09
      %v4161 = vmax.f32 %v4097, 1e-09
      %v4162 = vmax.f32 %v4098, 1e-09
      %v4163 = vmax.f32 %v4099, 1e-09
      %v4164 = vmax.f32 %v4100, 1e-09
      %v4165 = vmax.f32 %v4101, 1e-09
      %v4166 = vmax.f32 %v4102, 1e-09
      %v4167 = vmax.f32 %v4103, 1e-09
      %v4168 = vmax.f32 %v4104, 1e-09
      %v4169 = vmax.f32 %v4105, 1e-09
      %v4170 = vmax.f32 %v4106, 1e-09
      %v4171 = vmax.f32 %v4107, 1e-09
      %v4172 = vmax.f32 %v4108, 1e-09
      %v4173 = vmax.f32 %v4109, 1e-09
      %v4174 = vmax.f32 %v4110, 1e-09
      %v4175 = vmax.f32 %v4111, 1e-09
      %v4176 = vmax.f32 %v4112, 1e-09
      %v4177 = vmax.f32 %v4113, 1e-09
      %v4178 = vmax.f32 %v4114, 1e-09
      %v4179 = vmax.f32 %v4115, 1e-09
      %v4180 = vmax.f32 %v4116, 1e-09
      %v4181 = vmax.f32 %v4117, 1e-09
      %v4182 = vmax.f32 %v4118, 1e-09
      %v4183 = vmax.f32 %v4119, 1e-09
      %v4184 = vmax.f32 %v4120, 1e-09
      %v4185 = vmax.f32 %v4121, 1e-09
      %v4186 = vmax.f32 %v4122, 1e-09
      %vm4187 = vcmask 261120
      %4188 = vst.msk [vmem:[%s267] sm:$0xff] %vm4187, %v4123
      %4189 = vst.msk [vmem:[%s267 + $0x8] sm:$0xff] %vm4187, %v4124
      %4190 = vst.msk [vmem:[%s267 + $0x10] sm:$0xff] %vm4187, %v4125
      %4191 = vst.msk [vmem:[%s267 + $0x18] sm:$0xff] %vm4187, %v4126
      %4192 = vst.msk [vmem:[%s267 + $0x20] sm:$0xff] %vm4187, %v4127
      %4193 = vst.msk [vmem:[%s267 + $0x28] sm:$0xff] %vm4187, %v4128
      %4194 = vst.msk [vmem:[%s267 + $0x30] sm:$0xff] %vm4187, %v4129
      %4195 = vst.msk [vmem:[%s267 + $0x38] sm:$0xff] %vm4187, %v4130
      %4196 = vst.msk [vmem:[%s267 + $0x40] sm:$0xff] %vm4187, %v4131
      %4197 = vst.msk [vmem:[%s267 + $0x48] sm:$0xff] %vm4187, %v4132
      %4198 = vst.msk [vmem:[%s267 + $0x50] sm:$0xff] %vm4187, %v4133
      %4199 = vst.msk [vmem:[%s267 + $0x58] sm:$0xff] %vm4187, %v4134
      %4200 = vst.msk [vmem:[%s267 + $0x60] sm:$0xff] %vm4187, %v4135
      %4201 = vst.msk [vmem:[%s267 + $0x68] sm:$0xff] %vm4187, %v4136
      %4202 = vst.msk [vmem:[%s267 + $0x70] sm:$0xff] %vm4187, %v4137
      %4203 = vst.msk [vmem:[%s267 + $0x78] sm:$0xff] %vm4187, %v4138
      %4204 = vst.msk [vmem:[%s267 + $0x80] sm:$0xff] %vm4187, %v4139
      %4205 = vst.msk [vmem:[%s267 + $0x88] sm:$0xff] %vm4187, %v4140
      %4206 = vst.msk [vmem:[%s267 + $0x90] sm:$0xff] %vm4187, %v4141
      %4207 = vst.msk [vmem:[%s267 + $0x98] sm:$0xff] %vm4187, %v4142
      %4208 = vst.msk [vmem:[%s267 + $0xa0] sm:$0xff] %vm4187, %v4143
      %4209 = vst.msk [vmem:[%s267 + $0xa8] sm:$0xff] %vm4187, %v4144
      %4210 = vst.msk [vmem:[%s267 + $0xb0] sm:$0xff] %vm4187, %v4145
      %4211 = vst.msk [vmem:[%s267 + $0xb8] sm:$0xff] %vm4187, %v4146
      %4212 = vst.msk [vmem:[%s267 + $0xc0] sm:$0xff] %vm4187, %v4147
      %4213 = vst.msk [vmem:[%s267 + $0xc8] sm:$0xff] %vm4187, %v4148
      %4214 = vst.msk [vmem:[%s267 + $0xd0] sm:$0xff] %vm4187, %v4149
      %4215 = vst.msk [vmem:[%s267 + $0xd8] sm:$0xff] %vm4187, %v4150
      %4216 = vst.msk [vmem:[%s267 + $0xe0] sm:$0xff] %vm4187, %v4151
      %4217 = vst.msk [vmem:[%s267 + $0xe8] sm:$0xff] %vm4187, %v4152
      %4218 = vst.msk [vmem:[%s267 + $0xf0] sm:$0xff] %vm4187, %v4153
      %4219 = vst.msk [vmem:[%s267 + $0xf8] sm:$0xff] %vm4187, %v4154
      %4220 = vst.msk [vmem:[%s267 + $0x100] sm:$0xff] %vm4187, %v4155
      %4221 = vst.msk [vmem:[%s267 + $0x108] sm:$0xff] %vm4187, %v4156
      %4222 = vst.msk [vmem:[%s267 + $0x110] sm:$0xff] %vm4187, %v4157
      %4223 = vst.msk [vmem:[%s267 + $0x118] sm:$0xff] %vm4187, %v4158
      %4224 = vst.msk [vmem:[%s267 + $0x120] sm:$0xff] %vm4187, %v4159
      %4225 = vst.msk [vmem:[%s267 + $0x128] sm:$0xff] %vm4187, %v4160
      %4226 = vst.msk [vmem:[%s267 + $0x130] sm:$0xff] %vm4187, %v4161
      %4227 = vst.msk [vmem:[%s267 + $0x138] sm:$0xff] %vm4187, %v4162
      %4228 = vst.msk [vmem:[%s267 + $0x140] sm:$0xff] %vm4187, %v4163
      %4229 = vst.msk [vmem:[%s267 + $0x148] sm:$0xff] %vm4187, %v4164
      %4230 = vst.msk [vmem:[%s267 + $0x150] sm:$0xff] %vm4187, %v4165
      %4231 = vst.msk [vmem:[%s267 + $0x158] sm:$0xff] %vm4187, %v4166
      %4232 = vst.msk [vmem:[%s267 + $0x160] sm:$0xff] %vm4187, %v4167
      %4233 = vst.msk [vmem:[%s267 + $0x168] sm:$0xff] %vm4187, %v4168
      %4234 = vst.msk [vmem:[%s267 + $0x170] sm:$0xff] %vm4187, %v4169
      %4235 = vst.msk [vmem:[%s267 + $0x178] sm:$0xff] %vm4187, %v4170
      %4236 = vst.msk [vmem:[%s267 + $0x180] sm:$0xff] %vm4187, %v4171
      %4237 = vst.msk [vmem:[%s267 + $0x188] sm:$0xff] %vm4187, %v4172
      %4238 = vst.msk [vmem:[%s267 + $0x190] sm:$0xff] %vm4187, %v4173
      %4239 = vst.msk [vmem:[%s267 + $0x198] sm:$0xff] %vm4187, %v4174
      %4240 = vst.msk [vmem:[%s267 + $0x1a0] sm:$0xff] %vm4187, %v4175
      %4241 = vst.msk [vmem:[%s267 + $0x1a8] sm:$0xff] %vm4187, %v4176
      %4242 = vst.msk [vmem:[%s267 + $0x1b0] sm:$0xff] %vm4187, %v4177
      %4243 = vst.msk [vmem:[%s267 + $0x1b8] sm:$0xff] %vm4187, %v4178
      %4244 = vst.msk [vmem:[%s267 + $0x1c0] sm:$0xff] %vm4187, %v4179
      %4245 = vst.msk [vmem:[%s267 + $0x1c8] sm:$0xff] %vm4187, %v4180
      %4246 = vst.msk [vmem:[%s267 + $0x1d0] sm:$0xff] %vm4187, %v4181
      %4247 = vst.msk [vmem:[%s267 + $0x1d8] sm:$0xff] %vm4187, %v4182
      %4248 = vst.msk [vmem:[%s267 + $0x1e0] sm:$0xff] %vm4187, %v4183
      %4249 = vst.msk [vmem:[%s267 + $0x1e8] sm:$0xff] %vm4187, %v4184
      %4250 = vst.msk [vmem:[%s267 + $0x1f0] sm:$0xff] %vm4187, %v4185
      %4251 = vst.msk [vmem:[%s267 + $0x1f8] sm:$0xff] %vm4187, %v4186
      %s4252 = smul.u32 64, %s18
      %p4253 = scmp.lt.s32.totalorder %s4252, 127
      %s4254 = scalar_select %p4253, %s4252, 127
      %s4255 = smul.addr %s4254, 4
      %s4256 = scalar_lea.vmem %s5, %s4255
      %s4257 = smul.u32 64, %s18
      %p4258 = scmp.lt.s32.totalorder %s4257, 127
      %s4259 = scalar_select %p4258, %s4257, 127
      %s4260 = smul.addr %s4259, 8
      %s4261 = scalar_lea.vmem %s6, %s4260
      // Predicated region
      $region41: #{tpu_custom_call.1} parent=39 // pred_check
        %p4262 = pneg %p146
      $region42: #{tpu_custom_call.1} parent=39 // pred_check_branch
        %4264 = sbr.rel (%p4262) target = $region44
      $region43: #{tpu_custom_call.1} parent=39 // pred_region
        %s4265 = smul.u32 64, %s18
      $region44: #{tpu_custom_call.1} parent=39 // pred_fallthru
        _
      // Predicated region
      $region45: #{tpu_custom_call.1} parent=39 // pred_check
        %p4266 = pneg %p172
      $region46: #{tpu_custom_call.1} parent=39 // pred_check_branch
        %4268 = sbr.rel (%p4266) target = $region48
      $region47: #{tpu_custom_call.1} parent=39 // pred_region
        %s4269 = smul.u32 64, %s18
      $region48: #{tpu_custom_call.1} parent=39 // pred_fallthru
        _
    $region40: #{tpu_custom_call.1} parent=5 // pred_fallthru
      _
    %p4270 = scmp.le.s32.totalorder 2, %s13
    // Predicated region
    $region49: #{tpu_custom_call.1} parent=5 // pred_check
      %p4271 = pneg %p4270
    $region50: #{tpu_custom_call.1} parent=5 // pred_check_branch
      %4273 = sbr.rel (%p4271) target = $region52
    $region51: #{tpu_custom_call.1} parent=5 // pred_region
      %s4274 = ssub.s32 %s13, 2
      // Predicated region
      $region53: #{tpu_custom_call.1} parent=51 // pred_check
        %p4275 = pneg %p152
      $region54: #{tpu_custom_call.1} parent=51 // pred_check_branch
        %4277 = sbr.rel (%p4275) target = $region56
      $region55: #{tpu_custom_call.1} parent=51 // pred_region
        %s4278 = smul.u32 64, %s19
        %p4279 = scmp.lt.s32.totalorder %s4278, 127
        %s4280 = scalar_select %p4279, %s4278, 127
        %s4281 = smul.addr %s4280, 4
        %s4282 = scalar_lea.vmem %s5, %s4281
      $region56: #{tpu_custom_call.1} parent=51 // pred_fallthru
        _
      // Predicated region
      $region57: #{tpu_custom_call.1} parent=51 // pred_check
        %p4283 = pneg %p178
      $region58: #{tpu_custom_call.1} parent=51 // pred_check_branch
        %4285 = sbr.rel (%p4283) target = $region60
      $region59: #{tpu_custom_call.1} parent=51 // pred_region
        %s4286 = smul.u32 64, %s19
        %p4287 = scmp.lt.s32.totalorder %s4286, 127
        %s4288 = scalar_select %p4287, %s4286, 127
        %s4289 = smul.addr %s4288, 8
        %s4290 = scalar_lea.vmem %s6, %s4289
      $region60: #{tpu_custom_call.1} parent=51 // pred_fallthru
        _
    $region52: #{tpu_custom_call.1} parent=5 // pred_fallthru
      _
  $region6: #{tpu_custom_call.1} parent=0 // loop_footer
    %s17 = sadd.s32 1, %s13
  $region7: #{tpu_custom_call.1} parent=0 // loop_footer_branch
    %12 = sbr.rel target = $region3
  $region8: #{tpu_custom_call.1} parent=0 // loop_exit
    _

</llo_original>
